<compile_context>
chip_gen: v5e
topology: v5e:2x2
jax: 0.10.0
libtpu: 0.0.40
codegen_flags: <defaults>
</compile_context>

<pallas_src>
import functools
import math

import jax
import jax.numpy as jnp
from jax.experimental import pallas as pl
from jax.experimental.pallas import tpu as pltpu


# --------------------------------------------------------------------------
# Model hyperparameters (small shapes consistent with the reference module)
# --------------------------------------------------------------------------
N_EXPRESSION = 8
LSTM_NUM_LAYER = 2
HIDDEN_SIZE = 32
OUTPUT_SIZE = 8
SPEECH_NUM_EMOTIONS = 8   # must equal OUTPUT_SIZE so cat dim == output_size*2
CONV_CH = 16              # EmoNet per-frame conv channels
SP_CONV_CH = 8            # each parallel speech conv branch
N_MELS = 16
D_FRAME = N_EXPRESSION + 2          # expression logits + valence/arousal
D_MODEL = 2 * SP_CONV_CH            # speech feature dim after branch concat


# --------------------------------------------------------------------------
# Pallas kernels
# --------------------------------------------------------------------------
def _frame_cnn_kernel(p_ref, cw_ref, cb_ref, fw_ref, fb_ref, o_ref,
                      *, frames_per_block, hw):
    """Fused im2col-conv matmul + ReLU + global avg-pool + per-frame FC."""
    # p_ref: (frames_per_block*hw, C*9) bf16 patches for `frames_per_block` frames.
    y = jnp.dot(p_ref[...], cw_ref[...], preferred_element_type=jnp.float32)
    y = jnp.maximum(y + cb_ref[...], 0.0)                    # (fpb*hw, F) f32, VMEM only
    f = y.shape[-1]
    pooled = jnp.mean(y.reshape(frames_per_block, hw, f), axis=1)   # (fpb, F)
    feat = (jnp.dot(pooled, fw_ref[...], preferred_element_type=jnp.float32)
            + fb_ref[...])                                   # (fpb, d_frame)
    o_ref[...] = feat[:, None, :]


def frame_cnn_pool_fc(patches, conv_w, conv_b, fc_w, fc_b, *, n_frames, hw):
    """patches: (n_frames*hw, Kc) bf16 -> per-frame features (n_frames, d_frame)."""
    _, kc = patches.shape
    f = conv_w.shape[1]
    df = fc_w.shape[1]
    fpb = 2 if n_frames % 2 == 0 else 1        # 512-row M blocks when possible
    out = pl.pallas_call(
        functools.partial(_frame_cnn_kernel, frames_per_block=fpb, hw=hw),
        out_shape=jax.ShapeDtypeStruct((n_frames, 1, df), jnp.float32),
        grid=(n_frames // fpb,),
        in_specs=[
            pl.BlockSpec((fpb * hw, kc), lambda i: (i, 0)),
            pl.BlockSpec((kc, f), lambda i: (0, 0)),
            pl.BlockSpec((1, f), lambda i: (0, 0)),
            pl.BlockSpec((f, df), lambda i: (0, 0)),
            pl.BlockSpec((1, df), lambda i: (0, 0)),
        ],
        out_specs=pl.BlockSpec((fpb, 1, df), lambda i: (i, 0, 0)),
        compiler_params=pltpu.CompilerParams(
            dimension_semantics=("parallel",)),   # megacore-sharded on v7x
    )(patches, conv_w, conv_b, fc_w, fc_b)
    return out[:, 0, :]                                       # (n_frames, d_frame)


def _lstm_stack_kernel(*refs, num_layers, hidden):
    """Both LSTM layers + emo output head fused; time fully unrolled in VMEM."""
    x_ref = refs[0]
    layer_refs = refs[1:1 + 3 * num_layers]
    ow_ref = refs[1 + 3 * num_layers]
    ob_ref = refs[2 + 3 * num_layers]
    o_ref = refs[3 + 3 * num_layers]
    t_len, b, _ = x_ref.shape
    h_dim = hidden

    # Hoist all weights out of the unrolled time loop (read once into vregs).
    ws = [(layer_refs[3 * l][...], layer_refs[3 * l + 1][...],
           layer_refs[3 * l + 2][...]) for l in range(num_layers)]
    hs = [jnp.zeros((b, h_dim), jnp.float32) for _ in range(num_layers)]
    cs = [jnp.zeros((b, h_dim), jnp.float32) for _ in range(num_layers)]

    # T is small & static: fully unrolled loop gives the scheduler
    # cross-timestep visibility and avoids per-grid-step overhead.
    for t in range(t_len):
        inp = x_ref[t]                      # (B, D)
        for l in range(num_layers):
            wih, whh, bias = ws[l]
            gates = (jnp.dot(inp, wih, preferred_element_type=jnp.float32)
                     + jnp.dot(hs[l], whh, preferred_element_type=jnp.float32)
                     + bias)
            # PyTorch LSTM gate order: i, f, g, o
            i = jax.nn.sigmoid(gates[:, 0 * h_dim:1 * h_dim])
            f = jax.nn.sigmoid(gates[:, 1 * h_dim:2 * h_dim])
            g = jnp.tanh(gates[:, 2 * h_dim:3 * h_dim])
            o = jax.nn.sigmoid(gates[:, 3 * h_dim:4 * h_dim])
            cs[l] = f * cs[l] + i * g
            hs[l] = o * jnp.tanh(cs[l])
            inp = hs[l]
    o_ref[...] = (jnp.dot(hs[-1], ow_ref[...], preferred_element_type=jnp.float32)
                  + ob_ref[...])


def lstm_emo_head(x_seq, lstm_params, out_w, out_b):
    """x_seq: (T, B, D) time-major -> (B, OUTPUT_SIZE)."""
    t_len, b, d = x_seq.shape
    h_dim = lstm_params[0][1].shape[0]
    nl = len(lstm_params)

    args = [x_seq]
    in_specs = [pl.BlockSpec((t_len, b, d), lambda i: (0, 0, 0))]
    for wih, whh, bias in lstm_params:
        args += [wih, whh, bias.reshape(1, -1)]
        in_specs += [
            pl.BlockSpec(wih.shape, lambda i: (0, 0)),
            pl.BlockSpec(whh.shape, lambda i: (0, 0)),
            pl.BlockSpec((1, bias.shape[0]), lambda i: (0, 0)),
        ]
    args += [out_w, out_b.reshape(1, -1)]
    in_specs += [pl.BlockSpec(out_w.shape, lambda i: (0, 0)),
                 pl.BlockSpec((1, out_b.shape[0]), lambda i: (0, 0))]
    n_out = out_w.shape[1]
    return pl.pallas_call(
        functools.partial(_lstm_stack_kernel, num_layers=nl, hidden=h_dim),
        out_shape=jax.ShapeDtypeStruct((b, n_out), jnp.float32),
        grid=(1,),
        in_specs=in_specs,
        out_specs=pl.BlockSpec((b, n_out), lambda i: (0, 0)),
    )(*args)


def _speech_kernel(p_ref, cw_ref, cb_ref, wqkv_ref, bqkv_ref,
                   w1_ref, b1_ref, w2_ref, b2_ref, wc_ref, bc_ref,
                   o_ref, *, batch, seq, d_model):
    """Fused speech branch: merged convs, QKV, attention, FFN, pool, classifier."""
    d = d_model
    # merged parallel 1-D convs (block-diagonal weight) + ReLU
    feat = (jnp.dot(p_ref[...], cw_ref[...], preferred_element_type=jnp.float32)
            + cb_ref[...])
    feat = jnp.maximum(feat, 0.0)                              # (B*S, d)
    # fused QKV projection: one N=3d matmul instead of three N=d matmuls
    qkv = (jnp.dot(feat, wqkv_ref[...], preferred_element_type=jnp.float32)
           + bqkv_ref[...])                                    # (B*S, 3d)
    q = qkv[:, 0 * d:1 * d].reshape(batch, seq, d)
    k = qkv[:, 1 * d:2 * d].reshape(batch, seq, d)
    v = qkv[:, 2 * d:3 * d].reshape(batch, seq, d)
    s = jnp.einsum("btd,bsd->bts", q, k,
                   preferred_element_type=jnp.float32) * (1.0 / math.sqrt(d))
    a = jnp.einsum("bts,bsd->btd", jax.nn.softmax(s, axis=-1), v,
                   preferred_element_type=jnp.float32)
    y = feat + a.reshape(batch * seq, d)                       # residual
    h = jnp.maximum(jnp.dot(y, w1_ref[...], preferred_element_type=jnp.float32)
                    + b1_ref[...], 0.0)
    h = jnp.dot(h, w2_ref[...], preferred_element_type=jnp.float32) + b2_ref[...]
    y = y + h                                                  # residual
    pooled = jnp.mean(y.reshape(batch, seq, d), axis=1)        # (B, d)
    o_ref[...] = (jnp.dot(pooled, wc_ref[...], preferred_element_type=jnp.float32)
                  + bc_ref[...])


def speech_block(patches, cw, cb, wqkv, bqkv, w1, b1, w2, b2, wc, bc, *, batch, seq):
    d = cw.shape[1]
    n_cls = wc.shape[1]
    args = [patches, cw, cb.reshape(1, -1), wqkv, bqkv.reshape(1, -1),
            w1, b1.reshape(1, -1), w2, b2.reshape(1, -1), wc, bc.reshape(1, -1)]
    in_specs = [pl.BlockSpec(a.shape, lambda i: (0, 0)) for a in args]
    return pl.pallas_call(
        functools.partial(_speech_kernel, batch=batch, seq=seq, d_model=d),
        out_shape=jax.ShapeDtypeStruct((batch, n_cls), jnp.float32),
        grid=(1,),
        in_specs=in_specs,
        out_specs=pl.BlockSpec((batch, n_cls), lambda i: (0, 0)),
    )(*args)


def _concat_fc_kernel(a_ref, b_ref, w_ref, bias_ref, o_ref):
    # out = cat([a, b], dim=1) @ W + bias == a @ W[:Da] + b @ W[Da:] + bias
    da = a_ref.shape[-1]
    w = w_ref[...]
    o_ref[...] = (
        jnp.dot(a_ref[...], w[:da, :], preferred_element_type=jnp.float32)
        + jnp.dot(b_ref[...], w[da:, :], preferred_element_type=jnp.float32)
        + bias_ref[...]
    )


def concat_fc(a, b, w, bias):
    bsz, da = a.shape
    db = b.shape[1]
    n = w.shape[1]
    return pl.pallas_call(
        _concat_fc_kernel,
        out_shape=jax.ShapeDtypeStruct((bsz, n), jnp.float32),
        grid=(1,),
        in_specs=[
            pl.BlockSpec((bsz, da), lambda i: (0, 0)),
            pl.BlockSpec((bsz, db), lambda i: (0, 0)),
            pl.BlockSpec((da + db, n), lambda i: (0, 0)),
            pl.BlockSpec((1, n), lambda i: (0, 0)),
        ],
        out_specs=pl.BlockSpec((bsz, n), lambda i: (0, 0)),
    )(a, b, w, bias.reshape(1, n))


# --------------------------------------------------------------------------
# Glue: im2col helpers (reshape/pad only; matmuls run in Pallas)
# --------------------------------------------------------------------------
def im2col_2d(x, kh, kw, pad):
    """x: (N, C, H, W) -> (N*H*W, C*kh*kw), ordered (C, kh, kw) like PyTorch conv weight."""
    n, c, h, w = x.shape
    xp = jnp.pad(x, ((0, 0), (0, 0), (pad, pad), (pad, pad)))
    cols = [xp[:, :, i:i + h, j:j + w] for i in range(kh) for j in range(kw)]
    patches = jnp.stack(cols, axis=-1)          # (N, C, H, W, kh*kw)
    patches = patches.transpose(0, 2, 3, 1, 4)  # (N, H, W, C, kh*kw)
    return patches.reshape(n * h * w, c * kh * kw)


def im2col_1d(x, k, pad):
    """x: (B, Cin, S) -> (B*S, Cin*k), ordered (Cin, k) like PyTorch conv1d weight."""
    b, cin, s = x.shape
    xp = jnp.pad(x, ((0, 0), (0, 0), (pad, pad)))
    cols = [xp[:, :, j:j + s] for j in range(k)]
    patches = jnp.stack(cols, axis=-1)          # (B, Cin, S, k)
    patches = patches.transpose(0, 2, 1, 3)     # (B, S, Cin, k)
    return patches.reshape(b * s, cin * k)


# --------------------------------------------------------------------------
# Model: parameters + forward
# --------------------------------------------------------------------------
def init_params(key):
    keys = iter(jax.random.split(key, 64))

    def nrm(shape, scale=0.1):
        return (scale * jax.random.normal(next(keys), shape)).astype(jnp.float32)

    def zeros(shape):
        return jnp.zeros(shape, jnp.float32)

    p = {}
    # --- EmoNetLSTM (simplified) ---
    p["emo_conv_w"] = nrm((CONV_CH, 3, 3, 3))        # (F, C, kh, kw)
    p["emo_conv_b"] = zeros((CONV_CH,))
    p["emo_fc_w"] = nrm((CONV_CH, D_FRAME))
    p["emo_fc_b"] = zeros((D_FRAME,))
    lstm = []
    din = D_FRAME
    for _ in range(LSTM_NUM_LAYER):
        lstm.append((nrm((din, 4 * HIDDEN_SIZE)),
                     nrm((HIDDEN_SIZE, 4 * HIDDEN_SIZE)),
                     zeros((4 * HIDDEN_SIZE,))))
        din = HIDDEN_SIZE
    p["lstm"] = lstm
    p["emo_out_w"] = nrm((HIDDEN_SIZE, OUTPUT_SIZE))
    p["emo_out_b"] = zeros((OUTPUT_SIZE,))
    # --- ParallelCnnTransformerModel (simplified) ---
    p["sp_conv1_w"] = nrm((SP_CONV_CH, N_MELS, 3))
    p["sp_conv1_b"] = zeros((SP_CONV_CH,))
    p["sp_conv2_w"] = nrm((SP_CONV_CH, N_MELS, 5))
    p["sp_conv2_b"] = zeros((SP_CONV_CH,))
    for nm in ("q", "k", "v"):
        p[f"sp_w{nm}"] = nrm((D_MODEL, D_MODEL))
        p[f"sp_b{nm}"] = zeros((D_MODEL,))
    p["sp_ff1_w"] = nrm((D_MODEL, 2 * D_MODEL))
    p["sp_ff1_b"] = zeros((2 * D_MODEL,))
    p["sp_ff2_w"] = nrm((2 * D_MODEL, D_MODEL))
    p["sp_ff2_b"] = zeros((D_MODEL,))
    p["sp_cls_w"] = nrm((D_MODEL, SPEECH_NUM_EMOTIONS))
    p["sp_cls_b"] = zeros((SPEECH_NUM_EMOTIONS,))
    # --- final fusion fc: Linear(output_size*2 -> output_size) ---
    p["fc_w"] = nrm((OUTPUT_SIZE + SPEECH_NUM_EMOTIONS, OUTPUT_SIZE))
    p["fc_b"] = zeros((OUTPUT_SIZE,))
    return p


def emonet_lstm_forward(p, img):
    b, t, c, h, w = img.shape
    frames = img.reshape(b * t, c, h, w)
    # im2col in XLA; MXU inputs in bf16, accumulation in f32.
    patches = im2col_2d(frames, 3, 3, 1).astype(jnp.bfloat16)        # (B*T*H*W, C*9)
    conv_w = p["emo_conv_w"].reshape(CONV_CH, -1).T.astype(jnp.bfloat16)  # (C*9, F)
    feat = frame_cnn_pool_fc(patches, conv_w,
                             p["emo_conv_b"].reshape(1, -1),
                             p["emo_fc_w"], p["emo_fc_b"].reshape(1, -1),
                             n_frames=b * t, hw=h * w)               # (B*T, d_frame)
    x = feat.reshape(b, t, -1).transpose(1, 0, 2)                    # time-major (T, B, D)
    return lstm_emo_head(x, p["lstm"], p["emo_out_w"], p["emo_out_b"])   # (B, OUTPUT_SIZE)


def speech_forward(p, speech):
    b = speech.shape[0]
    x = speech[:, 0]                                   # (B, n_mels, S)
    s = x.shape[-1]
    # Merged im2col for the two parallel conv branches (k=3, k=5): K = 128 lane-dense.
    p3 = im2col_1d(x, 3, 1)                            # (B*S, n_mels*3)
    p5 = im2col_1d(x, 5, 2)                            # (B*S, n_mels*5)
    patches = jnp.concatenate([p3, p5], axis=-1)       # (B*S, 128)
    k1 = p3.shape[-1]
    w1r = p["sp_conv1_w"].reshape(SP_CONV_CH, -1).T    # (n_mels*3, 8)
    w2r = p["sp_conv2_w"].reshape(SP_CONV_CH, -1).T    # (n_mels*5, 8)
    cw = jnp.zeros((patches.shape[-1], D_MODEL), jnp.float32)
    cw = cw.at[:k1, :SP_CONV_CH].set(w1r)
    cw = cw.at[k1:, SP_CONV_CH:].set(w2r)              # block-diagonal merged weight
    cb = jnp.concatenate([p["sp_conv1_b"], p["sp_conv2_b"]])
    wqkv = jnp.concatenate([p["sp_wq"], p["sp_wk"], p["sp_wv"]], axis=1)   # (d, 3d)
    bqkv = jnp.concatenate([p["sp_bq"], p["sp_bk"], p["sp_bv"]])
    logits = speech_block(patches, cw, cb, wqkv, bqkv,
                          p["sp_ff1_w"], p["sp_ff1_b"],
                          p["sp_ff2_w"], p["sp_ff2_b"],
                          p["sp_cls_w"], p["sp_cls_b"],
                          batch=b, seq=s)              # (B, num_emotions)
    return logits, jax.nn.softmax(logits, axis=-1)


def forward(p, img, speech):
    emo = emonet_lstm_forward(p, img)                  # (B, OUTPUT_SIZE)
    sp_logits, _sp_softmax = speech_forward(p, speech) # (B, SPEECH_NUM_EMOTIONS)
    return concat_fc(emo, sp_logits, p["fc_w"], p["fc_b"])   # (B, OUTPUT_SIZE)


# --------------------------------------------------------------------------
if __name__ == "__main__":
    key = jax.random.PRNGKey(0)
    k_img, k_speech, k_params = jax.random.split(key, 3)

    B, T, C, Himg, Wimg = 2, 8, 3, 16, 16
    S = 32  # speech time frames

    img = jax.random.normal(k_img, (B, T, C, Himg, Wimg), jnp.float32)
    speech = jax.random.normal(k_speech, (B, 1, N_MELS, S), jnp.float32)
    params = init_params(k_params)

    out = jax.jit(forward)(params, img, speech)
    out = jax.block_until_ready(out)
    assert out.shape == (B, OUTPUT_SIZE) and out.dtype == jnp.float32
    print("KERNEL_OK")
</pallas_src>

<mosaic_0001>
module attributes {stable_mosaic.version = 11 : i64} {
  func.func @_frame_cnn_kernel(%arg0: i32, %arg1: memref<512x27xbf16, #tpu.memory_space<vmem>>, %arg2: memref<27x16xbf16, #tpu.memory_space<vmem>>, %arg3: memref<1x16xf32, #tpu.memory_space<vmem>>, %arg4: memref<16x10xf32, #tpu.memory_space<vmem>>, %arg5: memref<1x10xf32, #tpu.memory_space<vmem>>, %arg6: memref<2x1x10xf32, #tpu.memory_space<vmem>>) attributes {dimension_semantics = [#tpu.dimension_semantics<parallel>], iteration_bounds = array<i64: 8>, scalar_prefetch = 0 : i64, scratch_operands = 0 : i64, tpu.core_type = #tpu.core_type<tc>, window_params = [{transform_indices = @transform_0, window_bounds = array<i64: 512, 27>}, {pipeline_mode = #tpu.pipeline_mode<synchronous>, transform_indices = @transform_1, window_bounds = array<i64: 27, 16>}, {pipeline_mode = #tpu.pipeline_mode<synchronous>, transform_indices = @transform_2, window_bounds = array<i64: 1, 16>}, {pipeline_mode = #tpu.pipeline_mode<synchronous>, transform_indices = @transform_3, window_bounds = array<i64: 16, 10>}, {pipeline_mode = #tpu.pipeline_mode<synchronous>, transform_indices = @transform_4, window_bounds = array<i64: 1, 10>}, {transform_indices = @transform_5, window_bounds = array<i64: 2, 1, 10>}]} {
    %c0 = arith.constant 0 : index
    %c0_0 = arith.constant 0 : index
    %0 = vector.load %arg1[%c0, %c0_0] : memref<512x27xbf16, #tpu.memory_space<vmem>>, vector<512x27xbf16>
    %c0_1 = arith.constant 0 : index
    %c0_2 = arith.constant 0 : index
    %1 = vector.load %arg2[%c0_1, %c0_2] : memref<27x16xbf16, #tpu.memory_space<vmem>>, vector<27x16xbf16>
    %cst = arith.constant dense<0.000000e+00> : vector<512x16xf32>
    %2 = tpu.matmul %0, %1, %cst {dimension_numbers = #tpu.dot_dimension_numbers<[1], [0], [0], [1], [0, 0, 1, 1], [], []>} : vector<512x27xbf16>, vector<27x16xbf16>, vector<512x16xf32> -> vector<512x16xf32>
    %c0_3 = arith.constant 0 : index
    %c0_4 = arith.constant 0 : index
    %3 = vector.load %arg3[%c0_3, %c0_4] : memref<1x16xf32, #tpu.memory_space<vmem>>, vector<1x16xf32>
    %4 = vector.broadcast %3 : vector<1x16xf32> to vector<512x16xf32>
    %5 = arith.addf %2, %4 : vector<512x16xf32>
    %cst_5 = arith.constant 0.000000e+00 : f32
    %6 = vector.broadcast %cst_5 : f32 to vector<512x16xf32>
    %7 = arith.maximumf %5, %6 : vector<512x16xf32>
    %8 = vector.shape_cast %7 : vector<512x16xf32> to vector<2x256x16xf32>
    %cst_6 = arith.constant dense<0.000000e+00> : vector<2x16xf32>
    %9 = vector.multi_reduction <add>, %8, %cst_6 [1] : vector<2x256x16xf32> to vector<2x16xf32>
    %cst_7 = arith.constant 2.560000e+02 : f32
    %10 = vector.broadcast %cst_7 : f32 to vector<2x16xf32>
    %11 = arith.divf %9, %10 : vector<2x16xf32>
    %c0_8 = arith.constant 0 : index
    %c0_9 = arith.constant 0 : index
    %12 = vector.load %arg4[%c0_8, %c0_9] : memref<16x10xf32, #tpu.memory_space<vmem>>, vector<16x10xf32>
    %cst_10 = arith.constant dense<0.000000e+00> : vector<2x10xf32>
    %13 = tpu.matmul %11, %12, %cst_10 {dimension_numbers = #tpu.dot_dimension_numbers<[1], [0], [0], [1], [0, 0, 1, 1], [], []>} : vector<2x16xf32>, vector<16x10xf32>, vector<2x10xf32> -> vector<2x10xf32>
    %c0_11 = arith.constant 0 : index
    %c0_12 = arith.constant 0 : index
    %14 = vector.load %arg5[%c0_11, %c0_12] : memref<1x10xf32, #tpu.memory_space<vmem>>, vector<1x10xf32>
    %15 = vector.broadcast %14 : vector<1x10xf32> to vector<2x10xf32>
    %16 = arith.addf %13, %15 : vector<2x10xf32>
    %17 = vector.shape_cast %16 : vector<2x10xf32> to vector<2x1x10xf32>
    %c0_13 = arith.constant 0 : index
    %c0_14 = arith.constant 0 : index
    %c0_15 = arith.constant 0 : index
    %18 = vector.load %arg6[%c0_13, %c0_14, %c0_15] : memref<2x1x10xf32, #tpu.memory_space<vmem>>, vector<2x1x10xf32>
    tpu.vector_store %arg6[%c0_13, %c0_14, %c0_15], %17 {strides = array<i32>} : memref<2x1x10xf32, #tpu.memory_space<vmem>>, vector<2x1x10xf32>,
    return
  }
  func.func @transform_0(%arg0: i32) -> (i32, i32) {
    %c0_i32 = arith.constant 0 : i32
    %c0_i32_0 = arith.constant 0 : i32
    return %arg0, %c0_i32 : i32, i32
  }
  func.func @transform_1(%arg0: i32) -> (i32, i32) {
    %c0_i32 = arith.constant 0 : i32
    %c0_i32_0 = arith.constant 0 : i32
    %c0_i32_1 = arith.constant 0 : i32
    return %c0_i32, %c0_i32_0 : i32, i32
  }
  func.func @transform_2(%arg0: i32) -> (i32, i32) {
    %c0_i32 = arith.constant 0 : i32
    %c0_i32_0 = arith.constant 0 : i32
    %c0_i32_1 = arith.constant 0 : i32
    return %c0_i32, %c0_i32_0 : i32, i32
  }
  func.func @transform_3(%arg0: i32) -> (i32, i32) {
    %c0_i32 = arith.constant 0 : i32
    %c0_i32_0 = arith.constant 0 : i32
    %c0_i32_1 = arith.constant 0 : i32
    return %c0_i32, %c0_i32_0 : i32, i32
  }
  func.func @transform_4(%arg0: i32) -> (i32, i32) {
    %c0_i32 = arith.constant 0 : i32
    %c0_i32_0 = arith.constant 0 : i32
    %c0_i32_1 = arith.constant 0 : i32
    return %c0_i32, %c0_i32_0 : i32, i32
  }
  func.func @transform_5(%arg0: i32) -> (i32, i32, i32) {
    %c0_i32 = arith.constant 0 : i32
    %c0_i32_0 = arith.constant 0 : i32
    %c0_i32_1 = arith.constant 0 : i32
    return %arg0, %c0_i32, %c0_i32_0 : i32, i32, i32
  }
}

module attributes {stable_mosaic.version = 11 : i64} {
  func.func @_lstm_stack_kernel(%arg0: i32, %arg1: memref<8x2x10xf32, #tpu.memory_space<vmem>>, %arg2: memref<10x128xf32, #tpu.memory_space<vmem>>, %arg3: memref<32x128xf32, #tpu.memory_space<vmem>>, %arg4: memref<1x128xf32, #tpu.memory_space<vmem>>, %arg5: memref<32x128xf32, #tpu.memory_space<vmem>>, %arg6: memref<32x128xf32, #tpu.memory_space<vmem>>, %arg7: memref<1x128xf32, #tpu.memory_space<vmem>>, %arg8: memref<32x8xf32, #tpu.memory_space<vmem>>, %arg9: memref<1x8xf32, #tpu.memory_space<vmem>>, %arg10: memref<2x8xf32, #tpu.memory_space<vmem>>) attributes {dimension_semantics = [#tpu.dimension_semantics<arbitrary>], iteration_bounds = array<i64: 1>, scalar_prefetch = 0 : i64, scratch_operands = 0 : i64, tpu.core_type = #tpu.core_type<tc>, window_params = [{pipeline_mode = #tpu.pipeline_mode<synchronous>, transform_indices = @transform_0, window_bounds = array<i64: 8, 2, 10>}, {pipeline_mode = #tpu.pipeline_mode<synchronous>, transform_indices = @transform_1, window_bounds = array<i64: 10, 128>}, {pipeline_mode = #tpu.pipeline_mode<synchronous>, transform_indices = @transform_2, window_bounds = array<i64: 32, 128>}, {pipeline_mode = #tpu.pipeline_mode<synchronous>, transform_indices = @transform_3, window_bounds = array<i64: 1, 128>}, {pipeline_mode = #tpu.pipeline_mode<synchronous>, transform_indices = @transform_4, window_bounds = array<i64: 32, 128>}, {pipeline_mode = #tpu.pipeline_mode<synchronous>, transform_indices = @transform_5, window_bounds = array<i64: 32, 128>}, {pipeline_mode = #tpu.pipeline_mode<synchronous>, transform_indices = @transform_6, window_bounds = array<i64: 1, 128>}, {pipeline_mode = #tpu.pipeline_mode<synchronous>, transform_indices = @transform_7, window_bounds = array<i64: 32, 8>}, {pipeline_mode = #tpu.pipeline_mode<synchronous>, transform_indices = @transform_8, window_bounds = array<i64: 1, 8>}, {pipeline_mode = #tpu.pipeline_mode<synchronous>, transform_indices = @transform_9, window_bounds = array<i64: 2, 8>}]} {
    %c0 = arith.constant 0 : index
    %c0_0 = arith.constant 0 : index
    %0 = vector.load %arg2[%c0, %c0_0] : memref<10x128xf32, #tpu.memory_space<vmem>>, vector<10x128xf32>
    %c0_1 = arith.constant 0 : index
    %c0_2 = arith.constant 0 : index
    %1 = vector.load %arg3[%c0_1, %c0_2] : memref<32x128xf32, #tpu.memory_space<vmem>>, vector<32x128xf32>
    %c0_3 = arith.constant 0 : index
    %c0_4 = arith.constant 0 : index
    %2 = vector.load %arg4[%c0_3, %c0_4] : memref<1x128xf32, #tpu.memory_space<vmem>>, vector<1x128xf32>
    %c0_5 = arith.constant 0 : index
    %c0_6 = arith.constant 0 : index
    %3 = vector.load %arg5[%c0_5, %c0_6] : memref<32x128xf32, #tpu.memory_space<vmem>>, vector<32x128xf32>
    %c0_7 = arith.constant 0 : index
    %c0_8 = arith.constant 0 : index
    %4 = vector.load %arg6[%c0_7, %c0_8] : memref<32x128xf32, #tpu.memory_space<vmem>>, vector<32x128xf32>
    %c0_9 = arith.constant 0 : index
    %c0_10 = arith.constant 0 : index
    %5 = vector.load %arg7[%c0_9, %c0_10] : memref<1x128xf32, #tpu.memory_space<vmem>>, vector<1x128xf32>
    %cst = arith.constant 0.000000e+00 : f32
    %6 = vector.broadcast %cst : f32 to vector<2x32xf32>
    %cst_11 = arith.constant 0.000000e+00 : f32
    %7 = vector.broadcast %cst_11 : f32 to vector<2x32xf32>
    %cst_12 = arith.constant 0.000000e+00 : f32
    %8 = vector.broadcast %cst_12 : f32 to vector<2x32xf32>
    %cst_13 = arith.constant 0.000000e+00 : f32
    %9 = vector.broadcast %cst_13 : f32 to vector<2x32xf32>
    %c0_14 = arith.constant 0 : index
    %c0_15 = arith.constant 0 : index
    %c0_16 = arith.constant 0 : index
    %10 = vector.load %arg1[%c0_14, %c0_15, %c0_16] : memref<8x2x10xf32, #tpu.memory_space<vmem>>, vector<1x2x10xf32>
    %11 = vector.shape_cast %10 : vector<1x2x10xf32> to vector<2x10xf32>
    %cst_17 = arith.constant dense<0.000000e+00> : vector<2x128xf32>
    %12 = tpu.matmul %11, %0, %cst_17 {dimension_numbers = #tpu.dot_dimension_numbers<[1], [0], [0], [1], [0, 0, 1, 1], [], []>} : vector<2x10xf32>, vector<10x128xf32>, vector<2x128xf32> -> vector<2x128xf32>
    %cst_18 = arith.constant dense<0.000000e+00> : vector<2x128xf32>
    %13 = tpu.matmul %6, %1, %cst_18 {dimension_numbers = #tpu.dot_dimension_numbers<[1], [0], [0], [1], [0, 0, 1, 1], [], []>} : vector<2x32xf32>, vector<32x128xf32>, vector<2x128xf32> -> vector<2x128xf32>
    %14 = arith.addf %12, %13 : vector<2x128xf32>
    %15 = vector.broadcast %2 : vector<1x128xf32> to vector<2x128xf32>
    %16 = arith.addf %14, %15 : vector<2x128xf32>
    %17 = vector.extract_strided_slice %16 {offsets = [0, 0], sizes = [2, 32], strides = [1, 1]} : vector<2x128xf32> to vector<2x32xf32>
    %18 = arith.negf %17 : vector<2x32xf32>
    %19 = math.exp %18 : vector<2x32xf32>
    %cst_19 = arith.constant 1.000000e+00 : f32
    %20 = vector.broadcast %cst_19 : f32 to vector<2x32xf32>
    %21 = arith.addf %20, %19 : vector<2x32xf32>
    %22 = arith.divf %20, %21 : vector<2x32xf32>
    %23 = vector.extract_strided_slice %16 {offsets = [0, 32], sizes = [2, 32], strides = [1, 1]} : vector<2x128xf32> to vector<2x32xf32>
    %24 = arith.negf %23 : vector<2x32xf32>
    %25 = math.exp %24 : vector<2x32xf32>
    %cst_20 = arith.constant 1.000000e+00 : f32
    %26 = vector.broadcast %cst_20 : f32 to vector<2x32xf32>
    %27 = arith.addf %26, %25 : vector<2x32xf32>
    %28 = arith.divf %26, %27 : vector<2x32xf32>
    %29 = vector.extract_strided_slice %16 {offsets = [0, 64], sizes = [2, 32], strides = [1, 1]} : vector<2x128xf32> to vector<2x32xf32>
    %30 = math.tanh %29 : vector<2x32xf32>
    %31 = vector.extract_strided_slice %16 {offsets = [0, 96], sizes = [2, 32], strides = [1, 1]} : vector<2x128xf32> to vector<2x32xf32>
    %32 = arith.negf %31 : vector<2x32xf32>
    %33 = math.exp %32 : vector<2x32xf32>
    %cst_21 = arith.constant 1.000000e+00 : f32
    %34 = vector.broadcast %cst_21 : f32 to vector<2x32xf32>
    %35 = arith.addf %34, %33 : vector<2x32xf32>
    %36 = arith.divf %34, %35 : vector<2x32xf32>
    %37 = arith.mulf %28, %8 : vector<2x32xf32>
    %38 = arith.mulf %22, %30 : vector<2x32xf32>
    %39 = arith.addf %37, %38 : vector<2x32xf32>
    %40 = math.tanh %39 : vector<2x32xf32>
    %41 = arith.mulf %36, %40 : vector<2x32xf32>
    %cst_22 = arith.constant dense<0.000000e+00> : vector<2x128xf32>
    %42 = tpu.matmul %41, %3, %cst_22 {dimension_numbers = #tpu.dot_dimension_numbers<[1], [0], [0], [1], [0, 0, 1, 1], [], []>} : vector<2x32xf32>, vector<32x128xf32>, vector<2x128xf32> -> vector<2x128xf32>
    %cst_23 = arith.constant dense<0.000000e+00> : vector<2x128xf32>
    %43 = tpu.matmul %7, %4, %cst_23 {dimension_numbers = #tpu.dot_dimension_numbers<[1], [0], [0], [1], [0, 0, 1, 1], [], []>} : vector<2x32xf32>, vector<32x128xf32>, vector<2x128xf32> -> vector<2x128xf32>
    %44 = arith.addf %42, %43 : vector<2x128xf32>
    %45 = vector.broadcast %5 : vector<1x128xf32> to vector<2x128xf32>
    %46 = arith.addf %44, %45 : vector<2x128xf32>
    %47 = vector.extract_strided_slice %46 {offsets = [0, 0], sizes = [2, 32], strides = [1, 1]} : vector<2x128xf32> to vector<2x32xf32>
    %48 = arith.negf %47 : vector<2x32xf32>
    %49 = math.exp %48 : vector<2x32xf32>
    %cst_24 = arith.constant 1.000000e+00 : f32
    %50 = vector.broadcast %cst_24 : f32 to vector<2x32xf32>
    %51 = arith.addf %50, %49 : vector<2x32xf32>
    %52 = arith.divf %50, %51 : vector<2x32xf32>
    %53 = vector.extract_strided_slice %46 {offsets = [0, 32], sizes = [2, 32], strides = [1, 1]} : vector<2x128xf32> to vector<2x32xf32>
    %54 = arith.negf %53 : vector<2x32xf32>
    %55 = math.exp %54 : vector<2x32xf32>
    %cst_25 = arith.constant 1.000000e+00 : f32
    %56 = vector.broadcast %cst_25 : f32 to vector<2x32xf32>
    %57 = arith.addf %56, %55 : vector<2x32xf32>
    %58 = arith.divf %56, %57 : vector<2x32xf32>
    %59 = vector.extract_strided_slice %46 {offsets = [0, 64], sizes = [2, 32], strides = [1, 1]} : vector<2x128xf32> to vector<2x32xf32>
    %60 = math.tanh %59 : vector<2x32xf32>
    %61 = vector.extract_strided_slice %46 {offsets = [0, 96], sizes = [2, 32], strides = [1, 1]} : vector<2x128xf32> to vector<2x32xf32>
    %62 = arith.negf %61 : vector<2x32xf32>
    %63 = math.exp %62 : vector<2x32xf32>
    %cst_26 = arith.constant 1.000000e+00 : f32
    %64 = vector.broadcast %cst_26 : f32 to vector<2x32xf32>
    %65 = arith.addf %64, %63 : vector<2x32xf32>
    %66 = arith.divf %64, %65 : vector<2x32xf32>
    %67 = arith.mulf %58, %9 : vector<2x32xf32>
    %68 = arith.mulf %52, %60 : vector<2x32xf32>
    %69 = arith.addf %67, %68 : vector<2x32xf32>
    %70 = math.tanh %69 : vector<2x32xf32>
    %71 = arith.mulf %66, %70 : vector<2x32xf32>
    %c1 = arith.constant 1 : index
    %c0_27 = arith.constant 0 : index
    %c0_28 = arith.constant 0 : index
    %72 = vector.load %arg1[%c1, %c0_27, %c0_28] : memref<8x2x10xf32, #tpu.memory_space<vmem>>, vector<1x2x10xf32>
    %73 = vector.shape_cast %72 : vector<1x2x10xf32> to vector<2x10xf32>
    %cst_29 = arith.constant dense<0.000000e+00> : vector<2x128xf32>
    %74 = tpu.matmul %73, %0, %cst_29 {dimension_numbers = #tpu.dot_dimension_numbers<[1], [0], [0], [1], [0, 0, 1, 1], [], []>} : vector<2x10xf32>, vector<10x128xf32>, vector<2x128xf32> -> vector<2x128xf32>
    %cst_30 = arith.constant dense<0.000000e+00> : vector<2x128xf32>
    %75 = tpu.matmul %41, %1, %cst_30 {dimension_numbers = #tpu.dot_dimension_numbers<[1], [0], [0], [1], [0, 0, 1, 1], [], []>} : vector<2x32xf32>, vector<32x128xf32>, vector<2x128xf32> -> vector<2x128xf32>
    %76 = arith.addf %74, %75 : vector<2x128xf32>
    %77 = vector.broadcast %2 : vector<1x128xf32> to vector<2x128xf32>
    %78 = arith.addf %76, %77 : vector<2x128xf32>
    %79 = vector.extract_strided_slice %78 {offsets = [0, 0], sizes = [2, 32], strides = [1, 1]} : vector<2x128xf32> to vector<2x32xf32>
    %80 = arith.negf %79 : vector<2x32xf32>
    %81 = math.exp %80 : vector<2x32xf32>
    %cst_31 = arith.constant 1.000000e+00 : f32
    %82 = vector.broadcast %cst_31 : f32 to vector<2x32xf32>
    %83 = arith.addf %82, %81 : vector<2x32xf32>
    %84 = arith.divf %82, %83 : vector<2x32xf32>
    %85 = vector.extract_strided_slice %78 {offsets = [0, 32], sizes = [2, 32], strides = [1, 1]} : vector<2x128xf32> to vector<2x32xf32>
    %86 = arith.negf %85 : vector<2x32xf32>
    %87 = math.exp %86 : vector<2x32xf32>
    %cst_32 = arith.constant 1.000000e+00 : f32
    %88 = vector.broadcast %cst_32 : f32 to vector<2x32xf32>
    %89 = arith.addf %88, %87 : vector<2x32xf32>
    %90 = arith.divf %88, %89 : vector<2x32xf32>
    %91 = vector.extract_strided_slice %78 {offsets = [0, 64], sizes = [2, 32], strides = [1, 1]} : vector<2x128xf32> to vector<2x32xf32>
    %92 = math.tanh %91 : vector<2x32xf32>
    %93 = vector.extract_strided_slice %78 {offsets = [0, 96], sizes = [2, 32], strides = [1, 1]} : vector<2x128xf32> to vector<2x32xf32>
    %94 = arith.negf %93 : vector<2x32xf32>
    %95 = math.exp %94 : vector<2x32xf32>
    %cst_33 = arith.constant 1.000000e+00 : f32
    %96 = vector.broadcast %cst_33 : f32 to vector<2x32xf32>
    %97 = arith.addf %96, %95 : vector<2x32xf32>
    %98 = arith.divf %96, %97 : vector<2x32xf32>
    %99 = arith.mulf %90, %39 : vector<2x32xf32>
    %100 = arith.mulf %84, %92 : vector<2x32xf32>
    %101 = arith.addf %99, %100 : vector<2x32xf32>
    %102 = math.tanh %101 : vector<2x32xf32>
    %103 = arith.mulf %98, %102 : vector<2x32xf32>
    %cst_34 = arith.constant dense<0.000000e+00> : vector<2x128xf32>
    %104 = tpu.matmul %103, %3, %cst_34 {dimension_numbers = #tpu.dot_dimension_numbers<[1], [0], [0], [1], [0, 0, 1, 1], [], []>} : vector<2x32xf32>, vector<32x128xf32>, vector<2x128xf32> -> vector<2x128xf32>
    %cst_35 = arith.constant dense<0.000000e+00> : vector<2x128xf32>
    %105 = tpu.matmul %71, %4, %cst_35 {dimension_numbers = #tpu.dot_dimension_numbers<[1], [0], [0], [1], [0, 0, 1, 1], [], []>} : vector<2x32xf32>, vector<32x128xf32>, vector<2x128xf32> -> vector<2x128xf32>
    %106 = arith.addf %104, %105 : vector<2x128xf32>
    %107 = vector.broadcast %5 : vector<1x128xf32> to vector<2x128xf32>
    %108 = arith.addf %106, %107 : vector<2x128xf32>
    %109 = vector.extract_strided_slice %108 {offsets = [0, 0], sizes = [2, 32], strides = [1, 1]} : vector<2x128xf32> to vector<2x32xf32>
    %110 = arith.negf %109 : vector<2x32xf32>
    %111 = math.exp %110 : vector<2x32xf32>
    %cst_36 = arith.constant 1.000000e+00 : f32
    %112 = vector.broadcast %cst_36 : f32 to vector<2x32xf32>
    %113 = arith.addf %112, %111 : vector<2x32xf32>
    %114 = arith.divf %112, %113 : vector<2x32xf32>
    %115 = vector.extract_strided_slice %108 {offsets = [0, 32], sizes = [2, 32], strides = [1, 1]} : vector<2x128xf32> to vector<2x32xf32>
    %116 = arith.negf %115 : vector<2x32xf32>
    %117 = math.exp %116 : vector<2x32xf32>
    %cst_37 = arith.constant 1.000000e+00 : f32
    %118 = vector.broadcast %cst_37 : f32 to vector<2x32xf32>
    %119 = arith.addf %118, %117 : vector<2x32xf32>
    %120 = arith.divf %118, %119 : vector<2x32xf32>
    %121 = vector.extract_strided_slice %108 {offsets = [0, 64], sizes = [2, 32], strides = [1, 1]} : vector<2x128xf32> to vector<2x32xf32>
    %122 = math.tanh %121 : vector<2x32xf32>
    %123 = vector.extract_strided_slice %108 {offsets = [0, 96], sizes = [2, 32], strides = [1, 1]} : vector<2x128xf32> to vector<2x32xf32>
    %124 = arith.negf %123 : vector<2x32xf32>
    %125 = math.exp %124 : vector<2x32xf32>
    %cst_38 = arith.constant 1.000000e+00 : f32
    %126 = vector.broadcast %cst_38 : f32 to vector<2x32xf32>
    %127 = arith.addf %126, %125 : vector<2x32xf32>
    %128 = arith.divf %126, %127 : vector<2x32xf32>
    %129 = arith.mulf %120, %69 : vector<2x32xf32>
    %130 = arith.mulf %114, %122 : vector<2x32xf32>
    %131 = arith.addf %129, %130 : vector<2x32xf32>
    %132 = math.tanh %131 : vector<2x32xf32>
    %133 = arith.mulf %128, %132 : vector<2x32xf32>
    %c2 = arith.constant 2 : index
    %c0_39 = arith.constant 0 : index
    %c0_40 = arith.constant 0 : index
    %134 = vector.load %arg1[%c2, %c0_39, %c0_40] : memref<8x2x10xf32, #tpu.memory_space<vmem>>, vector<1x2x10xf32>
    %135 = vector.shape_cast %134 : vector<1x2x10xf32> to vector<2x10xf32>
    %cst_41 = arith.constant dense<0.000000e+00> : vector<2x128xf32>
    %136 = tpu.matmul %135, %0, %cst_41 {dimension_numbers = #tpu.dot_dimension_numbers<[1], [0], [0], [1], [0, 0, 1, 1], [], []>} : vector<2x10xf32>, vector<10x128xf32>, vector<2x128xf32> -> vector<2x128xf32>
    %cst_42 = arith.constant dense<0.000000e+00> : vector<2x128xf32>
    %137 = tpu.matmul %103, %1, %cst_42 {dimension_numbers = #tpu.dot_dimension_numbers<[1], [0], [0], [1], [0, 0, 1, 1], [], []>} : vector<2x32xf32>, vector<32x128xf32>, vector<2x128xf32> -> vector<2x128xf32>
    %138 = arith.addf %136, %137 : vector<2x128xf32>
    %139 = vector.broadcast %2 : vector<1x128xf32> to vector<2x128xf32>
    %140 = arith.addf %138, %139 : vector<2x128xf32>
    %141 = vector.extract_strided_slice %140 {offsets = [0, 0], sizes = [2, 32], strides = [1, 1]} : vector<2x128xf32> to vector<2x32xf32>
    %142 = arith.negf %141 : vector<2x32xf32>
    %143 = math.exp %142 : vector<2x32xf32>
    %cst_43 = arith.constant 1.000000e+00 : f32
    %144 = vector.broadcast %cst_43 : f32 to vector<2x32xf32>
    %145 = arith.addf %144, %143 : vector<2x32xf32>
    %146 = arith.divf %144, %145 : vector<2x32xf32>
    %147 = vector.extract_strided_slice %140 {offsets = [0, 32], sizes = [2, 32], strides = [1, 1]} : vector<2x128xf32> to vector<2x32xf32>
    %148 = arith.negf %147 : vector<2x32xf32>
    %149 = math.exp %148 : vector<2x32xf32>
    %cst_44 = arith.constant 1.000000e+00 : f32
    %150 = vector.broadcast %cst_44 : f32 to vector<2x32xf32>
    %151 = arith.addf %150, %149 : vector<2x32xf32>
    %152 = arith.divf %150, %151 : vector<2x32xf32>
    %153 = vector.extract_strided_slice %140 {offsets = [0, 64], sizes = [2, 32], strides = [1, 1]} : vector<2x128xf32> to vector<2x32xf32>
    %154 = math.tanh %153 : vector<2x32xf32>
    %155 = vector.extract_strided_slice %140 {offsets = [0, 96], sizes = [2, 32], strides = [1, 1]} : vector<2x128xf32> to vector<2x32xf32>
    %156 = arith.negf %155 : vector<2x32xf32>
    %157 = math.exp %156 : vector<2x32xf32>
    %cst_45 = arith.constant 1.000000e+00 : f32
    %158 = vector.broadcast %cst_45 : f32 to vector<2x32xf32>
    %159 = arith.addf %158, %157 : vector<2x32xf32>
    %160 = arith.divf %158, %159 : vector<2x32xf32>
    %161 = arith.mulf %152, %101 : vector<2x32xf32>
    %162 = arith.mulf %146, %154 : vector<2x32xf32>
    %163 = arith.addf %161, %162 : vector<2x32xf32>
    %164 = math.tanh %163 : vector<2x32xf32>
    %165 = arith.mulf %160, %164 : vector<2x32xf32>
    %cst_46 = arith.constant dense<0.000000e+00> : vector<2x128xf32>
    %166 = tpu.matmul %165, %3, %cst_46 {dimension_numbers = #tpu.dot_dimension_numbers<[1], [0], [0], [1], [0, 0, 1, 1], [], []>} : vector<2x32xf32>, vector<32x128xf32>, vector<2x128xf32> -> vector<2x128xf32>
    %cst_47 = arith.constant dense<0.000000e+00> : vector<2x128xf32>
    %167 = tpu.matmul %133, %4, %cst_47 {dimension_numbers = #tpu.dot_dimension_numbers<[1], [0], [0], [1], [0, 0, 1, 1], [], []>} : vector<2x32xf32>, vector<32x128xf32>, vector<2x128xf32> -> vector<2x128xf32>
    %168 = arith.addf %166, %167 : vector<2x128xf32>
    %169 = vector.broadcast %5 : vector<1x128xf32> to vector<2x128xf32>
    %170 = arith.addf %168, %169 : vector<2x128xf32>
    %171 = vector.extract_strided_slice %170 {offsets = [0, 0], sizes = [2, 32], strides = [1, 1]} : vector<2x128xf32> to vector<2x32xf32>
    %172 = arith.negf %171 : vector<2x32xf32>
    %173 = math.exp %172 : vector<2x32xf32>
    %cst_48 = arith.constant 1.000000e+00 : f32
    %174 = vector.broadcast %cst_48 : f32 to vector<2x32xf32>
    %175 = arith.addf %174, %173 : vector<2x32xf32>
    %176 = arith.divf %174, %175 : vector<2x32xf32>
    %177 = vector.extract_strided_slice %170 {offsets = [0, 32], sizes = [2, 32], strides = [1, 1]} : vector<2x128xf32> to vector<2x32xf32>
    %178 = arith.negf %177 : vector<2x32xf32>
    %179 = math.exp %178 : vector<2x32xf32>
    %cst_49 = arith.constant 1.000000e+00 : f32
    %180 = vector.broadcast %cst_49 : f32 to vector<2x32xf32>
    %181 = arith.addf %180, %179 : vector<2x32xf32>
    %182 = arith.divf %180, %181 : vector<2x32xf32>
    %183 = vector.extract_strided_slice %170 {offsets = [0, 64], sizes = [2, 32], strides = [1, 1]} : vector<2x128xf32> to vector<2x32xf32>
    %184 = math.tanh %183 : vector<2x32xf32>
    %185 = vector.extract_strided_slice %170 {offsets = [0, 96], sizes = [2, 32], strides = [1, 1]} : vector<2x128xf32> to vector<2x32xf32>
    %186 = arith.negf %185 : vector<2x32xf32>
    %187 = math.exp %186 : vector<2x32xf32>
    %cst_50 = arith.constant 1.000000e+00 : f32
    %188 = vector.broadcast %cst_50 : f32 to vector<2x32xf32>
    %189 = arith.addf %188, %187 : vector<2x32xf32>
    %190 = arith.divf %188, %189 : vector<2x32xf32>
    %191 = arith.mulf %182, %131 : vector<2x32xf32>
    %192 = arith.mulf %176, %184 : vector<2x32xf32>
    %193 = arith.addf %191, %192 : vector<2x32xf32>
    %194 = math.tanh %193 : vector<2x32xf32>
    %195 = arith.mulf %190, %194 : vector<2x32xf32>
    %c3 = arith.constant 3 : index
    %c0_51 = arith.constant 0 : index
    %c0_52 = arith.constant 0 : index
    %196 = vector.load %arg1[%c3, %c0_51, %c0_52] : memref<8x2x10xf32, #tpu.memory_space<vmem>>, vector<1x2x10xf32>
    %197 = vector.shape_cast %196 : vector<1x2x10xf32> to vector<2x10xf32>
    %cst_53 = arith.constant dense<0.000000e+00> : vector<2x128xf32>
    %198 = tpu.matmul %197, %0, %cst_53 {dimension_numbers = #tpu.dot_dimension_numbers<[1], [0], [0], [1], [0, 0, 1, 1], [], []>} : vector<2x10xf32>, vector<10x128xf32>, vector<2x128xf32> -> vector<2x128xf32>
    %cst_54 = arith.constant dense<0.000000e+00> : vector<2x128xf32>
    %199 = tpu.matmul %165, %1, %cst_54 {dimension_numbers = #tpu.dot_dimension_numbers<[1], [0], [0], [1], [0, 0, 1, 1], [], []>} : vector<2x32xf32>, vector<32x128xf32>, vector<2x128xf32> -> vector<2x128xf32>
    %200 = arith.addf %198, %199 : vector<2x128xf32>
    %201 = vector.broadcast %2 : vector<1x128xf32> to vector<2x128xf32>
    %202 = arith.addf %200, %201 : vector<2x128xf32>
    %203 = vector.extract_strided_slice %202 {offsets = [0, 0], sizes = [2, 32], strides = [1, 1]} : vector<2x128xf32> to vector<2x32xf32>
    %204 = arith.negf %203 : vector<2x32xf32>
    %205 = math.exp %204 : vector<2x32xf32>
    %cst_55 = arith.constant 1.000000e+00 : f32
    %206 = vector.broadcast %cst_55 : f32 to vector<2x32xf32>
    %207 = arith.addf %206, %205 : vector<2x32xf32>
    %208 = arith.divf %206, %207 : vector<2x32xf32>
    %209 = vector.extract_strided_slice %202 {offsets = [0, 32], sizes = [2, 32], strides = [1, 1]} : vector<2x128xf32> to vector<2x32xf32>
    %210 = arith.negf %209 : vector<2x32xf32>
    %211 = math.exp %210 : vector<2x32xf32>
    %cst_56 = arith.constant 1.000000e+00 : f32
    %212 = vector.broadcast %cst_56 : f32 to vector<2x32xf32>
    %213 = arith.addf %212, %211 : vector<2x32xf32>
    %214 = arith.divf %212, %213 : vector<2x32xf32>
    %215 = vector.extract_strided_slice %202 {offsets = [0, 64], sizes = [2, 32], strides = [1, 1]} : vector<2x128xf32> to vector<2x32xf32>
    %216 = math.tanh %215 : vector<2x32xf32>
    %217 = vector.extract_strided_slice %202 {offsets = [0, 96], sizes = [2, 32], strides = [1, 1]} : vector<2x128xf32> to vector<2x32xf32>
    %218 = arith.negf %217 : vector<2x32xf32>
    %219 = math.exp %218 : vector<2x32xf32>
    %cst_57 = arith.constant 1.000000e+00 : f32
    %220 = vector.broadcast %cst_57 : f32 to vector<2x32xf32>
    %221 = arith.addf %220, %219 : vector<2x32xf32>
    %222 = arith.divf %220, %221 : vector<2x32xf32>
    %223 = arith.mulf %214, %163 : vector<2x32xf32>
    %224 = arith.mulf %208, %216 : vector<2x32xf32>
    %225 = arith.addf %223, %224 : vector<2x32xf32>
    %226 = math.tanh %225 : vector<2x32xf32>
    %227 = arith.mulf %222, %226 : vector<2x32xf32>
    %cst_58 = arith.constant dense<0.000000e+00> : vector<2x128xf32>
    %228 = tpu.matmul %227, %3, %cst_58 {dimension_numbers = #tpu.dot_dimension_numbers<[1], [0], [0], [1], [0, 0, 1, 1], [], []>} : vector<2x32xf32>, vector<32x128xf32>, vector<2x128xf32> -> vector<2x128xf32>
    %cst_59 = arith.constant dense<0.000000e+00> : vector<2x128xf32>
    %229 = tpu.matmul %195, %4, %cst_59 {dimension_numbers = #tpu.dot_dimension_numbers<[1], [0], [0], [1], [0, 0, 1, 1], [], []>} : vector<2x32xf32>, vector<32x128xf32>, vector<2x128xf32> -> vector<2x128xf32>
    %230 = arith.addf %228, %229 : vector<2x128xf32>
    %231 = vector.broadcast %5 : vector<1x128xf32> to vector<2x128xf32>
    %232 = arith.addf %230, %231 : vector<2x128xf32>
    %233 = vector.extract_strided_slice %232 {offsets = [0, 0], sizes = [2, 32], strides = [1, 1]} : vector<2x128xf32> to vector<2x32xf32>
    %234 = arith.negf %233 : vector<2x32xf32>
    %235 = math.exp %234 : vector<2x32xf32>
    %cst_60 = arith.constant 1.000000e+00 : f32
    %236 = vector.broadcast %cst_60 : f32 to vector<2x32xf32>
    %237 = arith.addf %236, %235 : vector<2x32xf32>
    %238 = arith.divf %236, %237 : vector<2x32xf32>
    %239 = vector.extract_strided_slice %232 {offsets = [0, 32], sizes = [2, 32], strides = [1, 1]} : vector<2x128xf32> to vector<2x32xf32>
    %240 = arith.negf %239 : vector<2x32xf32>
    %241 = math.exp %240 : vector<2x32xf32>
    %cst_61 = arith.constant 1.000000e+00 : f32
    %242 = vector.broadcast %cst_61 : f32 to vector<2x32xf32>
    %243 = arith.addf %242, %241 : vector<2x32xf32>
    %244 = arith.divf %242, %243 : vector<2x32xf32>
    %245 = vector.extract_strided_slice %232 {offsets = [0, 64], sizes = [2, 32], strides = [1, 1]} : vector<2x128xf32> to vector<2x32xf32>
    %246 = math.tanh %245 : vector<2x32xf32>
    %247 = vector.extract_strided_slice %232 {offsets = [0, 96], sizes = [2, 32], strides = [1, 1]} : vector<2x128xf32> to vector<2x32xf32>
    %248 = arith.negf %247 : vector<2x32xf32>
    %249 = math.exp %248 : vector<2x32xf32>
    %cst_62 = arith.constant 1.000000e+00 : f32
    %250 = vector.broadcast %cst_62 : f32 to vector<2x32xf32>
    %251 = arith.addf %250, %249 : vector<2x32xf32>
    %252 = arith.divf %250, %251 : vector<2x32xf32>
    %253 = arith.mulf %244, %193 : vector<2x32xf32>
    %254 = arith.mulf %238, %246 : vector<2x32xf32>
    %255 = arith.addf %253, %254 : vector<2x32xf32>
    %256 = math.tanh %255 : vector<2x32xf32>
    %257 = arith.mulf %252, %256 : vector<2x32xf32>
    %c4 = arith.constant 4 : index
    %c0_63 = arith.constant 0 : index
    %c0_64 = arith.constant 0 : index
    %258 = vector.load %arg1[%c4, %c0_63, %c0_64] : memref<8x2x10xf32, #tpu.memory_space<vmem>>, vector<1x2x10xf32>
    %259 = vector.shape_cast %258 : vector<1x2x10xf32> to vector<2x10xf32>
    %cst_65 = arith.constant dense<0.000000e+00> : vector<2x128xf32>
    %260 = tpu.matmul %259, %0, %cst_65 {dimension_numbers = #tpu.dot_dimension_numbers<[1], [0], [0], [1], [0, 0, 1, 1], [], []>} : vector<2x10xf32>, vector<10x128xf32>, vector<2x128xf32> -> vector<2x128xf32>
    %cst_66 = arith.constant dense<0.000000e+00> : vector<2x128xf32>
    %261 = tpu.matmul %227, %1, %cst_66 {dimension_numbers = #tpu.dot_dimension_numbers<[1], [0], [0], [1], [0, 0, 1, 1], [], []>} : vector<2x32xf32>, vector<32x128xf32>, vector<2x128xf32> -> vector<2x128xf32>
    %262 = arith.addf %260, %261 : vector<2x128xf32>
    %263 = vector.broadcast %2 : vector<1x128xf32> to vector<2x128xf32>
    %264 = arith.addf %262, %263 : vector<2x128xf32>
    %265 = vector.extract_strided_slice %264 {offsets = [0, 0], sizes = [2, 32], strides = [1, 1]} : vector<2x128xf32> to vector<2x32xf32>
    %266 = arith.negf %265 : vector<2x32xf32>
    %267 = math.exp %266 : vector<2x32xf32>
    %cst_67 = arith.constant 1.000000e+00 : f32
    %268 = vector.broadcast %cst_67 : f32 to vector<2x32xf32>
    %269 = arith.addf %268, %267 : vector<2x32xf32>
    %270 = arith.divf %268, %269 : vector<2x32xf32>
    %271 = vector.extract_strided_slice %264 {offsets = [0, 32], sizes = [2, 32], strides = [1, 1]} : vector<2x128xf32> to vector<2x32xf32>
    %272 = arith.negf %271 : vector<2x32xf32>
    %273 = math.exp %272 : vector<2x32xf32>
    %cst_68 = arith.constant 1.000000e+00 : f32
    %274 = vector.broadcast %cst_68 : f32 to vector<2x32xf32>
    %275 = arith.addf %274, %273 : vector<2x32xf32>
    %276 = arith.divf %274, %275 : vector<2x32xf32>
    %277 = vector.extract_strided_slice %264 {offsets = [0, 64], sizes = [2, 32], strides = [1, 1]} : vector<2x128xf32> to vector<2x32xf32>
    %278 = math.tanh %277 : vector<2x32xf32>
    %279 = vector.extract_strided_slice %264 {offsets = [0, 96], sizes = [2, 32], strides = [1, 1]} : vector<2x128xf32> to vector<2x32xf32>
    %280 = arith.negf %279 : vector<2x32xf32>
    %281 = math.exp %280 : vector<2x32xf32>
    %cst_69 = arith.constant 1.000000e+00 : f32
    %282 = vector.broadcast %cst_69 : f32 to vector<2x32xf32>
    %283 = arith.addf %282, %281 : vector<2x32xf32>
    %284 = arith.divf %282, %283 : vector<2x32xf32>
    %285 = arith.mulf %276, %225 : vector<2x32xf32>
    %286 = arith.mulf %270, %278 : vector<2x32xf32>
    %287 = arith.addf %285, %286 : vector<2x32xf32>
    %288 = math.tanh %287 : vector<2x32xf32>
    %289 = arith.mulf %284, %288 : vector<2x32xf32>
    %cst_70 = arith.constant dense<0.000000e+00> : vector<2x128xf32>
    %290 = tpu.matmul %289, %3, %cst_70 {dimension_numbers = #tpu.dot_dimension_numbers<[1], [0], [0], [1], [0, 0, 1, 1], [], []>} : vector<2x32xf32>, vector<32x128xf32>, vector<2x128xf32> -> vector<2x128xf32>
    %cst_71 = arith.constant dense<0.000000e+00> : vector<2x128xf32>
    %291 = tpu.matmul %257, %4, %cst_71 {dimension_numbers = #tpu.dot_dimension_numbers<[1], [0], [0], [1], [0, 0, 1, 1], [], []>} : vector<2x32xf32>, vector<32x128xf32>, vector<2x128xf32> -> vector<2x128xf32>
    %292 = arith.addf %290, %291 : vector<2x128xf32>
    %293 = vector.broadcast %5 : vector<1x128xf32> to vector<2x128xf32>
    %294 = arith.addf %292, %293 : vector<2x128xf32>
    %295 = vector.extract_strided_slice %294 {offsets = [0, 0], sizes = [2, 32], strides = [1, 1]} : vector<2x128xf32> to vector<2x32xf32>
    %296 = arith.negf %295 : vector<2x32xf32>
    %297 = math.exp %296 : vector<2x32xf32>
    %cst_72 = arith.constant 1.000000e+00 : f32
    %298 = vector.broadcast %cst_72 : f32 to vector<2x32xf32>
    %299 = arith.addf %298, %297 : vector<2x32xf32>
    %300 = arith.divf %298, %299 : vector<2x32xf32>
    %301 = vector.extract_strided_slice %294 {offsets = [0, 32], sizes = [2, 32], strides = [1, 1]} : vector<2x128xf32> to vector<2x32xf32>
    %302 = arith.negf %301 : vector<2x32xf32>
    %303 = math.exp %302 : vector<2x32xf32>
    %cst_73 = arith.constant 1.000000e+00 : f32
    %304 = vector.broadcast %cst_73 : f32 to vector<2x32xf32>
    %305 = arith.addf %304, %303 : vector<2x32xf32>
    %306 = arith.divf %304, %305 : vector<2x32xf32>
    %307 = vector.extract_strided_slice %294 {offsets = [0, 64], sizes = [2, 32], strides = [1, 1]} : vector<2x128xf32> to vector<2x32xf32>
    %308 = math.tanh %307 : vector<2x32xf32>
    %309 = vector.extract_strided_slice %294 {offsets = [0, 96], sizes = [2, 32], strides = [1, 1]} : vector<2x128xf32> to vector<2x32xf32>
    %310 = arith.negf %309 : vector<2x32xf32>
    %311 = math.exp %310 : vector<2x32xf32>
    %cst_74 = arith.constant 1.000000e+00 : f32
    %312 = vector.broadcast %cst_74 : f32 to vector<2x32xf32>
    %313 = arith.addf %312, %311 : vector<2x32xf32>
    %314 = arith.divf %312, %313 : vector<2x32xf32>
    %315 = arith.mulf %306, %255 : vector<2x32xf32>
    %316 = arith.mulf %300, %308 : vector<2x32xf32>
    %317 = arith.addf %315, %316 : vector<2x32xf32>
    %318 = math.tanh %317 : vector<2x32xf32>
    %319 = arith.mulf %314, %318 : vector<2x32xf32>
    %c5 = arith.constant 5 : index
    %c0_75 = arith.constant 0 : index
    %c0_76 = arith.constant 0 : index
    %320 = vector.load %arg1[%c5, %c0_75, %c0_76] : memref<8x2x10xf32, #tpu.memory_space<vmem>>, vector<1x2x10xf32>
    %321 = vector.shape_cast %320 : vector<1x2x10xf32> to vector<2x10xf32>
    %cst_77 = arith.constant dense<0.000000e+00> : vector<2x128xf32>
    %322 = tpu.matmul %321, %0, %cst_77 {dimension_numbers = #tpu.dot_dimension_numbers<[1], [0], [0], [1], [0, 0, 1, 1], [], []>} : vector<2x10xf32>, vector<10x128xf32>, vector<2x128xf32> -> vector<2x128xf32>
    %cst_78 = arith.constant dense<0.000000e+00> : vector<2x128xf32>
    %323 = tpu.matmul %289, %1, %cst_78 {dimension_numbers = #tpu.dot_dimension_numbers<[1], [0], [0], [1], [0, 0, 1, 1], [], []>} : vector<2x32xf32>, vector<32x128xf32>, vector<2x128xf32> -> vector<2x128xf32>
    %324 = arith.addf %322, %323 : vector<2x128xf32>
    %325 = vector.broadcast %2 : vector<1x128xf32> to vector<2x128xf32>
    %326 = arith.addf %324, %325 : vector<2x128xf32>
    %327 = vector.extract_strided_slice %326 {offsets = [0, 0], sizes = [2, 32], strides = [1, 1]} : vector<2x128xf32> to vector<2x32xf32>
    %328 = arith.negf %327 : vector<2x32xf32>
    %329 = math.exp %328 : vector<2x32xf32>
    %cst_79 = arith.constant 1.000000e+00 : f32
    %330 = vector.broadcast %cst_79 : f32 to vector<2x32xf32>
    %331 = arith.addf %330, %329 : vector<2x32xf32>
    %332 = arith.divf %330, %331 : vector<2x32xf32>
    %333 = vector.extract_strided_slice %326 {offsets = [0, 32], sizes = [2, 32], strides = [1, 1]} : vector<2x128xf32> to vector<2x32xf32>
    %334 = arith.negf %333 : vector<2x32xf32>
    %335 = math.exp %334 : vector<2x32xf32>
    %cst_80 = arith.constant 1.000000e+00 : f32
    %336 = vector.broadcast %cst_80 : f32 to vector<2x32xf32>
    %337 = arith.addf %336, %335 : vector<2x32xf32>
    %338 = arith.divf %336, %337 : vector<2x32xf32>
    %339 = vector.extract_strided_slice %326 {offsets = [0, 64], sizes = [2, 32], strides = [1, 1]} : vector<2x128xf32> to vector<2x32xf32>
    %340 = math.tanh %339 : vector<2x32xf32>
    %341 = vector.extract_strided_slice %326 {offsets = [0, 96], sizes = [2, 32], strides = [1, 1]} : vector<2x128xf32> to vector<2x32xf32>
    %342 = arith.negf %341 : vector<2x32xf32>
    %343 = math.exp %342 : vector<2x32xf32>
    %cst_81 = arith.constant 1.000000e+00 : f32
    %344 = vector.broadcast %cst_81 : f32 to vector<2x32xf32>
    %345 = arith.addf %344, %343 : vector<2x32xf32>
    %346 = arith.divf %344, %345 : vector<2x32xf32>
    %347 = arith.mulf %338, %287 : vector<2x32xf32>
    %348 = arith.mulf %332, %340 : vector<2x32xf32>
    %349 = arith.addf %347, %348 : vector<2x32xf32>
    %350 = math.tanh %349 : vector<2x32xf32>
    %351 = arith.mulf %346, %350 : vector<2x32xf32>
    %cst_82 = arith.constant dense<0.000000e+00> : vector<2x128xf32>
    %352 = tpu.matmul %351, %3, %cst_82 {dimension_numbers = #tpu.dot_dimension_numbers<[1], [0], [0], [1], [0, 0, 1, 1], [], []>} : vector<2x32xf32>, vector<32x128xf32>, vector<2x128xf32> -> vector<2x128xf32>
    %cst_83 = arith.constant dense<0.000000e+00> : vector<2x128xf32>
    %353 = tpu.matmul %319, %4, %cst_83 {dimension_numbers = #tpu.dot_dimension_numbers<[1], [0], [0], [1], [0, 0, 1, 1], [], []>} : vector<2x32xf32>, vector<32x128xf32>, vector<2x128xf32> -> vector<2x128xf32>
    %354 = arith.addf %352, %353 : vector<2x128xf32>
    %355 = vector.broadcast %5 : vector<1x128xf32> to vector<2x128xf32>
    %356 = arith.addf %354, %355 : vector<2x128xf32>
    %357 = vector.extract_strided_slice %356 {offsets = [0, 0], sizes = [2, 32], strides = [1, 1]} : vector<2x128xf32> to vector<2x32xf32>
    %358 = arith.negf %357 : vector<2x32xf32>
    %359 = math.exp %358 : vector<2x32xf32>
    %cst_84 = arith.constant 1.000000e+00 : f32
    %360 = vector.broadcast %cst_84 : f32 to vector<2x32xf32>
    %361 = arith.addf %360, %359 : vector<2x32xf32>
    %362 = arith.divf %360, %361 : vector<2x32xf32>
    %363 = vector.extract_strided_slice %356 {offsets = [0, 32], sizes = [2, 32], strides = [1, 1]} : vector<2x128xf32> to vector<2x32xf32>
    %364 = arith.negf %363 : vector<2x32xf32>
    %365 = math.exp %364 : vector<2x32xf32>
    %cst_85 = arith.constant 1.000000e+00 : f32
    %366 = vector.broadcast %cst_85 : f32 to vector<2x32xf32>
    %367 = arith.addf %366, %365 : vector<2x32xf32>
    %368 = arith.divf %366, %367 : vector<2x32xf32>
    %369 = vector.extract_strided_slice %356 {offsets = [0, 64], sizes = [2, 32], strides = [1, 1]} : vector<2x128xf32> to vector<2x32xf32>
    %370 = math.tanh %369 : vector<2x32xf32>
    %371 = vector.extract_strided_slice %356 {offsets = [0, 96], sizes = [2, 32], strides = [1, 1]} : vector<2x128xf32> to vector<2x32xf32>
    %372 = arith.negf %371 : vector<2x32xf32>
    %373 = math.exp %372 : vector<2x32xf32>
    %cst_86 = arith.constant 1.000000e+00 : f32
    %374 = vector.broadcast %cst_86 : f32 to vector<2x32xf32>
    %375 = arith.addf %374, %373 : vector<2x32xf32>
    %376 = arith.divf %374, %375 : vector<2x32xf32>
    %377 = arith.mulf %368, %317 : vector<2x32xf32>
    %378 = arith.mulf %362, %370 : vector<2x32xf32>
    %379 = arith.addf %377, %378 : vector<2x32xf32>
    %380 = math.tanh %379 : vector<2x32xf32>
    %381 = arith.mulf %376, %380 : vector<2x32xf32>
    %c6 = arith.constant 6 : index
    %c0_87 = arith.constant 0 : index
    %c0_88 = arith.constant 0 : index
    %382 = vector.load %arg1[%c6, %c0_87, %c0_88] : memref<8x2x10xf32, #tpu.memory_space<vmem>>, vector<1x2x10xf32>
    %383 = vector.shape_cast %382 : vector<1x2x10xf32> to vector<2x10xf32>
    %cst_89 = arith.constant dense<0.000000e+00> : vector<2x128xf32>
    %384 = tpu.matmul %383, %0, %cst_89 {dimension_numbers = #tpu.dot_dimension_numbers<[1], [0], [0], [1], [0, 0, 1, 1], [], []>} : vector<2x10xf32>, vector<10x128xf32>, vector<2x128xf32> -> vector<2x128xf32>
    %cst_90 = arith.constant dense<0.000000e+00> : vector<2x128xf32>
    %385 = tpu.matmul %351, %1, %cst_90 {dimension_numbers = #tpu.dot_dimension_numbers<[1], [0], [0], [1], [0, 0, 1, 1], [], []>} : vector<2x32xf32>, vector<32x128xf32>, vector<2x128xf32> -> vector<2x128xf32>
    %386 = arith.addf %384, %385 : vector<2x128xf32>
    %387 = vector.broadcast %2 : vector<1x128xf32> to vector<2x128xf32>
    %388 = arith.addf %386, %387 : vector<2x128xf32>
    %389 = vector.extract_strided_slice %388 {offsets = [0, 0], sizes = [2, 32], strides = [1, 1]} : vector<2x128xf32> to vector<2x32xf32>
    %390 = arith.negf %389 : vector<2x32xf32>
    %391 = math.exp %390 : vector<2x32xf32>
    %cst_91 = arith.constant 1.000000e+00 : f32
    %392 = vector.broadcast %cst_91 : f32 to vector<2x32xf32>
    %393 = arith.addf %392, %391 : vector<2x32xf32>
    %394 = arith.divf %392, %393 : vector<2x32xf32>
    %395 = vector.extract_strided_slice %388 {offsets = [0, 32], sizes = [2, 32], strides = [1, 1]} : vector<2x128xf32> to vector<2x32xf32>
    %396 = arith.negf %395 : vector<2x32xf32>
    %397 = math.exp %396 : vector<2x32xf32>
    %cst_92 = arith.constant 1.000000e+00 : f32
    %398 = vector.broadcast %cst_92 : f32 to vector<2x32xf32>
    %399 = arith.addf %398, %397 : vector<2x32xf32>
    %400 = arith.divf %398, %399 : vector<2x32xf32>
    %401 = vector.extract_strided_slice %388 {offsets = [0, 64], sizes = [2, 32], strides = [1, 1]} : vector<2x128xf32> to vector<2x32xf32>
    %402 = math.tanh %401 : vector<2x32xf32>
    %403 = vector.extract_strided_slice %388 {offsets = [0, 96], sizes = [2, 32], strides = [1, 1]} : vector<2x128xf32> to vector<2x32xf32>
    %404 = arith.negf %403 : vector<2x32xf32>
    %405 = math.exp %404 : vector<2x32xf32>
    %cst_93 = arith.constant 1.000000e+00 : f32
    %406 = vector.broadcast %cst_93 : f32 to vector<2x32xf32>
    %407 = arith.addf %406, %405 : vector<2x32xf32>
    %408 = arith.divf %406, %407 : vector<2x32xf32>
    %409 = arith.mulf %400, %349 : vector<2x32xf32>
    %410 = arith.mulf %394, %402 : vector<2x32xf32>
    %411 = arith.addf %409, %410 : vector<2x32xf32>
    %412 = math.tanh %411 : vector<2x32xf32>
    %413 = arith.mulf %408, %412 : vector<2x32xf32>
    %cst_94 = arith.constant dense<0.000000e+00> : vector<2x128xf32>
    %414 = tpu.matmul %413, %3, %cst_94 {dimension_numbers = #tpu.dot_dimension_numbers<[1], [0], [0], [1], [0, 0, 1, 1], [], []>} : vector<2x32xf32>, vector<32x128xf32>, vector<2x128xf32> -> vector<2x128xf32>
    %cst_95 = arith.constant dense<0.000000e+00> : vector<2x128xf32>
    %415 = tpu.matmul %381, %4, %cst_95 {dimension_numbers = #tpu.dot_dimension_numbers<[1], [0], [0], [1], [0, 0, 1, 1], [], []>} : vector<2x32xf32>, vector<32x128xf32>, vector<2x128xf32> -> vector<2x128xf32>
    %416 = arith.addf %414, %415 : vector<2x128xf32>
    %417 = vector.broadcast %5 : vector<1x128xf32> to vector<2x128xf32>
    %418 = arith.addf %416, %417 : vector<2x128xf32>
    %419 = vector.extract_strided_slice %418 {offsets = [0, 0], sizes = [2, 32], strides = [1, 1]} : vector<2x128xf32> to vector<2x32xf32>
    %420 = arith.negf %419 : vector<2x32xf32>
    %421 = math.exp %420 : vector<2x32xf32>
    %cst_96 = arith.constant 1.000000e+00 : f32
    %422 = vector.broadcast %cst_96 : f32 to vector<2x32xf32>
    %423 = arith.addf %422, %421 : vector<2x32xf32>
    %424 = arith.divf %422, %423 : vector<2x32xf32>
    %425 = vector.extract_strided_slice %418 {offsets = [0, 32], sizes = [2, 32], strides = [1, 1]} : vector<2x128xf32> to vector<2x32xf32>
    %426 = arith.negf %425 : vector<2x32xf32>
    %427 = math.exp %426 : vector<2x32xf32>
    %cst_97 = arith.constant 1.000000e+00 : f32
    %428 = vector.broadcast %cst_97 : f32 to vector<2x32xf32>
    %429 = arith.addf %428, %427 : vector<2x32xf32>
    %430 = arith.divf %428, %429 : vector<2x32xf32>
    %431 = vector.extract_strided_slice %418 {offsets = [0, 64], sizes = [2, 32], strides = [1, 1]} : vector<2x128xf32> to vector<2x32xf32>
    %432 = math.tanh %431 : vector<2x32xf32>
    %433 = vector.extract_strided_slice %418 {offsets = [0, 96], sizes = [2, 32], strides = [1, 1]} : vector<2x128xf32> to vector<2x32xf32>
    %434 = arith.negf %433 : vector<2x32xf32>
    %435 = math.exp %434 : vector<2x32xf32>
    %cst_98 = arith.constant 1.000000e+00 : f32
    %436 = vector.broadcast %cst_98 : f32 to vector<2x32xf32>
    %437 = arith.addf %436, %435 : vector<2x32xf32>
    %438 = arith.divf %436, %437 : vector<2x32xf32>
    %439 = arith.mulf %430, %379 : vector<2x32xf32>
    %440 = arith.mulf %424, %432 : vector<2x32xf32>
    %441 = arith.addf %439, %440 : vector<2x32xf32>
    %442 = math.tanh %441 : vector<2x32xf32>
    %443 = arith.mulf %438, %442 : vector<2x32xf32>
    %c7 = arith.constant 7 : index
    %c0_99 = arith.constant 0 : index
    %c0_100 = arith.constant 0 : index
    %444 = vector.load %arg1[%c7, %c0_99, %c0_100] : memref<8x2x10xf32, #tpu.memory_space<vmem>>, vector<1x2x10xf32>
    %445 = vector.shape_cast %444 : vector<1x2x10xf32> to vector<2x10xf32>
    %cst_101 = arith.constant dense<0.000000e+00> : vector<2x128xf32>
    %446 = tpu.matmul %445, %0, %cst_101 {dimension_numbers = #tpu.dot_dimension_numbers<[1], [0], [0], [1], [0, 0, 1, 1], [], []>} : vector<2x10xf32>, vector<10x128xf32>, vector<2x128xf32> -> vector<2x128xf32>
    %cst_102 = arith.constant dense<0.000000e+00> : vector<2x128xf32>
    %447 = tpu.matmul %413, %1, %cst_102 {dimension_numbers = #tpu.dot_dimension_numbers<[1], [0], [0], [1], [0, 0, 1, 1], [], []>} : vector<2x32xf32>, vector<32x128xf32>, vector<2x128xf32> -> vector<2x128xf32>
    %448 = arith.addf %446, %447 : vector<2x128xf32>
    %449 = vector.broadcast %2 : vector<1x128xf32> to vector<2x128xf32>
    %450 = arith.addf %448, %449 : vector<2x128xf32>
    %451 = vector.extract_strided_slice %450 {offsets = [0, 0], sizes = [2, 32], strides = [1, 1]} : vector<2x128xf32> to vector<2x32xf32>
    %452 = arith.negf %451 : vector<2x32xf32>
    %453 = math.exp %452 : vector<2x32xf32>
    %cst_103 = arith.constant 1.000000e+00 : f32
    %454 = vector.broadcast %cst_103 : f32 to vector<2x32xf32>
    %455 = arith.addf %454, %453 : vector<2x32xf32>
    %456 = arith.divf %454, %455 : vector<2x32xf32>
    %457 = vector.extract_strided_slice %450 {offsets = [0, 32], sizes = [2, 32], strides = [1, 1]} : vector<2x128xf32> to vector<2x32xf32>
    %458 = arith.negf %457 : vector<2x32xf32>
    %459 = math.exp %458 : vector<2x32xf32>
    %cst_104 = arith.constant 1.000000e+00 : f32
    %460 = vector.broadcast %cst_104 : f32 to vector<2x32xf32>
    %461 = arith.addf %460, %459 : vector<2x32xf32>
    %462 = arith.divf %460, %461 : vector<2x32xf32>
    %463 = vector.extract_strided_slice %450 {offsets = [0, 64], sizes = [2, 32], strides = [1, 1]} : vector<2x128xf32> to vector<2x32xf32>
    %464 = math.tanh %463 : vector<2x32xf32>
    %465 = vector.extract_strided_slice %450 {offsets = [0, 96], sizes = [2, 32], strides = [1, 1]} : vector<2x128xf32> to vector<2x32xf32>
    %466 = arith.negf %465 : vector<2x32xf32>
    %467 = math.exp %466 : vector<2x32xf32>
    %cst_105 = arith.constant 1.000000e+00 : f32
    %468 = vector.broadcast %cst_105 : f32 to vector<2x32xf32>
    %469 = arith.addf %468, %467 : vector<2x32xf32>
    %470 = arith.divf %468, %469 : vector<2x32xf32>
    %471 = arith.mulf %462, %411 : vector<2x32xf32>
    %472 = arith.mulf %456, %464 : vector<2x32xf32>
    %473 = arith.addf %471, %472 : vector<2x32xf32>
    %474 = math.tanh %473 : vector<2x32xf32>
    %475 = arith.mulf %470, %474 : vector<2x32xf32>
    %cst_106 = arith.constant dense<0.000000e+00> : vector<2x128xf32>
    %476 = tpu.matmul %475, %3, %cst_106 {dimension_numbers = #tpu.dot_dimension_numbers<[1], [0], [0], [1], [0, 0, 1, 1], [], []>} : vector<2x32xf32>, vector<32x128xf32>, vector<2x128xf32> -> vector<2x128xf32>
    %cst_107 = arith.constant dense<0.000000e+00> : vector<2x128xf32>
    %477 = tpu.matmul %443, %4, %cst_107 {dimension_numbers = #tpu.dot_dimension_numbers<[1], [0], [0], [1], [0, 0, 1, 1], [], []>} : vector<2x32xf32>, vector<32x128xf32>, vector<2x128xf32> -> vector<2x128xf32>
    %478 = arith.addf %476, %477 : vector<2x128xf32>
    %479 = vector.broadcast %5 : vector<1x128xf32> to vector<2x128xf32>
    %480 = arith.addf %478, %479 : vector<2x128xf32>
    %481 = vector.extract_strided_slice %480 {offsets = [0, 0], sizes = [2, 32], strides = [1, 1]} : vector<2x128xf32> to vector<2x32xf32>
    %482 = arith.negf %481 : vector<2x32xf32>
    %483 = math.exp %482 : vector<2x32xf32>
    %cst_108 = arith.constant 1.000000e+00 : f32
    %484 = vector.broadcast %cst_108 : f32 to vector<2x32xf32>
    %485 = arith.addf %484, %483 : vector<2x32xf32>
    %486 = arith.divf %484, %485 : vector<2x32xf32>
    %487 = vector.extract_strided_slice %480 {offsets = [0, 32], sizes = [2, 32], strides = [1, 1]} : vector<2x128xf32> to vector<2x32xf32>
    %488 = arith.negf %487 : vector<2x32xf32>
    %489 = math.exp %488 : vector<2x32xf32>
    %cst_109 = arith.constant 1.000000e+00 : f32
    %490 = vector.broadcast %cst_109 : f32 to vector<2x32xf32>
    %491 = arith.addf %490, %489 : vector<2x32xf32>
    %492 = arith.divf %490, %491 : vector<2x32xf32>
    %493 = vector.extract_strided_slice %480 {offsets = [0, 64], sizes = [2, 32], strides = [1, 1]} : vector<2x128xf32> to vector<2x32xf32>
    %494 = math.tanh %493 : vector<2x32xf32>
    %495 = vector.extract_strided_slice %480 {offsets = [0, 96], sizes = [2, 32], strides = [1, 1]} : vector<2x128xf32> to vector<2x32xf32>
    %496 = arith.negf %495 : vector<2x32xf32>
    %497 = math.exp %496 : vector<2x32xf32>
    %cst_110 = arith.constant 1.000000e+00 : f32
    %498 = vector.broadcast %cst_110 : f32 to vector<2x32xf32>
    %499 = arith.addf %498, %497 : vector<2x32xf32>
    %500 = arith.divf %498, %499 : vector<2x32xf32>
    %501 = arith.mulf %492, %441 : vector<2x32xf32>
    %502 = arith.mulf %486, %494 : vector<2x32xf32>
    %503 = arith.addf %501, %502 : vector<2x32xf32>
    %504 = math.tanh %503 : vector<2x32xf32>
    %505 = arith.mulf %500, %504 : vector<2x32xf32>
    %c0_111 = arith.constant 0 : index
    %c0_112 = arith.constant 0 : index
    %506 = vector.load %arg8[%c0_111, %c0_112] : memref<32x8xf32, #tpu.memory_space<vmem>>, vector<32x8xf32>
    %cst_113 = arith.constant dense<0.000000e+00> : vector<2x8xf32>
    %507 = tpu.matmul %505, %506, %cst_113 {dimension_numbers = #tpu.dot_dimension_numbers<[1], [0], [0], [1], [0, 0, 1, 1], [], []>} : vector<2x32xf32>, vector<32x8xf32>, vector<2x8xf32> -> vector<2x8xf32>
    %c0_114 = arith.constant 0 : index
    %c0_115 = arith.constant 0 : index
    %508 = vector.load %arg9[%c0_114, %c0_115] : memref<1x8xf32, #tpu.memory_space<vmem>>, vector<1x8xf32>
    %509 = vector.broadcast %508 : vector<1x8xf32> to vector<2x8xf32>
    %510 = arith.addf %507, %509 : vector<2x8xf32>
    %c0_116 = arith.constant 0 : index
    %c0_117 = arith.constant 0 : index
    %511 = vector.load %arg10[%c0_116, %c0_117] : memref<2x8xf32, #tpu.memory_space<vmem>>, vector<2x8xf32>
    tpu.vector_store %arg10[%c0_116, %c0_117], %510 {strides = array<i32>} : memref<2x8xf32, #tpu.memory_space<vmem>>, vector<2x8xf32>,
    return
  }
  func.func @transform_0(%arg0: i32) -> (i32, i32, i32) {
    %c0_i32 = arith.constant 0 : i32
    %c0_i32_0 = arith.constant 0 : i32
    %c0_i32_1 = arith.constant 0 : i32
    %c0_i32_2 = arith.constant 0 : i32
    return %c0_i32, %c0_i32_0, %c0_i32_1 : i32, i32, i32
  }
  func.func @transform_1(%arg0: i32) -> (i32, i32) {
    %c0_i32 = arith.constant 0 : i32
    %c0_i32_0 = arith.constant 0 : i32
    %c0_i32_1 = arith.constant 0 : i32
    return %c0_i32, %c0_i32_0 : i32, i32
  }
  func.func @transform_2(%arg0: i32) -> (i32, i32) {
    %c0_i32 = arith.constant 0 : i32
    %c0_i32_0 = arith.constant 0 : i32
    %c0_i32_1 = arith.constant 0 : i32
    return %c0_i32, %c0_i32_0 : i32, i32
  }
  func.func @transform_3(%arg0: i32) -> (i32, i32) {
    %c0_i32 = arith.constant 0 : i32
    %c0_i32_0 = arith.constant 0 : i32
    %c0_i32_1 = arith.constant 0 : i32
    return %c0_i32, %c0_i32_0 : i32, i32
  }
  func.func @transform_4(%arg0: i32) -> (i32, i32) {
    %c0_i32 = arith.constant 0 : i32
    %c0_i32_0 = arith.constant 0 : i32
    %c0_i32_1 = arith.constant 0 : i32
    return %c0_i32, %c0_i32_0 : i32, i32
  }
  func.func @transform_5(%arg0: i32) -> (i32, i32) {
    %c0_i32 = arith.constant 0 : i32
    %c0_i32_0 = arith.constant 0 : i32
    %c0_i32_1 = arith.constant 0 : i32
    return %c0_i32, %c0_i32_0 : i32, i32
  }
  func.func @transform_6(%arg0: i32) -> (i32, i32) {
    %c0_i32 = arith.constant 0 : i32
    %c0_i32_0 = arith.constant 0 : i32
    %c0_i32_1 = arith.constant 0 : i32
    return %c0_i32, %c0_i32_0 : i32, i32
  }
  func.func @transform_7(%arg0: i32) -> (i32, i32) {
    %c0_i32 = arith.constant 0 : i32
    %c0_i32_0 = arith.constant 0 : i32
    %c0_i32_1 = arith.constant 0 : i32
    return %c0_i32, %c0_i32_0 : i32, i32
  }
  func.func @transform_8(%arg0: i32) -> (i32, i32) {
    %c0_i32 = arith.constant 0 : i32
    %c0_i32_0 = arith.constant 0 : i32
    %c0_i32_1 = arith.constant 0 : i32
    return %c0_i32, %c0_i32_0 : i32, i32
  }
  func.func @transform_9(%arg0: i32) -> (i32, i32) {
    %c0_i32 = arith.constant 0 : i32
    %c0_i32_0 = arith.constant 0 : i32
    %c0_i32_1 = arith.constant 0 : i32
    return %c0_i32, %c0_i32_0 : i32, i32
  }
}

module attributes {stable_mosaic.version = 11 : i64} {
  func.func @_concat_fc_kernel(%arg0: i32, %arg1: memref<2x8xf32, #tpu.memory_space<vmem>>, %arg2: memref<2x8xf32, #tpu.memory_space<vmem>>, %arg3: memref<16x8xf32, #tpu.memory_space<vmem>>, %arg4: memref<1x8xf32, #tpu.memory_space<vmem>>, %arg5: memref<2x8xf32, #tpu.memory_space<vmem>>) attributes {dimension_semantics = [#tpu.dimension_semantics<arbitrary>], iteration_bounds = array<i64: 1>, scalar_prefetch = 0 : i64, scratch_operands = 0 : i64, tpu.core_type = #tpu.core_type<tc>, window_params = [{pipeline_mode = #tpu.pipeline_mode<synchronous>, transform_indices = @transform_0, window_bounds = array<i64: 2, 8>}, {pipeline_mode = #tpu.pipeline_mode<synchronous>, transform_indices = @transform_1, window_bounds = array<i64: 2, 8>}, {pipeline_mode = #tpu.pipeline_mode<synchronous>, transform_indices = @transform_2, window_bounds = array<i64: 16, 8>}, {pipeline_mode = #tpu.pipeline_mode<synchronous>, transform_indices = @transform_3, window_bounds = array<i64: 1, 8>}, {pipeline_mode = #tpu.pipeline_mode<synchronous>, transform_indices = @transform_4, window_bounds = array<i64: 2, 8>}]} {
    %c0 = arith.constant 0 : index
    %c0_0 = arith.constant 0 : index
    %0 = vector.load %arg3[%c0, %c0_0] : memref<16x8xf32, #tpu.memory_space<vmem>>, vector<16x8xf32>
    %c0_1 = arith.constant 0 : index
    %c0_2 = arith.constant 0 : index
    %1 = vector.load %arg1[%c0_1, %c0_2] : memref<2x8xf32, #tpu.memory_space<vmem>>, vector<2x8xf32>
    %2 = vector.extract_strided_slice %0 {offsets = [0, 0], sizes = [8, 8], strides = [1, 1]} : vector<16x8xf32> to vector<8x8xf32>
    %cst = arith.constant dense<0.000000e+00> : vector<2x8xf32>
    %3 = tpu.matmul %1, %2, %cst {dimension_numbers = #tpu.dot_dimension_numbers<[1], [0], [0], [1], [0, 0, 1, 1], [], []>} : vector<2x8xf32>, vector<8x8xf32>, vector<2x8xf32> -> vector<2x8xf32>
    %c0_3 = arith.constant 0 : index
    %c0_4 = arith.constant 0 : index
    %4 = vector.load %arg2[%c0_3, %c0_4] : memref<2x8xf32, #tpu.memory_space<vmem>>, vector<2x8xf32>
    %5 = vector.extract_strided_slice %0 {offsets = [8, 0], sizes = [8, 8], strides = [1, 1]} : vector<16x8xf32> to vector<8x8xf32>
    %cst_5 = arith.constant dense<0.000000e+00> : vector<2x8xf32>
    %6 = tpu.matmul %4, %5, %cst_5 {dimension_numbers = #tpu.dot_dimension_numbers<[1], [0], [0], [1], [0, 0, 1, 1], [], []>} : vector<2x8xf32>, vector<8x8xf32>, vector<2x8xf32> -> vector<2x8xf32>
    %7 = arith.addf %3, %6 : vector<2x8xf32>
    %c0_6 = arith.constant 0 : index
    %c0_7 = arith.constant 0 : index
    %8 = vector.load %arg4[%c0_6, %c0_7] : memref<1x8xf32, #tpu.memory_space<vmem>>, vector<1x8xf32>
    %9 = vector.broadcast %8 : vector<1x8xf32> to vector<2x8xf32>
    %10 = arith.addf %7, %9 : vector<2x8xf32>
    %c0_8 = arith.constant 0 : index
    %c0_9 = arith.constant 0 : index
    %11 = vector.load %arg5[%c0_8, %c0_9] : memref<2x8xf32, #tpu.memory_space<vmem>>, vector<2x8xf32>
    tpu.vector_store %arg5[%c0_8, %c0_9], %10 {strides = array<i32>} : memref<2x8xf32, #tpu.memory_space<vmem>>, vector<2x8xf32>,
    return
  }
  func.func @transform_0(%arg0: i32) -> (i32, i32) {
    %c0_i32 = arith.constant 0 : i32
    %c0_i32_0 = arith.constant 0 : i32
    %c0_i32_1 = arith.constant 0 : i32
    return %c0_i32, %c0_i32_0 : i32, i32
  }
  func.func @transform_1(%arg0: i32) -> (i32, i32) {
    %c0_i32 = arith.constant 0 : i32
    %c0_i32_0 = arith.constant 0 : i32
    %c0_i32_1 = arith.constant 0 : i32
    return %c0_i32, %c0_i32_0 : i32, i32
  }
  func.func @transform_2(%arg0: i32) -> (i32, i32) {
    %c0_i32 = arith.constant 0 : i32
    %c0_i32_0 = arith.constant 0 : i32
    %c0_i32_1 = arith.constant 0 : i32
    return %c0_i32, %c0_i32_0 : i32, i32
  }
  func.func @transform_3(%arg0: i32) -> (i32, i32) {
    %c0_i32 = arith.constant 0 : i32
    %c0_i32_0 = arith.constant 0 : i32
    %c0_i32_1 = arith.constant 0 : i32
    return %c0_i32, %c0_i32_0 : i32, i32
  }
  func.func @transform_4(%arg0: i32) -> (i32, i32) {
    %c0_i32 = arith.constant 0 : i32
    %c0_i32_0 = arith.constant 0 : i32
    %c0_i32_1 = arith.constant 0 : i32
    return %c0_i32, %c0_i32_0 : i32, i32
  }
}

module attributes {stable_mosaic.version = 11 : i64} {
  func.func @_speech_kernel(%arg0: i32, %arg1: memref<64x128xf32, #tpu.memory_space<vmem>>, %arg2: memref<128x16xf32, #tpu.memory_space<vmem>>, %arg3: memref<1x16xf32, #tpu.memory_space<vmem>>, %arg4: memref<16x48xf32, #tpu.memory_space<vmem>>, %arg5: memref<1x48xf32, #tpu.memory_space<vmem>>, %arg6: memref<16x32xf32, #tpu.memory_space<vmem>>, %arg7: memref<1x32xf32, #tpu.memory_space<vmem>>, %arg8: memref<32x16xf32, #tpu.memory_space<vmem>>, %arg9: memref<1x16xf32, #tpu.memory_space<vmem>>, %arg10: memref<16x8xf32, #tpu.memory_space<vmem>>, %arg11: memref<1x8xf32, #tpu.memory_space<vmem>>, %arg12: memref<2x8xf32, #tpu.memory_space<vmem>>) attributes {dimension_semantics = [#tpu.dimension_semantics<arbitrary>], iteration_bounds = array<i64: 1>, scalar_prefetch = 0 : i64, scratch_operands = 0 : i64, tpu.core_type = #tpu.core_type<tc>, window_params = [{pipeline_mode = #tpu.pipeline_mode<synchronous>, transform_indices = @transform_0, window_bounds = array<i64: 64, 128>}, {pipeline_mode = #tpu.pipeline_mode<synchronous>, transform_indices = @transform_1, window_bounds = array<i64: 128, 16>}, {pipeline_mode = #tpu.pipeline_mode<synchronous>, transform_indices = @transform_2, window_bounds = array<i64: 1, 16>}, {pipeline_mode = #tpu.pipeline_mode<synchronous>, transform_indices = @transform_3, window_bounds = array<i64: 16, 48>}, {pipeline_mode = #tpu.pipeline_mode<synchronous>, transform_indices = @transform_4, window_bounds = array<i64: 1, 48>}, {pipeline_mode = #tpu.pipeline_mode<synchronous>, transform_indices = @transform_5, window_bounds = array<i64: 16, 32>}, {pipeline_mode = #tpu.pipeline_mode<synchronous>, transform_indices = @transform_6, window_bounds = array<i64: 1, 32>}, {pipeline_mode = #tpu.pipeline_mode<synchronous>, transform_indices = @transform_7, window_bounds = array<i64: 32, 16>}, {pipeline_mode = #tpu.pipeline_mode<synchronous>, transform_indices = @transform_8, window_bounds = array<i64: 1, 16>}, {pipeline_mode = #tpu.pipeline_mode<synchronous>, transform_indices = @transform_9, window_bounds = array<i64: 16, 8>}, {pipeline_mode = #tpu.pipeline_mode<synchronous>, transform_indices = @transform_10, window_bounds = array<i64: 1, 8>}, {pipeline_mode = #tpu.pipeline_mode<synchronous>, transform_indices = @transform_11, window_bounds = array<i64: 2, 8>}]} {
    %c0 = arith.constant 0 : index
    %c0_0 = arith.constant 0 : index
    %0 = vector.load %arg1[%c0, %c0_0] : memref<64x128xf32, #tpu.memory_space<vmem>>, vector<64x128xf32>
    %c0_1 = arith.constant 0 : index
    %c0_2 = arith.constant 0 : index
    %1 = vector.load %arg2[%c0_1, %c0_2] : memref<128x16xf32, #tpu.memory_space<vmem>>, vector<128x16xf32>
    %cst = arith.constant dense<0.000000e+00> : vector<64x16xf32>
    %2 = tpu.matmul %0, %1, %cst {dimension_numbers = #tpu.dot_dimension_numbers<[1], [0], [0], [1], [0, 0, 1, 1], [], []>} : vector<64x128xf32>, vector<128x16xf32>, vector<64x16xf32> -> vector<64x16xf32>
    %c0_3 = arith.constant 0 : index
    %c0_4 = arith.constant 0 : index
    %3 = vector.load %arg3[%c0_3, %c0_4] : memref<1x16xf32, #tpu.memory_space<vmem>>, vector<1x16xf32>
    %4 = vector.broadcast %3 : vector<1x16xf32> to vector<64x16xf32>
    %5 = arith.addf %2, %4 : vector<64x16xf32>
    %cst_5 = arith.constant 0.000000e+00 : f32
    %6 = vector.broadcast %cst_5 : f32 to vector<64x16xf32>
    %7 = arith.maximumf %5, %6 : vector<64x16xf32>
    %c0_6 = arith.constant 0 : index
    %c0_7 = arith.constant 0 : index
    %8 = vector.load %arg4[%c0_6, %c0_7] : memref<16x48xf32, #tpu.memory_space<vmem>>, vector<16x48xf32>
    %cst_8 = arith.constant dense<0.000000e+00> : vector<64x48xf32>
    %9 = tpu.matmul %7, %8, %cst_8 {dimension_numbers = #tpu.dot_dimension_numbers<[1], [0], [0], [1], [0, 0, 1, 1], [], []>} : vector<64x16xf32>, vector<16x48xf32>, vector<64x48xf32> -> vector<64x48xf32>
    %c0_9 = arith.constant 0 : index
    %c0_10 = arith.constant 0 : index
    %10 = vector.load %arg5[%c0_9, %c0_10] : memref<1x48xf32, #tpu.memory_space<vmem>>, vector<1x48xf32>
    %11 = vector.broadcast %10 : vector<1x48xf32> to vector<64x48xf32>
    %12 = arith.addf %9, %11 : vector<64x48xf32>
    %13 = vector.extract_strided_slice %12 {offsets = [0, 0], sizes = [64, 16], strides = [1, 1]} : vector<64x48xf32> to vector<64x16xf32>
    %14 = vector.shape_cast %13 : vector<64x16xf32> to vector<2x32x16xf32>
    %15 = vector.extract_strided_slice %12 {offsets = [0, 16], sizes = [64, 16], strides = [1, 1]} : vector<64x48xf32> to vector<64x16xf32>
    %16 = vector.shape_cast %15 : vector<64x16xf32> to vector<2x32x16xf32>
    %17 = vector.extract_strided_slice %12 {offsets = [0, 32], sizes = [64, 16], strides = [1, 1]} : vector<64x48xf32> to vector<64x16xf32>
    %18 = vector.shape_cast %17 : vector<64x16xf32> to vector<2x32x16xf32>
    "tpu.trace_start"() <{level = 10 : i32, message = "btd,bsd->bts"}> : () -> ()
    %cst_11 = arith.constant dense<0.000000e+00> : vector<2x32x32xf32>
    %19 = tpu.matmul %14, %16, %cst_11 {dimension_numbers = #tpu.dot_dimension_numbers<[2], [2], [1], [1], [0, 0, 0, 1, 1, 1], [0], [0]>} : vector<2x32x16xf32>, vector<2x32x16xf32>, vector<2x32x32xf32> -> vector<2x32x32xf32>
    "tpu.trace_stop"() : () -> ()
    %cst_12 = arith.constant 2.500000e-01 : f32
    %20 = vector.broadcast %cst_12 : f32 to vector<2x32x32xf32>
    %21 = arith.mulf %19, %20 : vector<2x32x32xf32>
    %cst_13 = arith.constant dense<0xFF800000> : vector<2x32xf32>
    %22 = vector.multi_reduction <maximumf>, %21, %cst_13 [2] : vector<2x32x32xf32> to vector<2x32xf32>
    %cst_14 = arith.constant 0xFF800000 : f32
    %23 = vector.broadcast %cst_14 : f32 to vector<2x32xf32>
    %24 = arith.maximumf %23, %22 : vector<2x32xf32>
    %25 = vector.shape_cast %24 : vector<2x32xf32> to vector<2x32x1xf32>
    %26 = vector.broadcast %25 : vector<2x32x1xf32> to vector<2x32x32xf32>
    %27 = arith.subf %21, %26 : vector<2x32x32xf32>
    %28 = math.exp %27 : vector<2x32x32xf32>
    %cst_15 = arith.constant dense<0.000000e+00> : vector<2x32xf32>
    %29 = vector.multi_reduction <add>, %28, %cst_15 [2] : vector<2x32x32xf32> to vector<2x32xf32>
    %30 = vector.shape_cast %29 : vector<2x32xf32> to vector<2x32x1xf32>
    %31 = vector.broadcast %30 : vector<2x32x1xf32> to vector<2x32x32xf32>
    %32 = arith.divf %28, %31 : vector<2x32x32xf32>
    "tpu.trace_start"() <{level = 10 : i32, message = "bts,bsd->btd"}> : () -> ()
    %cst_16 = arith.constant dense<0.000000e+00> : vector<2x32x16xf32>
    %33 = tpu.matmul %32, %18, %cst_16 {dimension_numbers = #tpu.dot_dimension_numbers<[2], [1], [1], [2], [0, 0, 0, 1, 1, 2], [0], [0]>} : vector<2x32x32xf32>, vector<2x32x16xf32>, vector<2x32x16xf32> -> vector<2x32x16xf32>
    "tpu.trace_stop"() : () -> ()
    %34 = vector.shape_cast %33 : vector<2x32x16xf32> to vector<64x16xf32>
    %35 = arith.addf %7, %34 : vector<64x16xf32>
    %c0_17 = arith.constant 0 : index
    %c0_18 = arith.constant 0 : index
    %36 = vector.load %arg6[%c0_17, %c0_18] : memref<16x32xf32, #tpu.memory_space<vmem>>, vector<16x32xf32>
    %cst_19 = arith.constant dense<0.000000e+00> : vector<64x32xf32>
    %37 = tpu.matmul %35, %36, %cst_19 {dimension_numbers = #tpu.dot_dimension_numbers<[1], [0], [0], [1], [0, 0, 1, 1], [], []>} : vector<64x16xf32>, vector<16x32xf32>, vector<64x32xf32> -> vector<64x32xf32>
    %c0_20 = arith.constant 0 : index
    %c0_21 = arith.constant 0 : index
    %38 = vector.load %arg7[%c0_20, %c0_21] : memref<1x32xf32, #tpu.memory_space<vmem>>, vector<1x32xf32>
    %39 = vector.broadcast %38 : vector<1x32xf32> to vector<64x32xf32>
    %40 = arith.addf %37, %39 : vector<64x32xf32>
    %cst_22 = arith.constant 0.000000e+00 : f32
    %41 = vector.broadcast %cst_22 : f32 to vector<64x32xf32>
    %42 = arith.maximumf %40, %41 : vector<64x32xf32>
    %c0_23 = arith.constant 0 : index
    %c0_24 = arith.constant 0 : index
    %43 = vector.load %arg8[%c0_23, %c0_24] : memref<32x16xf32, #tpu.memory_space<vmem>>, vector<32x16xf32>
    %cst_25 = arith.constant dense<0.000000e+00> : vector<64x16xf32>
    %44 = tpu.matmul %42, %43, %cst_25 {dimension_numbers = #tpu.dot_dimension_numbers<[1], [0], [0], [1], [0, 0, 1, 1], [], []>} : vector<64x32xf32>, vector<32x16xf32>, vector<64x16xf32> -> vector<64x16xf32>
    %c0_26 = arith.constant 0 : index
    %c0_27 = arith.constant 0 : index
    %45 = vector.load %arg9[%c0_26, %c0_27] : memref<1x16xf32, #tpu.memory_space<vmem>>, vector<1x16xf32>
    %46 = vector.broadcast %45 : vector<1x16xf32> to vector<64x16xf32>
    %47 = arith.addf %44, %46 : vector<64x16xf32>
    %48 = arith.addf %35, %47 : vector<64x16xf32>
    %49 = vector.shape_cast %48 : vector<64x16xf32> to vector<2x32x16xf32>
    %cst_28 = arith.constant dense<0.000000e+00> : vector<2x16xf32>
    %50 = vector.multi_reduction <add>, %49, %cst_28 [1] : vector<2x32x16xf32> to vector<2x16xf32>
    %cst_29 = arith.constant 3.200000e+01 : f32
    %51 = vector.broadcast %cst_29 : f32 to vector<2x16xf32>
    %52 = arith.divf %50, %51 : vector<2x16xf32>
    %c0_30 = arith.constant 0 : index
    %c0_31 = arith.constant 0 : index
    %53 = vector.load %arg10[%c0_30, %c0_31] : memref<16x8xf32, #tpu.memory_space<vmem>>, vector<16x8xf32>
    %cst_32 = arith.constant dense<0.000000e+00> : vector<2x8xf32>
    %54 = tpu.matmul %52, %53, %cst_32 {dimension_numbers = #tpu.dot_dimension_numbers<[1], [0], [0], [1], [0, 0, 1, 1], [], []>} : vector<2x16xf32>, vector<16x8xf32>, vector<2x8xf32> -> vector<2x8xf32>
    %c0_33 = arith.constant 0 : index
    %c0_34 = arith.constant 0 : index
    %55 = vector.load %arg11[%c0_33, %c0_34] : memref<1x8xf32, #tpu.memory_space<vmem>>, vector<1x8xf32>
    %56 = vector.broadcast %55 : vector<1x8xf32> to vector<2x8xf32>
    %57 = arith.addf %54, %56 : vector<2x8xf32>
    %c0_35 = arith.constant 0 : index
    %c0_36 = arith.constant 0 : index
    %58 = vector.load %arg12[%c0_35, %c0_36] : memref<2x8xf32, #tpu.memory_space<vmem>>, vector<2x8xf32>
    tpu.vector_store %arg12[%c0_35, %c0_36], %57 {strides = array<i32>} : memref<2x8xf32, #tpu.memory_space<vmem>>, vector<2x8xf32>,
    return
  }
  func.func @transform_0(%arg0: i32) -> (i32, i32) {
    %c0_i32 = arith.constant 0 : i32
    %c0_i32_0 = arith.constant 0 : i32
    %c0_i32_1 = arith.constant 0 : i32
    return %c0_i32, %c0_i32_0 : i32, i32
  }
  func.func @transform_1(%arg0: i32) -> (i32, i32) {
    %c0_i32 = arith.constant 0 : i32
    %c0_i32_0 = arith.constant 0 : i32
    %c0_i32_1 = arith.constant 0 : i32
    return %c0_i32, %c0_i32_0 : i32, i32
  }
  func.func @transform_2(%arg0: i32) -> (i32, i32) {
    %c0_i32 = arith.constant 0 : i32
    %c0_i32_0 = arith.constant 0 : i32
    %c0_i32_1 = arith.constant 0 : i32
    return %c0_i32, %c0_i32_0 : i32, i32
  }
  func.func @transform_3(%arg0: i32) -> (i32, i32) {
    %c0_i32 = arith.constant 0 : i32
    %c0_i32_0 = arith.constant 0 : i32
    %c0_i32_1 = arith.constant 0 : i32
    return %c0_i32, %c0_i32_0 : i32, i32
  }
  func.func @transform_4(%arg0: i32) -> (i32, i32) {
    %c0_i32 = arith.constant 0 : i32
    %c0_i32_0 = arith.constant 0 : i32
    %c0_i32_1 = arith.constant 0 : i32
    return %c0_i32, %c0_i32_0 : i32, i32
  }
  func.func @transform_5(%arg0: i32) -> (i32, i32) {
    %c0_i32 = arith.constant 0 : i32
    %c0_i32_0 = arith.constant 0 : i32
    %c0_i32_1 = arith.constant 0 : i32
    return %c0_i32, %c0_i32_0 : i32, i32
  }
  func.func @transform_6(%arg0: i32) -> (i32, i32) {
    %c0_i32 = arith.constant 0 : i32
    %c0_i32_0 = arith.constant 0 : i32
    %c0_i32_1 = arith.constant 0 : i32
    return %c0_i32, %c0_i32_0 : i32, i32
  }
  func.func @transform_7(%arg0: i32) -> (i32, i32) {
    %c0_i32 = arith.constant 0 : i32
    %c0_i32_0 = arith.constant 0 : i32
    %c0_i32_1 = arith.constant 0 : i32
    return %c0_i32, %c0_i32_0 : i32, i32
  }
  func.func @transform_8(%arg0: i32) -> (i32, i32) {
    %c0_i32 = arith.constant 0 : i32
    %c0_i32_0 = arith.constant 0 : i32
    %c0_i32_1 = arith.constant 0 : i32
    return %c0_i32, %c0_i32_0 : i32, i32
  }
  func.func @transform_9(%arg0: i32) -> (i32, i32) {
    %c0_i32 = arith.constant 0 : i32
    %c0_i32_0 = arith.constant 0 : i32
    %c0_i32_1 = arith.constant 0 : i32
    return %c0_i32, %c0_i32_0 : i32, i32
  }
  func.func @transform_10(%arg0: i32) -> (i32, i32) {
    %c0_i32 = arith.constant 0 : i32
    %c0_i32_0 = arith.constant 0 : i32
    %c0_i32_1 = arith.constant 0 : i32
    return %c0_i32, %c0_i32_0 : i32, i32
  }
  func.func @transform_11(%arg0: i32) -> (i32, i32) {
    %c0_i32 = arith.constant 0 : i32
    %c0_i32_0 = arith.constant 0 : i32
    %c0_i32_1 = arith.constant 0 : i32
    return %c0_i32, %c0_i32_0 : i32, i32
  }
}

</mosaic_0001>

<llo_original>
// kernel: forward.4
$region0: #{forward.4}
  #allocation0 [shape = 'u32[]', space=smem, size = 0x4, offset = 0x4, fixed_abs, tag = 'smem constant byte address 0x4 - core index']
  #allocation1 [shape = 'u32[72,128]{1,0:T(1,128)}', space=vmem, size = 0x9000, scoped, tag = 'internal scratch']
  %s0 = inlined_call_operand.vmem [shape: bf16[4096,27], index: 0, kind: input, shape index: {}]
  %s1 = inlined_call_operand.vmem [shape: bf16[27,16], index: 1, kind: input, shape index: {}]
  %s2 = inlined_call_operand.vmem [shape: f32[1,16], index: 2, kind: input, shape index: {}]
  %s3 = inlined_call_operand.vmem [shape: f32[16,10], index: 3, kind: input, shape index: {}]
  %s4 = inlined_call_operand.vmem [shape: f32[1,10], index: 4, kind: input, shape index: {}]
  %s5 = inlined_call_operand.vmem [shape: f32[16,1,10], index: 5, kind: output, shape index: {}]
  %s6 = sld [smem:[#allocation0]]
  $region53: #{forward.4} parent=0
    _
  %s8 = ssub.s32 1, %s6
  %s9 = scalar_select 0, %s8, %s6
  loop: start=0, step=1, limit=10
  $region2: #{forward.4} parent=0 // loop_pre_header
    _
  $region3: #{forward.4} parent=0 // loop_header
    %s11 = sphi 0, %s15
    %p12 = scmp.ge.s32.totalorder %s11, 10
    %s21 = sphi 0, %s23
    %s24 = sphi 0, %s21
    %s25 = sphi 0, %s24
    %s41 = sphi 0, %s25
    %s45 = sphi 0, %s45
    %s47 = sphi 0, %s45
    %s48 = sphi 0, %s47
    %s62 = sphi 0, %s48
    %s66 = sphi 0, %s66
    %s68 = sphi 0, %s66
    %s69 = sphi 0, %s68
    %s83 = sphi 0, %s69
    %s87 = sphi 0, %s87
    %s89 = sphi 0, %s87
    %s90 = sphi 0, %s89
    %s104 = sphi 0, %s90
    %s108 = sphi 0, %s108
    %s110 = sphi 0, %s108
    %s111 = sphi 0, %s110
    %s125 = sphi 0, %s111
    %s131 = sphi 0, %s133
    %s134 = sphi 0, %s131
    %s135 = sphi 0, %s134
    %s151 = sphi 0, %s135
  $region4: #{forward.4} parent=0 // loop_header_branch
    %14 = sbr.rel (%p12) target = $region8
  $region5: #{forward.4} parent=0 // loop_body
    %s16 = ssub.s32 %s11, 1
    %s17 = ssub.s32 %s11, 2
    %s18 = sadd.s32 %s11, 1
    %s19 = ssub.s32 %s11, %s18
    %p20 = scmp.eq.s32.totalorder %s19, 0
    %s22 = sadd.s32 %s21, 1
    %s23 = scalar_select %p20, %s21, %s22
    %p26 = pneg %p20
    %p27 = scmp.eq.s32.totalorder %s11, 7
    %p28 = por %p26, %p27
    %p29 = scmp.ne.s32.totalorder %s21, %s24
    %p30 = scmp.eq.s32.totalorder %s11, 0
    %p31 = por %p29, %p30
    %p32 = scmp.ne.s32.totalorder %s21, %s24
    %p33 = scmp.eq.s32.totalorder %s16, 7
    %p34 = por %p32, %p33
    %p35 = scmp.ne.s32.totalorder %s24, %s25
    %p36 = scmp.eq.s32.totalorder %s16, 0
    %p37 = por %p35, %p36
    %p38 = scmp.ne.s32.totalorder %s24, %s25
    %p39 = scmp.eq.s32.totalorder %s17, 7
    %p40 = por %p38, %p39
    %p42 = scmp.ne.s32.totalorder %s25, %s41
    %p43 = scmp.eq.s32.totalorder %s17, 0
    %p44 = por %p42, %p43
    %s46 = sadd.s32 %s45, 1
    %p49 = scmp.eq.s32.totalorder %s11, 7
    %p50 = scmp.ne.s32.totalorder %s45, %s47
    %p51 = scmp.eq.s32.totalorder %s11, 0
    %p52 = por %p50, %p51
    %p53 = scmp.ne.s32.totalorder %s45, %s47
    %p54 = scmp.eq.s32.totalorder %s16, 7
    %p55 = por %p53, %p54
    %p56 = scmp.ne.s32.totalorder %s47, %s48
    %p57 = scmp.eq.s32.totalorder %s16, 0
    %p58 = por %p56, %p57
    %p59 = scmp.ne.s32.totalorder %s47, %s48
    %p60 = scmp.eq.s32.totalorder %s17, 7
    %p61 = por %p59, %p60
    %p63 = scmp.ne.s32.totalorder %s48, %s62
    %p64 = scmp.eq.s32.totalorder %s17, 0
    %p65 = por %p63, %p64
    %s67 = sadd.s32 %s66, 1
    %p70 = scmp.eq.s32.totalorder %s11, 7
    %p71 = scmp.ne.s32.totalorder %s66, %s68
    %p72 = scmp.eq.s32.totalorder %s11, 0
    %p73 = por %p71, %p72
    %p74 = scmp.ne.s32.totalorder %s66, %s68
    %p75 = scmp.eq.s32.totalorder %s16, 7
    %p76 = por %p74, %p75
    %p77 = scmp.ne.s32.totalorder %s68, %s69
    %p78 = scmp.eq.s32.totalorder %s16, 0
    %p79 = por %p77, %p78
    %p80 = scmp.ne.s32.totalorder %s68, %s69
    %p81 = scmp.eq.s32.totalorder %s17, 7
    %p82 = por %p80, %p81
    %p84 = scmp.ne.s32.totalorder %s69, %s83
    %p85 = scmp.eq.s32.totalorder %s17, 0
    %p86 = por %p84, %p85
    %s88 = sadd.s32 %s87, 1
    %p91 = scmp.eq.s32.totalorder %s11, 7
    %p92 = scmp.ne.s32.totalorder %s87, %s89
    %p93 = scmp.eq.s32.totalorder %s11, 0
    %p94 = por %p92, %p93
    %p95 = scmp.ne.s32.totalorder %s87, %s89
    %p96 = scmp.eq.s32.totalorder %s16, 7
    %p97 = por %p95, %p96
    %p98 = scmp.ne.s32.totalorder %s89, %s90
    %p99 = scmp.eq.s32.totalorder %s16, 0
    %p100 = por %p98, %p99
    %p101 = scmp.ne.s32.totalorder %s89, %s90
    %p102 = scmp.eq.s32.totalorder %s17, 7
    %p103 = por %p101, %p102
    %p105 = scmp.ne.s32.totalorder %s90, %s104
    %p106 = scmp.eq.s32.totalorder %s17, 0
    %p107 = por %p105, %p106
    %s109 = sadd.s32 %s108, 1
    %p112 = scmp.eq.s32.totalorder %s11, 7
    %p113 = scmp.ne.s32.totalorder %s108, %s110
    %p114 = scmp.eq.s32.totalorder %s11, 0
    %p115 = por %p113, %p114
    %p116 = scmp.ne.s32.totalorder %s108, %s110
    %p117 = scmp.eq.s32.totalorder %s16, 7
    %p118 = por %p116, %p117
    %p119 = scmp.ne.s32.totalorder %s110, %s111
    %p120 = scmp.eq.s32.totalorder %s16, 0
    %p121 = por %p119, %p120
    %p122 = scmp.ne.s32.totalorder %s110, %s111
    %p123 = scmp.eq.s32.totalorder %s17, 7
    %p124 = por %p122, %p123
    %p126 = scmp.ne.s32.totalorder %s111, %s125
    %p127 = scmp.eq.s32.totalorder %s17, 0
    %p128 = por %p126, %p127
    %s129 = ssub.s32 %s11, %s18
    %p130 = scmp.eq.s32.totalorder %s129, 0
    %s132 = sadd.s32 %s131, 1
    %s133 = scalar_select %p130, %s131, %s132
    %p136 = pneg %p130
    %p137 = scmp.eq.s32.totalorder %s11, 7
    %p138 = por %p136, %p137
    %p139 = scmp.ne.s32.totalorder %s131, %s134
    %p140 = scmp.eq.s32.totalorder %s11, 0
    %p141 = por %p139, %p140
    %p142 = scmp.ne.s32.totalorder %s131, %s134
    %p143 = scmp.eq.s32.totalorder %s16, 7
    %p144 = por %p142, %p143
    %p145 = scmp.ne.s32.totalorder %s134, %s135
    %p146 = scmp.eq.s32.totalorder %s16, 0
    %p147 = por %p145, %p146
    %p148 = scmp.ne.s32.totalorder %s134, %s135
    %p149 = scmp.eq.s32.totalorder %s17, 7
    %p150 = por %p148, %p149
    %p152 = scmp.ne.s32.totalorder %s135, %s151
    %p153 = scmp.eq.s32.totalorder %s17, 0
    %p154 = por %p152, %p153
    %p155 = scmp.le.s32.totalorder 1, %s11
    %p156 = scmp.lt.s32.totalorder %s11, 9
    %p157 = pnand %p155, %p156
    %p158 = pneg %p157
    // Predicated region
    $region9: #{forward.4} parent=5 // pred_check
      _
    $region10: #{forward.4} parent=5 // pred_check_branch
      %160 = sbr.rel (%p157) target = $region12
    $region11: #{forward.4} parent=5 // pred_region
      %s161 = ssub.s32 %s11, 1
      // Predicated region
      $region13: #{forward.4} parent=11 // pred_check
        %p162 = pneg %p58
      $region14: #{forward.4} parent=11 // pred_check_branch
        %164 = sbr.rel (%p162) target = $region16
      $region15: #{forward.4} parent=11 // pred_region
        _
      $region16: #{forward.4} parent=11 // pred_fallthru
        _
      // Predicated region
      $region17: #{forward.4} parent=11 // pred_check
        %p165 = pneg %p79
      $region18: #{forward.4} parent=11 // pred_check_branch
        %167 = sbr.rel (%p165) target = $region20
      $region19: #{forward.4} parent=11 // pred_region
        _
      $region20: #{forward.4} parent=11 // pred_fallthru
        _
      // Predicated region
      $region21: #{forward.4} parent=11 // pred_check
        %p168 = pneg %p100
      $region22: #{forward.4} parent=11 // pred_check_branch
        %170 = sbr.rel (%p168) target = $region24
      $region23: #{forward.4} parent=11 // pred_region
        _
      $region24: #{forward.4} parent=11 // pred_fallthru
        _
      // Predicated region
      $region25: #{forward.4} parent=11 // pred_check
        %p171 = pneg %p121
      $region26: #{forward.4} parent=11 // pred_check_branch
        %173 = sbr.rel (%p171) target = $region28
      $region27: #{forward.4} parent=11 // pred_region
        _
      $region28: #{forward.4} parent=11 // pred_fallthru
        _
    $region12: #{forward.4} parent=5 // pred_fallthru
      _
    %p174 = scmp.lt.s32.totalorder %s11, 8
    // Predicated region
    $region29: #{forward.4} parent=5 // pred_check
      %p175 = pneg %p174
    $region30: #{forward.4} parent=5 // pred_check_branch
      %177 = sbr.rel (%p175) target = $region32
    $region31: #{forward.4} parent=5 // pred_region
      // Predicated region
      $region33: #{forward.4} parent=31 // pred_check
        %p178 = pneg %p31
      $region34: #{forward.4} parent=31 // pred_check_branch
        %180 = sbr.rel (%p178) target = $region36
      $region35: #{forward.4} parent=31 // pred_region
        %s181 = smul.u32 64, %s11
        %p182 = scmp.lt.s32.totalorder %s181, 511
        %s183 = scalar_select %p182, %s181, 511
        %s184 = smul.addr %s183, 4
        %s185 = scalar_lea.vmem %s0, %s184
        %s186 = smul.u32 64, %s11
      $region36: #{forward.4} parent=31 // pred_fallthru
        _
    $region32: #{forward.4} parent=5 // pred_fallthru
      _
    %p187 = scmp.le.s32.totalorder 1, %s11
    %p188 = scmp.lt.s32.totalorder %s11, 9
    %p189 = pnand %p187, %p188
    %p190 = pneg %p189
    // Predicated region
    $region37: #{forward.4} parent=5 // pred_check
      _
    $region38: #{forward.4} parent=5 // pred_check_branch
      %192 = sbr.rel (%p189) target = $region40
    $region39: #{forward.4} parent=5 // pred_region
      %s193 = ssub.s32 %s11, 1
      %s194 = smul.u32 64, %s16
      %p195 = scmp.lt.s32.totalorder %s194, 511
      %s196 = scalar_select %p195, %s194, 511
      %s197 = smul.addr %s196, 4
      %s198 = scalar_lea.vmem %s0, %s197
      %p199 = pneg %p37
      %p200 = pneg %p34
      %p201 = pneg %p58
      %p202 = pneg %p55
      %p203 = pneg %p79
      %p204 = pneg %p76
      %p205 = pneg %p100
      %p206 = pneg %p97
      %p207 = pneg %p121
      %p208 = pneg %p118
      %p209 = pneg %p147
      %p210 = pneg %p144
      %s211 = smul.u32 2, %s16
      %p212 = scmp.lt.s32.totalorder %s211, 15
      %s213 = scalar_select %p212, %s211, 15
      %s214 = scalar_lea.vmem %s5, %s213
      %s215 = smul.u32 64, %s16
      %p216 = scmp.lt.s32.totalorder %s215, 511
      %s217 = scalar_select %p216, %s215, 511
      %s218 = smul.addr %s217, 4
      %s219 = scalar_lea.vmem %s0, %s218
      %s220 = smul.u32 64, %s16
      %s221 = smul.u32 2, %s16
      %p222 = scmp.lt.s32.totalorder %s221, 15
      %s223 = scalar_select %p222, %s221, 15
      %s224 = scalar_lea.vmem %s5, %s223
      %s225 = smul.u32 2, %s16
      %v227 = vld [vmem:[%s219] sm:$0xf]
      %v228 = vld [vmem:[%s219 + $0x4] sm:$0xf]
      %v229 = vld [vmem:[%s219 + $0x8] sm:$0xf]
      %v230 = vld [vmem:[%s219 + $0xc] sm:$0xf]
      %v231 = vld [vmem:[%s219 + $0x10] sm:$0xf]
      %v232 = vld [vmem:[%s219 + $0x14] sm:$0xf]
      %v233 = vld [vmem:[%s219 + $0x18] sm:$0xf]
      %v234 = vld [vmem:[%s219 + $0x1c] sm:$0xf]
      %v235 = vld [vmem:[%s219 + $0x20] sm:$0xf]
      %v236 = vld [vmem:[%s219 + $0x24] sm:$0xf]
      %v237 = vld [vmem:[%s219 + $0x28] sm:$0xf]
      %v238 = vld [vmem:[%s219 + $0x2c] sm:$0xf]
      %v239 = vld [vmem:[%s219 + $0x30] sm:$0xf]
      %v240 = vld [vmem:[%s219 + $0x34] sm:$0xf]
      %v241 = vld [vmem:[%s219 + $0x38] sm:$0xf]
      %v242 = vld [vmem:[%s219 + $0x3c] sm:$0xf]
      %v243 = vld [vmem:[%s219 + $0x40] sm:$0xf]
      %v244 = vld [vmem:[%s219 + $0x44] sm:$0xf]
      %v245 = vld [vmem:[%s219 + $0x48] sm:$0xf]
      %v246 = vld [vmem:[%s219 + $0x4c] sm:$0xf]
      %v247 = vld [vmem:[%s219 + $0x50] sm:$0xf]
      %v248 = vld [vmem:[%s219 + $0x54] sm:$0xf]
      %v249 = vld [vmem:[%s219 + $0x58] sm:$0xf]
      %v250 = vld [vmem:[%s219 + $0x5c] sm:$0xf]
      %v251 = vld [vmem:[%s219 + $0x60] sm:$0xf]
      %v252 = vld [vmem:[%s219 + $0x64] sm:$0xf]
      %v253 = vld [vmem:[%s219 + $0x68] sm:$0xf]
      %v254 = vld [vmem:[%s219 + $0x6c] sm:$0xf]
      %v255 = vld [vmem:[%s219 + $0x70] sm:$0xf]
      %v256 = vld [vmem:[%s219 + $0x74] sm:$0xf]
      %v257 = vld [vmem:[%s219 + $0x78] sm:$0xf]
      %v258 = vld [vmem:[%s219 + $0x7c] sm:$0xf]
      %v259 = vld [vmem:[%s219 + $0x80] sm:$0xf]
      %v260 = vld [vmem:[%s219 + $0x84] sm:$0xf]
      %v261 = vld [vmem:[%s219 + $0x88] sm:$0xf]
      %v262 = vld [vmem:[%s219 + $0x8c] sm:$0xf]
      %v263 = vld [vmem:[%s219 + $0x90] sm:$0xf]
      %v264 = vld [vmem:[%s219 + $0x94] sm:$0xf]
      %v265 = vld [vmem:[%s219 + $0x98] sm:$0xf]
      %v266 = vld [vmem:[%s219 + $0x9c] sm:$0xf]
      %v267 = vld [vmem:[%s219 + $0xa0] sm:$0xf]
      %v268 = vld [vmem:[%s219 + $0xa4] sm:$0xf]
      %v269 = vld [vmem:[%s219 + $0xa8] sm:$0xf]
      %v270 = vld [vmem:[%s219 + $0xac] sm:$0xf]
      %v271 = vld [vmem:[%s219 + $0xb0] sm:$0xf]
      %v272 = vld [vmem:[%s219 + $0xb4] sm:$0xf]
      %v273 = vld [vmem:[%s219 + $0xb8] sm:$0xf]
      %v274 = vld [vmem:[%s219 + $0xbc] sm:$0xf]
      %v275 = vld [vmem:[%s219 + $0xc0] sm:$0xf]
      %v276 = vld [vmem:[%s219 + $0xc4] sm:$0xf]
      %v277 = vld [vmem:[%s219 + $0xc8] sm:$0xf]
      %v278 = vld [vmem:[%s219 + $0xcc] sm:$0xf]
      %v279 = vld [vmem:[%s219 + $0xd0] sm:$0xf]
      %v280 = vld [vmem:[%s219 + $0xd4] sm:$0xf]
      %v281 = vld [vmem:[%s219 + $0xd8] sm:$0xf]
      %v282 = vld [vmem:[%s219 + $0xdc] sm:$0xf]
      %v283 = vld [vmem:[%s219 + $0xe0] sm:$0xf]
      %v284 = vld [vmem:[%s219 + $0xe4] sm:$0xf]
      %v285 = vld [vmem:[%s219 + $0xe8] sm:$0xf]
      %v286 = vld [vmem:[%s219 + $0xec] sm:$0xf]
      %v287 = vld [vmem:[%s219 + $0xf0] sm:$0xf]
      %v288 = vld [vmem:[%s219 + $0xf4] sm:$0xf]
      %v289 = vld [vmem:[%s219 + $0xf8] sm:$0xf]
      %v290 = vld [vmem:[%s219 + $0xfc] sm:$0xf]
      %v291 = vld [vmem:[%s1] sm:$0xf]
      %v292 = vld [vmem:[%s1 + $0x4] sm:$0xf]
      %v293 = vld [vmem:[%s1 + $0x8] sm:$0xf]
      %v294 = vld [vmem:[%s1 + $0xc] sm:$0x3]
      %v295 = vld [vmem:[%s2] sm:$0x1]
      %v297 = vperm.slane %v295, 0
      %v363 = vunpack.c.l.b16 %v227
      %v364 = vunpack.c.l.b16 %v228
      %v365 = vunpack.c.l.b16 %v229
      %v366 = vunpack.c.l.b16 %v230
      %v367 = vunpack.c.l.b16 %v231
      %v368 = vunpack.c.l.b16 %v232
      %v369 = vunpack.c.l.b16 %v233
      %v370 = vunpack.c.l.b16 %v234
      %v371 = vunpack.c.l.b16 %v235
      %v372 = vunpack.c.l.b16 %v236
      %v373 = vunpack.c.l.b16 %v237
      %v374 = vunpack.c.l.b16 %v238
      %v375 = vunpack.c.l.b16 %v239
      %v376 = vunpack.c.l.b16 %v240
      %v377 = vunpack.c.l.b16 %v241
      %v378 = vunpack.c.l.b16 %v242
      %v379 = vunpack.c.l.b16 %v243
      %v380 = vunpack.c.l.b16 %v244
      %v381 = vunpack.c.l.b16 %v245
      %v382 = vunpack.c.l.b16 %v246
      %v383 = vunpack.c.l.b16 %v247
      %v384 = vunpack.c.l.b16 %v248
      %v385 = vunpack.c.l.b16 %v249
      %v386 = vunpack.c.l.b16 %v250
      %v387 = vunpack.c.l.b16 %v251
      %v388 = vunpack.c.l.b16 %v252
      %v389 = vunpack.c.l.b16 %v253
      %v390 = vunpack.c.l.b16 %v254
      %v391 = vunpack.c.l.b16 %v255
      %v392 = vunpack.c.l.b16 %v256
      %v393 = vunpack.c.l.b16 %v257
      %v394 = vunpack.c.l.b16 %v258
      %v395 = vunpack.c.l.b16 %v259
      %v396 = vunpack.c.l.b16 %v260
      %v397 = vunpack.c.l.b16 %v261
      %v398 = vunpack.c.l.b16 %v262
      %v399 = vunpack.c.l.b16 %v263
      %v400 = vunpack.c.l.b16 %v264
      %v401 = vunpack.c.l.b16 %v265
      %v402 = vunpack.c.l.b16 %v266
      %v403 = vunpack.c.l.b16 %v267
      %v404 = vunpack.c.l.b16 %v268
      %v405 = vunpack.c.l.b16 %v269
      %v406 = vunpack.c.l.b16 %v270
      %v407 = vunpack.c.l.b16 %v271
      %v408 = vunpack.c.l.b16 %v272
      %v409 = vunpack.c.l.b16 %v273
      %v410 = vunpack.c.l.b16 %v274
      %v411 = vunpack.c.l.b16 %v275
      %v412 = vunpack.c.l.b16 %v276
      %v413 = vunpack.c.l.b16 %v277
      %v414 = vunpack.c.l.b16 %v278
      %v415 = vunpack.c.l.b16 %v279
      %v416 = vunpack.c.l.b16 %v280
      %v417 = vunpack.c.l.b16 %v281
      %v418 = vunpack.c.l.b16 %v282
      %v419 = vunpack.c.l.b16 %v283
      %v420 = vunpack.c.l.b16 %v284
      %v421 = vunpack.c.l.b16 %v285
      %v422 = vunpack.c.l.b16 %v286
      %v423 = vunpack.c.l.b16 %v287
      %v424 = vunpack.c.l.b16 %v288
      %v425 = vunpack.c.l.b16 %v289
      %v426 = vunpack.c.l.b16 %v290
      %v427 = vpack.c.b16 %v364, %v363
      %v428 = vpack.c.b16 %v366, %v365
      %v429 = vpack.c.b16 %v368, %v367
      %v430 = vpack.c.b16 %v370, %v369
      %v431 = vpack.c.b16 %v372, %v371
      %v432 = vpack.c.b16 %v374, %v373
      %v433 = vpack.c.b16 %v376, %v375
      %v434 = vpack.c.b16 %v378, %v377
      %v435 = vpack.c.b16 %v380, %v379
      %v436 = vpack.c.b16 %v382, %v381
      %v437 = vpack.c.b16 %v384, %v383
      %v438 = vpack.c.b16 %v386, %v385
      %v439 = vpack.c.b16 %v388, %v387
      %v440 = vpack.c.b16 %v390, %v389
      %v441 = vpack.c.b16 %v392, %v391
      %v442 = vpack.c.b16 %v394, %v393
      %v443 = vpack.c.b16 %v396, %v395
      %v444 = vpack.c.b16 %v398, %v397
      %v445 = vpack.c.b16 %v400, %v399
      %v446 = vpack.c.b16 %v402, %v401
      %v447 = vpack.c.b16 %v404, %v403
      %v448 = vpack.c.b16 %v406, %v405
      %v449 = vpack.c.b16 %v408, %v407
      %v450 = vpack.c.b16 %v410, %v409
      %v451 = vpack.c.b16 %v412, %v411
      %v452 = vpack.c.b16 %v414, %v413
      %v453 = vpack.c.b16 %v416, %v415
      %v454 = vpack.c.b16 %v418, %v417
      %v455 = vpack.c.b16 %v420, %v419
      %v456 = vpack.c.b16 %v422, %v421
      %v457 = vpack.c.b16 %v424, %v423
      %v458 = vpack.c.b16 %v426, %v425
      %v463 = vunpack.c.l.b16 %v291
      %v464 = vunpack.c.l.b16 %v292
      %v465 = vunpack.c.l.b16 %v293
      %v466 = vunpack.c.l.b16 %v294
      %v467 = vpack.c.b16 %v464, %v463
      %v468 = vpack.c.b16 %v466, %v465
      %vm470 = vcmask 220160
      %v472 = vsel %vm470, %v427, 0
      %v475 = vsel %vm470, %v428, 0
      %v478 = vsel %vm470, %v429, 0
      %v481 = vsel %vm470, %v430, 0
      %v484 = vsel %vm470, %v431, 0
      %v487 = vsel %vm470, %v432, 0
      %v490 = vsel %vm470, %v433, 0
      %v493 = vsel %vm470, %v434, 0
      %v496 = vsel %vm470, %v435, 0
      %v499 = vsel %vm470, %v436, 0
      %v502 = vsel %vm470, %v437, 0
      %v505 = vsel %vm470, %v438, 0
      %v508 = vsel %vm470, %v439, 0
      %v511 = vsel %vm470, %v440, 0
      %v514 = vsel %vm470, %v441, 0
      %v517 = vsel %vm470, %v442, 0
      %v520 = vsel %vm470, %v443, 0
      %v523 = vsel %vm470, %v444, 0
      %v526 = vsel %vm470, %v445, 0
      %v529 = vsel %vm470, %v446, 0
      %v532 = vsel %vm470, %v447, 0
      %v535 = vsel %vm470, %v448, 0
      %v538 = vsel %vm470, %v449, 0
      %v541 = vsel %vm470, %v450, 0
      %v544 = vsel %vm470, %v451, 0
      %v547 = vsel %vm470, %v452, 0
      %v550 = vsel %vm470, %v453, 0
      %v553 = vsel %vm470, %v454, 0
      %v556 = vsel %vm470, %v455, 0
      %v559 = vsel %vm470, %v456, 0
      %v562 = vsel %vm470, %v457, 0
      %v565 = vsel %vm470, %v458, 0
      %vm567 = vcmask 1044480
      %vm568 = vcmask 1045504
      %v569 = vsel %vm567, 4294967295, 65535
      %v570 = vsel %vm568, %v569, 0
      %v572 = vand.u32 %v468, %v570
      %574 = vmatpush.bf16.msra.mxu0 0
      %575 = vmatpush.bf16.msra.mxu0 0
      %576 = vmatpush.bf16.msra.mxu0 0
      %577 = vmatpush.bf16.msra.mxu0 0
      %578 = vmatpush.bf16.msra.mxu0 0
      %579 = vmatpush.bf16.msra.mxu0 0
      %580 = vmatpush.bf16.msra.mxu0 %v572
      %581 = vmatpush.bf16.msra.mxu0 %v467
      %582 = vmatmul.bf16.gmra.mxu0 %v472
      %v583 = vpop.f32.mrf.mxu0
      %v584 = vadd.f32 %v297, %v583
      %v585 = vpop.f32.mrf.mxu0
      %v586 = vadd.f32 %v297, %v585
      %587 = vmatmul.bf16.gmra.mxu0 %v475
      %v588 = vpop.f32.mrf.mxu0
      %v589 = vadd.f32 %v297, %v588
      %v590 = vpop.f32.mrf.mxu0
      %v591 = vadd.f32 %v297, %v590
      %592 = vmatmul.bf16.gmra.mxu0 %v478
      %v593 = vpop.f32.mrf.mxu0
      %v594 = vadd.f32 %v297, %v593
      %v595 = vpop.f32.mrf.mxu0
      %v596 = vadd.f32 %v297, %v595
      %597 = vmatmul.bf16.gmra.mxu0 %v481
      %v598 = vpop.f32.mrf.mxu0
      %v599 = vadd.f32 %v297, %v598
      %v600 = vpop.f32.mrf.mxu0
      %v601 = vadd.f32 %v297, %v600
      %602 = vmatmul.bf16.gmra.mxu0 %v484
      %v603 = vpop.f32.mrf.mxu0
      %v604 = vadd.f32 %v297, %v603
      %v605 = vpop.f32.mrf.mxu0
      %v606 = vadd.f32 %v297, %v605
      %607 = vmatmul.bf16.gmra.mxu0 %v487
      %v608 = vpop.f32.mrf.mxu0
      %v609 = vadd.f32 %v297, %v608
      %v610 = vpop.f32.mrf.mxu0
      %v611 = vadd.f32 %v297, %v610
      %612 = vmatmul.bf16.gmra.mxu0 %v490
      %v613 = vpop.f32.mrf.mxu0
      %v614 = vadd.f32 %v297, %v613
      %v615 = vpop.f32.mrf.mxu0
      %v616 = vadd.f32 %v297, %v615
      %617 = vmatmul.bf16.gmra.mxu0 %v493
      %v618 = vpop.f32.mrf.mxu0
      %v619 = vadd.f32 %v297, %v618
      %v620 = vpop.f32.mrf.mxu0
      %v621 = vadd.f32 %v297, %v620
      %622 = vmatmul.bf16.gmra.mxu0 %v496
      %v623 = vpop.f32.mrf.mxu0
      %v624 = vadd.f32 %v297, %v623
      %v625 = vpop.f32.mrf.mxu0
      %v626 = vadd.f32 %v297, %v625
      %627 = vmatmul.bf16.gmra.mxu0 %v499
      %v628 = vpop.f32.mrf.mxu0
      %v629 = vadd.f32 %v297, %v628
      %v630 = vpop.f32.mrf.mxu0
      %v631 = vadd.f32 %v297, %v630
      %632 = vmatmul.bf16.gmra.mxu0 %v502
      %v633 = vpop.f32.mrf.mxu0
      %v634 = vadd.f32 %v297, %v633
      %v635 = vpop.f32.mrf.mxu0
      %v636 = vadd.f32 %v297, %v635
      %637 = vmatmul.bf16.gmra.mxu0 %v505
      %v638 = vpop.f32.mrf.mxu0
      %v639 = vadd.f32 %v297, %v638
      %v640 = vpop.f32.mrf.mxu0
      %v641 = vadd.f32 %v297, %v640
      %642 = vmatmul.bf16.gmra.mxu0 %v508
      %v643 = vpop.f32.mrf.mxu0
      %v644 = vadd.f32 %v297, %v643
      %v645 = vpop.f32.mrf.mxu0
      %v646 = vadd.f32 %v297, %v645
      %647 = vmatmul.bf16.gmra.mxu0 %v511
      %v648 = vpop.f32.mrf.mxu0
      %v649 = vadd.f32 %v297, %v648
      %v650 = vpop.f32.mrf.mxu0
      %v651 = vadd.f32 %v297, %v650
      %652 = vmatmul.bf16.gmra.mxu0 %v514
      %v653 = vpop.f32.mrf.mxu0
      %v654 = vadd.f32 %v297, %v653
      %v655 = vpop.f32.mrf.mxu0
      %v656 = vadd.f32 %v297, %v655
      %657 = vmatmul.bf16.gmra.mxu0 %v517
      %v658 = vpop.f32.mrf.mxu0
      %v659 = vadd.f32 %v297, %v658
      %v660 = vpop.f32.mrf.mxu0
      %v661 = vadd.f32 %v297, %v660
      %662 = vmatmul.bf16.gmra.mxu0 %v520
      %v663 = vpop.f32.mrf.mxu0
      %v664 = vadd.f32 %v297, %v663
      %v665 = vpop.f32.mrf.mxu0
      %v666 = vadd.f32 %v297, %v665
      %667 = vmatmul.bf16.gmra.mxu0 %v523
      %v668 = vpop.f32.mrf.mxu0
      %v669 = vadd.f32 %v297, %v668
      %v670 = vpop.f32.mrf.mxu0
      %v671 = vadd.f32 %v297, %v670
      %672 = vmatmul.bf16.gmra.mxu0 %v526
      %v673 = vpop.f32.mrf.mxu0
      %v674 = vadd.f32 %v297, %v673
      %v675 = vpop.f32.mrf.mxu0
      %v676 = vadd.f32 %v297, %v675
      %677 = vmatmul.bf16.gmra.mxu0 %v529
      %v678 = vpop.f32.mrf.mxu0
      %v679 = vadd.f32 %v297, %v678
      %v680 = vpop.f32.mrf.mxu0
      %v681 = vadd.f32 %v297, %v680
      %682 = vmatmul.bf16.gmra.mxu0 %v532
      %v683 = vpop.f32.mrf.mxu0
      %v684 = vadd.f32 %v297, %v683
      %v685 = vpop.f32.mrf.mxu0
      %v686 = vadd.f32 %v297, %v685
      %687 = vmatmul.bf16.gmra.mxu0 %v535
      %v688 = vpop.f32.mrf.mxu0
      %v689 = vadd.f32 %v297, %v688
      %v690 = vpop.f32.mrf.mxu0
      %v691 = vadd.f32 %v297, %v690
      %692 = vmatmul.bf16.gmra.mxu0 %v538
      %v693 = vpop.f32.mrf.mxu0
      %v694 = vadd.f32 %v297, %v693
      %v695 = vpop.f32.mrf.mxu0
      %v696 = vadd.f32 %v297, %v695
      %697 = vmatmul.bf16.gmra.mxu0 %v541
      %v698 = vpop.f32.mrf.mxu0
      %v699 = vadd.f32 %v297, %v698
      %v700 = vpop.f32.mrf.mxu0
      %v701 = vadd.f32 %v297, %v700
      %702 = vmatmul.bf16.gmra.mxu0 %v544
      %v703 = vpop.f32.mrf.mxu0
      %v704 = vadd.f32 %v297, %v703
      %v705 = vpop.f32.mrf.mxu0
      %v706 = vadd.f32 %v297, %v705
      %707 = vmatmul.bf16.gmra.mxu0 %v547
      %v708 = vpop.f32.mrf.mxu0
      %v709 = vadd.f32 %v297, %v708
      %v710 = vpop.f32.mrf.mxu0
      %v711 = vadd.f32 %v297, %v710
      %712 = vmatmul.bf16.gmra.mxu0 %v550
      %v713 = vpop.f32.mrf.mxu0
      %v714 = vadd.f32 %v297, %v713
      %v715 = vpop.f32.mrf.mxu0
      %v716 = vadd.f32 %v297, %v715
      %717 = vmatmul.bf16.gmra.mxu0 %v553
      %v718 = vpop.f32.mrf.mxu0
      %v719 = vadd.f32 %v297, %v718
      %v720 = vpop.f32.mrf.mxu0
      %v721 = vadd.f32 %v297, %v720
      %722 = vmatmul.bf16.gmra.mxu0 %v556
      %v723 = vpop.f32.mrf.mxu0
      %v724 = vadd.f32 %v297, %v723
      %v725 = vpop.f32.mrf.mxu0
      %v726 = vadd.f32 %v297, %v725
      %727 = vmatmul.bf16.gmra.mxu0 %v559
      %v728 = vpop.f32.mrf.mxu0
      %v729 = vadd.f32 %v297, %v728
      %v730 = vpop.f32.mrf.mxu0
      %v731 = vadd.f32 %v297, %v730
      %732 = vmatmul.bf16.gmra.mxu0 %v562
      %v733 = vpop.f32.mrf.mxu0
      %v734 = vadd.f32 %v297, %v733
      %v735 = vpop.f32.mrf.mxu0
      %v736 = vadd.f32 %v297, %v735
      %737 = vmatmul.bf16.gmra.mxu0 %v565
      %v738 = vpop.f32.mrf.mxu0
      %v739 = vadd.f32 %v297, %v738
      %v740 = vpop.f32.mrf.mxu0
      %v741 = vadd.f32 %v297, %v740
      %742 = vdwg.mxu0
      %v743 = vmax.f32 %v584, 0.0
      %v744 = vmax.f32 %v586, 0.0
      %v745 = vmax.f32 %v589, 0.0
      %v746 = vmax.f32 %v591, 0.0
      %v747 = vmax.f32 %v594, 0.0
      %v748 = vmax.f32 %v596, 0.0
      %v749 = vmax.f32 %v599, 0.0
      %v750 = vmax.f32 %v601, 0.0
      %v751 = vmax.f32 %v604, 0.0
      %v752 = vmax.f32 %v606, 0.0
      %v753 = vmax.f32 %v609, 0.0
      %v754 = vmax.f32 %v611, 0.0
      %v755 = vmax.f32 %v614, 0.0
      %v756 = vmax.f32 %v616, 0.0
      %v757 = vmax.f32 %v619, 0.0
      %v758 = vmax.f32 %v621, 0.0
      %v759 = vmax.f32 %v624, 0.0
      %v760 = vmax.f32 %v626, 0.0
      %v761 = vmax.f32 %v629, 0.0
      %v762 = vmax.f32 %v631, 0.0
      %v763 = vmax.f32 %v634, 0.0
      %v764 = vmax.f32 %v636, 0.0
      %v765 = vmax.f32 %v639, 0.0
      %v766 = vmax.f32 %v641, 0.0
      %v767 = vmax.f32 %v644, 0.0
      %v768 = vmax.f32 %v646, 0.0
      %v769 = vmax.f32 %v649, 0.0
      %v770 = vmax.f32 %v651, 0.0
      %v771 = vmax.f32 %v654, 0.0
      %v772 = vmax.f32 %v656, 0.0
      %v773 = vmax.f32 %v659, 0.0
      %v774 = vmax.f32 %v661, 0.0
      %v775 = vmax.f32 %v664, 0.0
      %v776 = vmax.f32 %v666, 0.0
      %v777 = vmax.f32 %v669, 0.0
      %v778 = vmax.f32 %v671, 0.0
      %v779 = vmax.f32 %v674, 0.0
      %v780 = vmax.f32 %v676, 0.0
      %v781 = vmax.f32 %v679, 0.0
      %v782 = vmax.f32 %v681, 0.0
      %v783 = vmax.f32 %v684, 0.0
      %v784 = vmax.f32 %v686, 0.0
      %v785 = vmax.f32 %v689, 0.0
      %v786 = vmax.f32 %v691, 0.0
      %v787 = vmax.f32 %v694, 0.0
      %v788 = vmax.f32 %v696, 0.0
      %v789 = vmax.f32 %v699, 0.0
      %v790 = vmax.f32 %v701, 0.0
      %v791 = vmax.f32 %v704, 0.0
      %v792 = vmax.f32 %v706, 0.0
      %v793 = vmax.f32 %v709, 0.0
      %v794 = vmax.f32 %v711, 0.0
      %v795 = vmax.f32 %v714, 0.0
      %v796 = vmax.f32 %v716, 0.0
      %v797 = vmax.f32 %v719, 0.0
      %v798 = vmax.f32 %v721, 0.0
      %v799 = vmax.f32 %v724, 0.0
      %v800 = vmax.f32 %v726, 0.0
      %v801 = vmax.f32 %v729, 0.0
      %v802 = vmax.f32 %v731, 0.0
      %v803 = vmax.f32 %v734, 0.0
      %v804 = vmax.f32 %v736, 0.0
      %v805 = vmax.f32 %v739, 0.0
      %v806 = vmax.f32 %v741, 0.0
      %vm807 = vcmask 130048
      %v808 = vsel %vm807, %v743, 0.0
      %v809 = vsel %vm807, %v744, 0.0
      %v810 = vadd.f32 %v808, %v809
      %v811 = vsel %vm807, %v745, 0.0
      %v812 = vadd.f32 %v810, %v811
      %v813 = vsel %vm807, %v746, 0.0
      %v814 = vadd.f32 %v812, %v813
      %v815 = vsel %vm807, %v747, 0.0
      %v816 = vadd.f32 %v814, %v815
      %v817 = vsel %vm807, %v748, 0.0
      %v818 = vadd.f32 %v816, %v817
      %v819 = vsel %vm807, %v749, 0.0
      %v820 = vadd.f32 %v818, %v819
      %v821 = vsel %vm807, %v750, 0.0
      %v822 = vadd.f32 %v820, %v821
      %v823 = vsel %vm807, %v751, 0.0
      %v824 = vadd.f32 %v822, %v823
      %v825 = vsel %vm807, %v752, 0.0
      %v826 = vadd.f32 %v824, %v825
      %v827 = vsel %vm807, %v753, 0.0
      %v828 = vadd.f32 %v826, %v827
      %v829 = vsel %vm807, %v754, 0.0
      %v830 = vadd.f32 %v828, %v829
      %v831 = vsel %vm807, %v755, 0.0
      %v832 = vadd.f32 %v830, %v831
      %v833 = vsel %vm807, %v756, 0.0
      %v834 = vadd.f32 %v832, %v833
      %v835 = vsel %vm807, %v757, 0.0
      %v836 = vadd.f32 %v834, %v835
      %v837 = vsel %vm807, %v758, 0.0
      %v838 = vadd.f32 %v836, %v837
      %v839 = vsel %vm807, %v759, 0.0
      %v840 = vadd.f32 %v838, %v839
      %v841 = vsel %vm807, %v760, 0.0
      %v842 = vadd.f32 %v840, %v841
      %v843 = vsel %vm807, %v761, 0.0
      %v844 = vadd.f32 %v842, %v843
      %v845 = vsel %vm807, %v762, 0.0
      %v846 = vadd.f32 %v844, %v845
      %v847 = vsel %vm807, %v763, 0.0
      %v848 = vadd.f32 %v846, %v847
      %v849 = vsel %vm807, %v764, 0.0
      %v850 = vadd.f32 %v848, %v849
      %v851 = vsel %vm807, %v765, 0.0
      %v852 = vadd.f32 %v850, %v851
      %v853 = vsel %vm807, %v766, 0.0
      %v854 = vadd.f32 %v852, %v853
      %v855 = vsel %vm807, %v767, 0.0
      %v856 = vadd.f32 %v854, %v855
      %v857 = vsel %vm807, %v768, 0.0
      %v858 = vadd.f32 %v856, %v857
      %v859 = vsel %vm807, %v769, 0.0
      %v860 = vadd.f32 %v858, %v859
      %v861 = vsel %vm807, %v770, 0.0
      %v862 = vadd.f32 %v860, %v861
      %v863 = vsel %vm807, %v771, 0.0
      %v864 = vadd.f32 %v862, %v863
      %v865 = vsel %vm807, %v772, 0.0
      %v866 = vadd.f32 %v864, %v865
      %v867 = vsel %vm807, %v773, 0.0
      %v868 = vadd.f32 %v866, %v867
      %v869 = vsel %vm807, %v774, 0.0
      %v870 = vadd.f32 %v868, %v869
      %v871 = vrot.slane %v870, 4
      %v872 = vadd.f32 %v870, %v871
      %v873 = vrot.slane %v872, 2
      %v874 = vadd.f32 %v872, %v873
      %v875 = vrot.slane %v874, 1
      %v876 = vadd.f32 %v874, %v875
      %v877 = vsel %vm807, %v775, 0.0
      %v878 = vsel %vm807, %v776, 0.0
      %v879 = vadd.f32 %v877, %v878
      %v880 = vsel %vm807, %v777, 0.0
      %v881 = vadd.f32 %v879, %v880
      %v882 = vsel %vm807, %v778, 0.0
      %v883 = vadd.f32 %v881, %v882
      %v884 = vsel %vm807, %v779, 0.0
      %v885 = vadd.f32 %v883, %v884
      %v886 = vsel %vm807, %v780, 0.0
      %v887 = vadd.f32 %v885, %v886
      %v888 = vsel %vm807, %v781, 0.0
      %v889 = vadd.f32 %v887, %v888
      %v890 = vsel %vm807, %v782, 0.0
      %v891 = vadd.f32 %v889, %v890
      %v892 = vsel %vm807, %v783, 0.0
      %v893 = vadd.f32 %v891, %v892
      %v894 = vsel %vm807, %v784, 0.0
      %v895 = vadd.f32 %v893, %v894
      %v896 = vsel %vm807, %v785, 0.0
      %v897 = vadd.f32 %v895, %v896
      %v898 = vsel %vm807, %v786, 0.0
      %v899 = vadd.f32 %v897, %v898
      %v900 = vsel %vm807, %v787, 0.0
      %v901 = vadd.f32 %v899, %v900
      %v902 = vsel %vm807, %v788, 0.0
      %v903 = vadd.f32 %v901, %v902
      %v904 = vsel %vm807, %v789, 0.0
      %v905 = vadd.f32 %v903, %v904
      %v906 = vsel %vm807, %v790, 0.0
      %v907 = vadd.f32 %v905, %v906
      %v908 = vsel %vm807, %v791, 0.0
      %v909 = vadd.f32 %v907, %v908
      %v910 = vsel %vm807, %v792, 0.0
      %v911 = vadd.f32 %v909, %v910
      %v912 = vsel %vm807, %v793, 0.0
      %v913 = vadd.f32 %v911, %v912
      %v914 = vsel %vm807, %v794, 0.0
      %v915 = vadd.f32 %v913, %v914
      %v916 = vsel %vm807, %v795, 0.0
      %v917 = vadd.f32 %v915, %v916
      %v918 = vsel %vm807, %v796, 0.0
      %v919 = vadd.f32 %v917, %v918
      %v920 = vsel %vm807, %v797, 0.0
      %v921 = vadd.f32 %v919, %v920
      %v922 = vsel %vm807, %v798, 0.0
      %v923 = vadd.f32 %v921, %v922
      %v924 = vsel %vm807, %v799, 0.0
      %v925 = vadd.f32 %v923, %v924
      %v926 = vsel %vm807, %v800, 0.0
      %v927 = vadd.f32 %v925, %v926
      %v928 = vsel %vm807, %v801, 0.0
      %v929 = vadd.f32 %v927, %v928
      %v930 = vsel %vm807, %v802, 0.0
      %v931 = vadd.f32 %v929, %v930
      %v932 = vsel %vm807, %v803, 0.0
      %v933 = vadd.f32 %v931, %v932
      %v934 = vsel %vm807, %v804, 0.0
      %v935 = vadd.f32 %v933, %v934
      %v936 = vsel %vm807, %v805, 0.0
      %v937 = vadd.f32 %v935, %v936
      %v938 = vsel %vm807, %v806, 0.0
      %v939 = vadd.f32 %v937, %v938
      %v940 = vrot.slane %v939, 4
      %v941 = vadd.f32 %v939, %v940
      %v942 = vrot.slane %v941, 2
      %v943 = vadd.f32 %v941, %v942
      %v944 = vrot.slane %v943, 1
      %v945 = vadd.f32 %v943, %v944
      %v946 = vrcp.pop 256.0
      %v947 = vmul.f32 256.0, %v946
      %v948 = vsub.f32 1.0, %v947
      %v949 = vmul.f32 %v946, %v948
      %v950 = vadd.f32 %v946, %v949
      %vm951 = vweird.f32 %v946
      %v952 = vsel %vm951, %v946, %v950
      %v953 = vmul.f32 %v876, %v952
      %v954 = vmul.f32 %v945, %v952
      %v955 = vld [vmem:[%s3] sm:$0xff]
      %v956 = vld [vmem:[%s3 + $0x8] sm:$0xff]
      %v957 = vld [vmem:[%s4] sm:$0x1]
      %v959 = vperm.slane %v957, 0
      %vm963 = vcmask 1041409
      %v964 = vsel %vm963, %v954, %v953
      %v965 = vsel %vm807, %v964, 0
      %967 = vmatpush.msra.mxu0 0.0
      %968 = vmatpush.msra.mxu0 0.0
      %969 = vmatpush.msra.mxu0 0.0
      %970 = vmatpush.msra.mxu0 0.0
      %971 = vmatpush.msra.mxu0 0.0
      %972 = vmatpush.msra.mxu0 0.0
      %973 = vmatpush.msra.mxu0 0.0
      %974 = vmatpush.msra.mxu0 0.0
      %975 = vmatpush.msra.mxu0 0.0
      %976 = vmatpush.msra.mxu0 0.0
      %977 = vmatpush.msra.mxu0 0.0
      %978 = vmatpush.msra.mxu0 0.0
      %979 = vmatpush.msra.mxu0 0.0
      %980 = vmatpush.msra.mxu0 0.0
      %981 = vmatpush.msra.mxu0 %v956
      %982 = vmatpush.msra.mxu0 %v955
      %983 = vmatmul.f32.gmra.mxu0 %v965
      %v984 = vpop.f32.mrf.mxu0
      %v985 = vadd.f32 %v959, %v984
      %986 = vdwg.mxu0
      %v988 = vrot.slane %v985, 1
      %vm990 = vcmask 73728
      %991 = vst.msk [vmem:[%s224] sm:$0x1] %vm990, %v985
      %992 = vst.msk [vmem:[%s224 + $0x1] sm:$0x1] %vm990, %v988
      %s993 = smul.u32 2, %s16
      %p994 = scmp.lt.s32.totalorder %s993, 15
      %s995 = scalar_select %p994, %s993, 15
      %s996 = scalar_lea.vmem %s5, %s995
      // Predicated region
      $region41: #{forward.4} parent=39 // pred_check
        %p997 = pneg %p144
      $region42: #{forward.4} parent=39 // pred_check_branch
        %999 = sbr.rel (%p997) target = $region44
      $region43: #{forward.4} parent=39 // pred_region
        %s1000 = smul.u32 2, %s16
      $region44: #{forward.4} parent=39 // pred_fallthru
        _
    $region40: #{forward.4} parent=5 // pred_fallthru
      _
    %p1001 = scmp.le.s32.totalorder 2, %s11
    // Predicated region
    $region45: #{forward.4} parent=5 // pred_check
      %p1002 = pneg %p1001
    $region46: #{forward.4} parent=5 // pred_check_branch
      %1004 = sbr.rel (%p1002) target = $region48
    $region47: #{forward.4} parent=5 // pred_region
      %s1005 = ssub.s32 %s11, 2
      // Predicated region
      $region49: #{forward.4} parent=47 // pred_check
        %p1006 = pneg %p150
      $region50: #{forward.4} parent=47 // pred_check_branch
        %1008 = sbr.rel (%p1006) target = $region52
      $region51: #{forward.4} parent=47 // pred_region
        %s1009 = smul.u32 2, %s17
        %p1010 = scmp.lt.s32.totalorder %s1009, 15
        %s1011 = scalar_select %p1010, %s1009, 15
        %s1012 = scalar_lea.vmem %s5, %s1011
      $region52: #{forward.4} parent=47 // pred_fallthru
        _
    $region48: #{forward.4} parent=5 // pred_fallthru
      _
  $region6: #{forward.4} parent=0 // loop_footer
    %s15 = sadd.s32 1, %s11
  $region7: #{forward.4} parent=0 // loop_footer_branch
    %10 = sbr.rel target = $region3
  $region8: #{forward.4} parent=0 // loop_exit
    _

// kernel: forward.5
$region0: #{forward.5}
  #allocation0 [shape = 'u32[]', space=smem, size = 0x4, offset = 0x4, fixed_abs, tag = 'smem constant byte address 0x4 - core index']
  #allocation1 [shape = 'u32[72,128]{1,0:T(1,128)}', space=vmem, size = 0x9000, scoped, tag = 'internal scratch']
  %s0 = inlined_call_operand.vmem [shape: f32[8,2,10], index: 0, kind: input, shape index: {}]
  %s1 = inlined_call_operand.vmem [shape: f32[10,128], index: 1, kind: input, shape index: {}]
  %s2 = inlined_call_operand.vmem [shape: f32[32,128], index: 2, kind: input, shape index: {}]
  %s3 = inlined_call_operand.vmem [shape: f32[1,128], index: 3, kind: input, shape index: {}]
  %s4 = inlined_call_operand.vmem [shape: f32[32,128], index: 4, kind: input, shape index: {}]
  %s5 = inlined_call_operand.vmem [shape: f32[32,128], index: 5, kind: input, shape index: {}]
  %s6 = inlined_call_operand.vmem [shape: f32[1,128], index: 6, kind: input, shape index: {}]
  %s7 = inlined_call_operand.vmem [shape: f32[32,8], index: 7, kind: input, shape index: {}]
  %s8 = inlined_call_operand.vmem [shape: f32[1,8], index: 8, kind: input, shape index: {}]
  %s9 = inlined_call_operand.vmem [shape: f32[2,8], index: 9, kind: output, shape index: {}]
  %s10 = sld [smem:[#allocation0]]
  $region46: #{forward.5} parent=0
    _
  %s12 = ssub.s32 1, %s10
  %s13 = scalar_select 0, %s12, %s10
  // Predicated region
  $region2: #{forward.5} parent=0 // pred_check
    _
  $region3: #{forward.5} parent=0 // pred_check_branch
    %15 = sbr.rel (0) target = $region5
  $region4: #{forward.5} parent=0 // pred_region
    _
  $region5: #{forward.5} parent=0 // pred_fallthru
    _
  // Predicated region
  $region6: #{forward.5} parent=0 // pred_check
    _
  $region7: #{forward.5} parent=0 // pred_check_branch
    %17 = sbr.rel (0) target = $region9
  $region8: #{forward.5} parent=0 // pred_region
    _
  $region9: #{forward.5} parent=0 // pred_fallthru
    _
  // Predicated region
  $region10: #{forward.5} parent=0 // pred_check
    _
  $region11: #{forward.5} parent=0 // pred_check_branch
    %19 = sbr.rel (0) target = $region13
  $region12: #{forward.5} parent=0 // pred_region
    _
  $region13: #{forward.5} parent=0 // pred_fallthru
    _
  // Predicated region
  $region14: #{forward.5} parent=0 // pred_check
    _
  $region15: #{forward.5} parent=0 // pred_check_branch
    %21 = sbr.rel (0) target = $region17
  $region16: #{forward.5} parent=0 // pred_region
    _
  $region17: #{forward.5} parent=0 // pred_fallthru
    _
  // Predicated region
  $region18: #{forward.5} parent=0 // pred_check
    _
  $region19: #{forward.5} parent=0 // pred_check_branch
    %23 = sbr.rel (0) target = $region21
  $region20: #{forward.5} parent=0 // pred_region
    _
  $region21: #{forward.5} parent=0 // pred_fallthru
    _
  // Predicated region
  $region22: #{forward.5} parent=0 // pred_check
    _
  $region23: #{forward.5} parent=0 // pred_check_branch
    %25 = sbr.rel (0) target = $region25
  $region24: #{forward.5} parent=0 // pred_region
    _
  $region25: #{forward.5} parent=0 // pred_fallthru
    _
  // Predicated region
  $region26: #{forward.5} parent=0 // pred_check
    _
  $region27: #{forward.5} parent=0 // pred_check_branch
    %27 = sbr.rel (0) target = $region29
  $region28: #{forward.5} parent=0 // pred_region
    _
  $region29: #{forward.5} parent=0 // pred_fallthru
    _
  // Predicated region
  $region30: #{forward.5} parent=0 // pred_check
    _
  $region31: #{forward.5} parent=0 // pred_check_branch
    %29 = sbr.rel (0) target = $region33
  $region32: #{forward.5} parent=0 // pred_region
    _
  $region33: #{forward.5} parent=0 // pred_fallthru
    _
  // Predicated region
  $region34: #{forward.5} parent=0 // pred_check
    _
  $region35: #{forward.5} parent=0 // pred_check_branch
    %31 = sbr.rel (0) target = $region37
  $region36: #{forward.5} parent=0 // pred_region
    _
  $region37: #{forward.5} parent=0 // pred_fallthru
    _
  %v32 = vld [vmem:[%s1] sm:$0xff]
  %v33 = vld [vmem:[%s1 + $0x8] sm:$0x3]
  %v34 = vld [vmem:[%s2] sm:$0xff]
  %v35 = vld [vmem:[%s2 + $0x8] sm:$0xff]
  %v36 = vld [vmem:[%s2 + $0x10] sm:$0xff]
  %v37 = vld [vmem:[%s2 + $0x18] sm:$0xff]
  %v38 = vld [vmem:[%s3] sm:$0x1]
  %v39 = vld [vmem:[%s4] sm:$0xff]
  %v40 = vld [vmem:[%s4 + $0x8] sm:$0xff]
  %v41 = vld [vmem:[%s4 + $0x10] sm:$0xff]
  %v42 = vld [vmem:[%s4 + $0x18] sm:$0xff]
  %v43 = vld [vmem:[%s5] sm:$0xff]
  %v44 = vld [vmem:[%s5 + $0x8] sm:$0xff]
  %v45 = vld [vmem:[%s5 + $0x10] sm:$0xff]
  %v46 = vld [vmem:[%s5 + $0x18] sm:$0xff]
  %v47 = vld [vmem:[%s6] sm:$0x1]
  %v48 = vld [vmem:[%s0] sm:$0x3]
  %vm49 = vcmask 261120
  %v51 = vsel %vm49, 0.0, 0
  %53 = vmatpush.msra.mxu0 0.0
  %54 = vmatpush.msra.mxu0 0.0
  %55 = vmatpush.msra.mxu0 0.0
  %56 = vmatpush.msra.mxu0 0.0
  %57 = vmatpush.msra.mxu0 0.0
  %58 = vmatpush.msra.mxu0 0.0
  %59 = vmatpush.msra.mxu0 0.0
  %60 = vmatpush.msra.mxu0 0.0
  %61 = vmatpush.msra.mxu0 0.0
  %62 = vmatpush.msra.mxu0 0.0
  %63 = vmatpush.msra.mxu0 0.0
  %64 = vmatpush.msra.mxu0 0.0
  %65 = vmatpush.msra.mxu0 %v37
  %66 = vmatpush.msra.mxu0 %v36
  %67 = vmatpush.msra.mxu0 %v35
  %68 = vmatpush.msra.mxu0 %v34
  %69 = vmatmul.f32.gmra.mxu0 %v51
  %v70 = vpop.f32.mrf.mxu0
  %v71 = vadd.f32 0.0, %v70
  %72 = vdwg.mxu0
  %vm73 = vcmask 80896
  %v75 = vsel %vm73, %v48, 0
  %vm77 = vcmask 1041408
  %v79 = vsel %vm77, %v33, 0
  %81 = vmatpush.msra.mxu0 0.0
  %82 = vmatpush.msra.mxu0 0.0
  %83 = vmatpush.msra.mxu0 0.0
  %84 = vmatpush.msra.mxu0 0.0
  %85 = vmatpush.msra.mxu0 0.0
  %86 = vmatpush.msra.mxu0 0.0
  %87 = vmatpush.msra.mxu0 0.0
  %88 = vmatpush.msra.mxu0 0.0
  %89 = vmatpush.msra.mxu0 0.0
  %90 = vmatpush.msra.mxu0 0.0
  %91 = vmatpush.msra.mxu0 0.0
  %92 = vmatpush.msra.mxu0 0.0
  %93 = vmatpush.msra.mxu0 0.0
  %94 = vmatpush.msra.mxu0 0.0
  %95 = vmatpush.msra.mxu0 %v79
  %96 = vmatpush.msra.mxu0 %v32
  %97 = vmatmul.f32.gmra.mxu0 %v75
  %v98 = vpop.f32.mrf.mxu0
  %v99 = vadd.f32 %v71, %v98
  %100 = vdwg.mxu0
  %v102 = vperm.slane %v38, 0
  %v104 = vadd.f32 %v99, %v102
  %v105 = vxor.u32 %v104, 2147483648
  %v106 = vmul.f32 %v105, 1.442695
  %v107 = vpow.pop %v106
  %v108 = vadd.f32 %v107, 1.0
  %v109 = vrcp.pop %v108
  %v110 = vmul.f32 %v108, %v109
  %v111 = vsub.f32 1.0, %v110
  %v112 = vmul.f32 %v109, %v111
  %v113 = vadd.f32 %v109, %v112
  %vm114 = vweird.f32 %v108
  %vm115 = vweird.f32 %v109
  %vm116 = vmor %vm114, %vm115
  %v117 = vsel %vm116, %v109, %v113
  %v118 = vand.u32 2147483647, %v108
  %vm119 = vcmp.eq.f32.partialorder %v118, 8.507059e+37
  %v120 = vand.u32 %v108, 2147483648
  %v121 = vor.u32 1.1754944e-38, %v120
  %v122 = vsel %vm119, %v121, %v117
  %v123 = vmul.f32 1.0, %v122
  %v124 = vtanh.pop %v104
  %v125 = vmul.f32 %v123, 0.0
  %127 = vrot.lane.b32.xlu0 %v124, 64
  %v128 = vpop.permute.xlu0 %127
  %v130 = vmul.f32 %v123, %v128
  %132 = vrot.lane.b32.xlu0 %v130, 32
  %v133 = vpop.permute.xlu0 %132
  %v135 = vadd.f32 %v125, %v133
  %v136 = vtanh.pop %v135
  %138 = vrot.lane.b32.xlu0 %v136, 64
  %v139 = vpop.permute.xlu0 %138
  %v141 = vmul.f32 %v123, %v139
  %142 = vmatpush.msra.mxu0 0.0
  %143 = vmatpush.msra.mxu0 0.0
  %144 = vmatpush.msra.mxu0 0.0
  %145 = vmatpush.msra.mxu0 0.0
  %146 = vmatpush.msra.mxu0 0.0
  %147 = vmatpush.msra.mxu0 0.0
  %148 = vmatpush.msra.mxu0 0.0
  %149 = vmatpush.msra.mxu0 0.0
  %150 = vmatpush.msra.mxu0 0.0
  %151 = vmatpush.msra.mxu0 0.0
  %152 = vmatpush.msra.mxu0 0.0
  %153 = vmatpush.msra.mxu0 0.0
  %154 = vmatpush.msra.mxu0 %v46
  %155 = vmatpush.msra.mxu0 %v45
  %156 = vmatpush.msra.mxu0 %v44
  %157 = vmatpush.msra.mxu0 %v43
  %158 = vmatmul.f32.gmra.mxu0 %v51
  %v159 = vpop.f32.mrf.mxu0
  %v160 = vadd.f32 0.0, %v159
  %161 = vdwg.mxu0
  %163 = vrot.lane.b32.xlu0 %v141, 32
  %v164 = vpop.permute.xlu0 %163
  %v165 = vsel %vm49, %v164, 0
  %167 = vmatpush.msra.mxu0 0.0
  %168 = vmatpush.msra.mxu0 0.0
  %169 = vmatpush.msra.mxu0 0.0
  %170 = vmatpush.msra.mxu0 0.0
  %171 = vmatpush.msra.mxu0 0.0
  %172 = vmatpush.msra.mxu0 0.0
  %173 = vmatpush.msra.mxu0 0.0
  %174 = vmatpush.msra.mxu0 0.0
  %175 = vmatpush.msra.mxu0 0.0
  %176 = vmatpush.msra.mxu0 0.0
  %177 = vmatpush.msra.mxu0 0.0
  %178 = vmatpush.msra.mxu0 0.0
  %179 = vmatpush.msra.mxu0 %v42
  %180 = vmatpush.msra.mxu0 %v41
  %181 = vmatpush.msra.mxu0 %v40
  %182 = vmatpush.msra.mxu0 %v39
  %183 = vmatmul.f32.gmra.mxu0 %v165
  %v184 = vpop.f32.mrf.mxu0
  %v185 = vadd.f32 %v160, %v184
  %186 = vdwg.mxu0
  %v188 = vperm.slane %v47, 0
  %v190 = vadd.f32 %v185, %v188
  %v191 = vxor.u32 %v190, 2147483648
  %v192 = vmul.f32 %v191, 1.442695
  %v193 = vpow.pop %v192
  %v194 = vadd.f32 %v193, 1.0
  %v195 = vrcp.pop %v194
  %v196 = vmul.f32 %v194, %v195
  %v197 = vsub.f32 1.0, %v196
  %v198 = vmul.f32 %v195, %v197
  %v199 = vadd.f32 %v195, %v198
  %vm200 = vweird.f32 %v194
  %vm201 = vweird.f32 %v195
  %vm202 = vmor %vm200, %vm201
  %v203 = vsel %vm202, %v195, %v199
  %v204 = vand.u32 2147483647, %v194
  %vm205 = vcmp.eq.f32.partialorder %v204, 8.507059e+37
  %v206 = vand.u32 %v194, 2147483648
  %v207 = vor.u32 1.1754944e-38, %v206
  %v208 = vsel %vm205, %v207, %v203
  %v209 = vmul.f32 1.0, %v208
  %v210 = vtanh.pop %v190
  %v211 = vmul.f32 %v209, 0.0
  %213 = vrot.lane.b32.xlu0 %v210, 64
  %v214 = vpop.permute.xlu0 %213
  %v216 = vmul.f32 %v209, %v214
  %218 = vrot.lane.b32.xlu0 %v216, 32
  %v219 = vpop.permute.xlu0 %218
  %v221 = vadd.f32 %v211, %v219
  %v222 = vtanh.pop %v221
  %224 = vrot.lane.b32.xlu0 %v222, 64
  %v225 = vpop.permute.xlu0 %224
  %v227 = vmul.f32 %v209, %v225
  %s228 = scalar_lea.vmem %s0, 2
  %v229 = vld [vmem:[%s228] sm:$0x3]
  %230 = vmatpush.msra.mxu0 0.0
  %231 = vmatpush.msra.mxu0 0.0
  %232 = vmatpush.msra.mxu0 0.0
  %233 = vmatpush.msra.mxu0 0.0
  %234 = vmatpush.msra.mxu0 0.0
  %235 = vmatpush.msra.mxu0 0.0
  %236 = vmatpush.msra.mxu0 0.0
  %237 = vmatpush.msra.mxu0 0.0
  %238 = vmatpush.msra.mxu0 0.0
  %239 = vmatpush.msra.mxu0 0.0
  %240 = vmatpush.msra.mxu0 0.0
  %241 = vmatpush.msra.mxu0 0.0
  %242 = vmatpush.msra.mxu0 %v37
  %243 = vmatpush.msra.mxu0 %v36
  %244 = vmatpush.msra.mxu0 %v35
  %245 = vmatpush.msra.mxu0 %v34
  %246 = vmatmul.f32.gmra.mxu0 %v165
  %v247 = vpop.f32.mrf.mxu0
  %v248 = vadd.f32 0.0, %v247
  %249 = vdwg.mxu0
  %v251 = vsel %vm73, %v229, 0
  %253 = vmatpush.msra.mxu0 0.0
  %254 = vmatpush.msra.mxu0 0.0
  %255 = vmatpush.msra.mxu0 0.0
  %256 = vmatpush.msra.mxu0 0.0
  %257 = vmatpush.msra.mxu0 0.0
  %258 = vmatpush.msra.mxu0 0.0
  %259 = vmatpush.msra.mxu0 0.0
  %260 = vmatpush.msra.mxu0 0.0
  %261 = vmatpush.msra.mxu0 0.0
  %262 = vmatpush.msra.mxu0 0.0
  %263 = vmatpush.msra.mxu0 0.0
  %264 = vmatpush.msra.mxu0 0.0
  %265 = vmatpush.msra.mxu0 0.0
  %266 = vmatpush.msra.mxu0 0.0
  %267 = vmatpush.msra.mxu0 %v79
  %268 = vmatpush.msra.mxu0 %v32
  %269 = vmatmul.f32.gmra.mxu0 %v251
  %v270 = vpop.f32.mrf.mxu0
  %v271 = vadd.f32 %v248, %v270
  %272 = vdwg.mxu0
  %v273 = vadd.f32 %v271, %v102
  %v274 = vxor.u32 %v273, 2147483648
  %v275 = vmul.f32 %v274, 1.442695
  %v276 = vpow.pop %v275
  %v277 = vadd.f32 %v276, 1.0
  %v278 = vrcp.pop %v277
  %v279 = vmul.f32 %v277, %v278
  %v280 = vsub.f32 1.0, %v279
  %v281 = vmul.f32 %v278, %v280
  %v282 = vadd.f32 %v278, %v281
  %vm283 = vweird.f32 %v277
  %vm284 = vweird.f32 %v278
  %vm285 = vmor %vm283, %vm284
  %v286 = vsel %vm285, %v278, %v282
  %v287 = vand.u32 2147483647, %v277
  %vm288 = vcmp.eq.f32.partialorder %v287, 8.507059e+37
  %v289 = vand.u32 %v277, 2147483648
  %v290 = vor.u32 1.1754944e-38, %v289
  %v291 = vsel %vm288, %v290, %v286
  %v292 = vmul.f32 1.0, %v291
  %v293 = vtanh.pop %v273
  %v294 = vmul.f32 %v292, %v135
  %296 = vrot.lane.b32.xlu0 %v293, 64
  %v297 = vpop.permute.xlu0 %296
  %v299 = vmul.f32 %v292, %v297
  %301 = vrot.lane.b32.xlu0 %v299, 32
  %v302 = vpop.permute.xlu0 %301
  %v304 = vadd.f32 %v294, %v302
  %v305 = vtanh.pop %v304
  %307 = vrot.lane.b32.xlu0 %v305, 64
  %v308 = vpop.permute.xlu0 %307
  %v310 = vmul.f32 %v292, %v308
  %312 = vrot.lane.b32.xlu0 %v227, 32
  %v313 = vpop.permute.xlu0 %312
  %v314 = vsel %vm49, %v313, 0
  %316 = vmatpush.msra.mxu0 0.0
  %317 = vmatpush.msra.mxu0 0.0
  %318 = vmatpush.msra.mxu0 0.0
  %319 = vmatpush.msra.mxu0 0.0
  %320 = vmatpush.msra.mxu0 0.0
  %321 = vmatpush.msra.mxu0 0.0
  %322 = vmatpush.msra.mxu0 0.0
  %323 = vmatpush.msra.mxu0 0.0
  %324 = vmatpush.msra.mxu0 0.0
  %325 = vmatpush.msra.mxu0 0.0
  %326 = vmatpush.msra.mxu0 0.0
  %327 = vmatpush.msra.mxu0 0.0
  %328 = vmatpush.msra.mxu0 %v46
  %329 = vmatpush.msra.mxu0 %v45
  %330 = vmatpush.msra.mxu0 %v44
  %331 = vmatpush.msra.mxu0 %v43
  %332 = vmatmul.f32.gmra.mxu0 %v314
  %v333 = vpop.f32.mrf.mxu0
  %v334 = vadd.f32 0.0, %v333
  %335 = vdwg.mxu0
  %337 = vrot.lane.b32.xlu0 %v310, 32
  %v338 = vpop.permute.xlu0 %337
  %v339 = vsel %vm49, %v338, 0
  %341 = vmatpush.msra.mxu0 0.0
  %342 = vmatpush.msra.mxu0 0.0
  %343 = vmatpush.msra.mxu0 0.0
  %344 = vmatpush.msra.mxu0 0.0
  %345 = vmatpush.msra.mxu0 0.0
  %346 = vmatpush.msra.mxu0 0.0
  %347 = vmatpush.msra.mxu0 0.0
  %348 = vmatpush.msra.mxu0 0.0
  %349 = vmatpush.msra.mxu0 0.0
  %350 = vmatpush.msra.mxu0 0.0
  %351 = vmatpush.msra.mxu0 0.0
  %352 = vmatpush.msra.mxu0 0.0
  %353 = vmatpush.msra.mxu0 %v42
  %354 = vmatpush.msra.mxu0 %v41
  %355 = vmatpush.msra.mxu0 %v40
  %356 = vmatpush.msra.mxu0 %v39
  %357 = vmatmul.f32.gmra.mxu0 %v339
  %v358 = vpop.f32.mrf.mxu0
  %v359 = vadd.f32 %v334, %v358
  %360 = vdwg.mxu0
  %v361 = vadd.f32 %v359, %v188
  %v362 = vxor.u32 %v361, 2147483648
  %v363 = vmul.f32 %v362, 1.442695
  %v364 = vpow.pop %v363
  %v365 = vadd.f32 %v364, 1.0
  %v366 = vrcp.pop %v365
  %v367 = vmul.f32 %v365, %v366
  %v368 = vsub.f32 1.0, %v367
  %v369 = vmul.f32 %v366, %v368
  %v370 = vadd.f32 %v366, %v369
  %vm371 = vweird.f32 %v365
  %vm372 = vweird.f32 %v366
  %vm373 = vmor %vm371, %vm372
  %v374 = vsel %vm373, %v366, %v370
  %v375 = vand.u32 2147483647, %v365
  %vm376 = vcmp.eq.f32.partialorder %v375, 8.507059e+37
  %v377 = vand.u32 %v365, 2147483648
  %v378 = vor.u32 1.1754944e-38, %v377
  %v379 = vsel %vm376, %v378, %v374
  %v380 = vmul.f32 1.0, %v379
  %v381 = vtanh.pop %v361
  %v382 = vmul.f32 %v380, %v221
  %384 = vrot.lane.b32.xlu0 %v381, 64
  %v385 = vpop.permute.xlu0 %384
  %v387 = vmul.f32 %v380, %v385
  %389 = vrot.lane.b32.xlu0 %v387, 32
  %v390 = vpop.permute.xlu0 %389
  %v392 = vadd.f32 %v382, %v390
  %v393 = vtanh.pop %v392
  %395 = vrot.lane.b32.xlu0 %v393, 64
  %v396 = vpop.permute.xlu0 %395
  %v398 = vmul.f32 %v380, %v396
  %s399 = scalar_lea.vmem %s0, 4
  %v400 = vld [vmem:[%s399] sm:$0x3]
  %401 = vmatpush.msra.mxu0 0.0
  %402 = vmatpush.msra.mxu0 0.0
  %403 = vmatpush.msra.mxu0 0.0
  %404 = vmatpush.msra.mxu0 0.0
  %405 = vmatpush.msra.mxu0 0.0
  %406 = vmatpush.msra.mxu0 0.0
  %407 = vmatpush.msra.mxu0 0.0
  %408 = vmatpush.msra.mxu0 0.0
  %409 = vmatpush.msra.mxu0 0.0
  %410 = vmatpush.msra.mxu0 0.0
  %411 = vmatpush.msra.mxu0 0.0
  %412 = vmatpush.msra.mxu0 0.0
  %413 = vmatpush.msra.mxu0 %v37
  %414 = vmatpush.msra.mxu0 %v36
  %415 = vmatpush.msra.mxu0 %v35
  %416 = vmatpush.msra.mxu0 %v34
  %417 = vmatmul.f32.gmra.mxu0 %v339
  %v418 = vpop.f32.mrf.mxu0
  %v419 = vadd.f32 0.0, %v418
  %420 = vdwg.mxu0
  %v422 = vsel %vm73, %v400, 0
  %424 = vmatpush.msra.mxu0 0.0
  %425 = vmatpush.msra.mxu0 0.0
  %426 = vmatpush.msra.mxu0 0.0
  %427 = vmatpush.msra.mxu0 0.0
  %428 = vmatpush.msra.mxu0 0.0
  %429 = vmatpush.msra.mxu0 0.0
  %430 = vmatpush.msra.mxu0 0.0
  %431 = vmatpush.msra.mxu0 0.0
  %432 = vmatpush.msra.mxu0 0.0
  %433 = vmatpush.msra.mxu0 0.0
  %434 = vmatpush.msra.mxu0 0.0
  %435 = vmatpush.msra.mxu0 0.0
  %436 = vmatpush.msra.mxu0 0.0
  %437 = vmatpush.msra.mxu0 0.0
  %438 = vmatpush.msra.mxu0 %v79
  %439 = vmatpush.msra.mxu0 %v32
  %440 = vmatmul.f32.gmra.mxu0 %v422
  %v441 = vpop.f32.mrf.mxu0
  %v442 = vadd.f32 %v419, %v441
  %443 = vdwg.mxu0
  %v444 = vadd.f32 %v442, %v102
  %v445 = vxor.u32 %v444, 2147483648
  %v446 = vmul.f32 %v445, 1.442695
  %v447 = vpow.pop %v446
  %v448 = vadd.f32 %v447, 1.0
  %v449 = vrcp.pop %v448
  %v450 = vmul.f32 %v448, %v449
  %v451 = vsub.f32 1.0, %v450
  %v452 = vmul.f32 %v449, %v451
  %v453 = vadd.f32 %v449, %v452
  %vm454 = vweird.f32 %v448
  %vm455 = vweird.f32 %v449
  %vm456 = vmor %vm454, %vm455
  %v457 = vsel %vm456, %v449, %v453
  %v458 = vand.u32 2147483647, %v448
  %vm459 = vcmp.eq.f32.partialorder %v458, 8.507059e+37
  %v460 = vand.u32 %v448, 2147483648
  %v461 = vor.u32 1.1754944e-38, %v460
  %v462 = vsel %vm459, %v461, %v457
  %v463 = vmul.f32 1.0, %v462
  %v464 = vtanh.pop %v444
  %v465 = vmul.f32 %v463, %v304
  %467 = vrot.lane.b32.xlu0 %v464, 64
  %v468 = vpop.permute.xlu0 %467
  %v470 = vmul.f32 %v463, %v468
  %472 = vrot.lane.b32.xlu0 %v470, 32
  %v473 = vpop.permute.xlu0 %472
  %v475 = vadd.f32 %v465, %v473
  %v476 = vtanh.pop %v475
  %478 = vrot.lane.b32.xlu0 %v476, 64
  %v479 = vpop.permute.xlu0 %478
  %v481 = vmul.f32 %v463, %v479
  %483 = vrot.lane.b32.xlu0 %v398, 32
  %v484 = vpop.permute.xlu0 %483
  %v485 = vsel %vm49, %v484, 0
  %487 = vmatpush.msra.mxu0 0.0
  %488 = vmatpush.msra.mxu0 0.0
  %489 = vmatpush.msra.mxu0 0.0
  %490 = vmatpush.msra.mxu0 0.0
  %491 = vmatpush.msra.mxu0 0.0
  %492 = vmatpush.msra.mxu0 0.0
  %493 = vmatpush.msra.mxu0 0.0
  %494 = vmatpush.msra.mxu0 0.0
  %495 = vmatpush.msra.mxu0 0.0
  %496 = vmatpush.msra.mxu0 0.0
  %497 = vmatpush.msra.mxu0 0.0
  %498 = vmatpush.msra.mxu0 0.0
  %499 = vmatpush.msra.mxu0 %v46
  %500 = vmatpush.msra.mxu0 %v45
  %501 = vmatpush.msra.mxu0 %v44
  %502 = vmatpush.msra.mxu0 %v43
  %503 = vmatmul.f32.gmra.mxu0 %v485
  %v504 = vpop.f32.mrf.mxu0
  %v505 = vadd.f32 0.0, %v504
  %506 = vdwg.mxu0
  %508 = vrot.lane.b32.xlu0 %v481, 32
  %v509 = vpop.permute.xlu0 %508
  %v510 = vsel %vm49, %v509, 0
  %512 = vmatpush.msra.mxu0 0.0
  %513 = vmatpush.msra.mxu0 0.0
  %514 = vmatpush.msra.mxu0 0.0
  %515 = vmatpush.msra.mxu0 0.0
  %516 = vmatpush.msra.mxu0 0.0
  %517 = vmatpush.msra.mxu0 0.0
  %518 = vmatpush.msra.mxu0 0.0
  %519 = vmatpush.msra.mxu0 0.0
  %520 = vmatpush.msra.mxu0 0.0
  %521 = vmatpush.msra.mxu0 0.0
  %522 = vmatpush.msra.mxu0 0.0
  %523 = vmatpush.msra.mxu0 0.0
  %524 = vmatpush.msra.mxu0 %v42
  %525 = vmatpush.msra.mxu0 %v41
  %526 = vmatpush.msra.mxu0 %v40
  %527 = vmatpush.msra.mxu0 %v39
  %528 = vmatmul.f32.gmra.mxu0 %v510
  %v529 = vpop.f32.mrf.mxu0
  %v530 = vadd.f32 %v505, %v529
  %531 = vdwg.mxu0
  %v532 = vadd.f32 %v530, %v188
  %v533 = vxor.u32 %v532, 2147483648
  %v534 = vmul.f32 %v533, 1.442695
  %v535 = vpow.pop %v534
  %v536 = vadd.f32 %v535, 1.0
  %v537 = vrcp.pop %v536
  %v538 = vmul.f32 %v536, %v537
  %v539 = vsub.f32 1.0, %v538
  %v540 = vmul.f32 %v537, %v539
  %v541 = vadd.f32 %v537, %v540
  %vm542 = vweird.f32 %v536
  %vm543 = vweird.f32 %v537
  %vm544 = vmor %vm542, %vm543
  %v545 = vsel %vm544, %v537, %v541
  %v546 = vand.u32 2147483647, %v536
  %vm547 = vcmp.eq.f32.partialorder %v546, 8.507059e+37
  %v548 = vand.u32 %v536, 2147483648
  %v549 = vor.u32 1.1754944e-38, %v548
  %v550 = vsel %vm547, %v549, %v545
  %v551 = vmul.f32 1.0, %v550
  %v552 = vtanh.pop %v532
  %v553 = vmul.f32 %v551, %v392
  %555 = vrot.lane.b32.xlu0 %v552, 64
  %v556 = vpop.permute.xlu0 %555
  %v558 = vmul.f32 %v551, %v556
  %560 = vrot.lane.b32.xlu0 %v558, 32
  %v561 = vpop.permute.xlu0 %560
  %v563 = vadd.f32 %v553, %v561
  %v564 = vtanh.pop %v563
  %566 = vrot.lane.b32.xlu0 %v564, 64
  %v567 = vpop.permute.xlu0 %566
  %v569 = vmul.f32 %v551, %v567
  %s570 = scalar_lea.vmem %s0, 6
  %v571 = vld [vmem:[%s570] sm:$0x3]
  %572 = vmatpush.msra.mxu0 0.0
  %573 = vmatpush.msra.mxu0 0.0
  %574 = vmatpush.msra.mxu0 0.0
  %575 = vmatpush.msra.mxu0 0.0
  %576 = vmatpush.msra.mxu0 0.0
  %577 = vmatpush.msra.mxu0 0.0
  %578 = vmatpush.msra.mxu0 0.0
  %579 = vmatpush.msra.mxu0 0.0
  %580 = vmatpush.msra.mxu0 0.0
  %581 = vmatpush.msra.mxu0 0.0
  %582 = vmatpush.msra.mxu0 0.0
  %583 = vmatpush.msra.mxu0 0.0
  %584 = vmatpush.msra.mxu0 %v37
  %585 = vmatpush.msra.mxu0 %v36
  %586 = vmatpush.msra.mxu0 %v35
  %587 = vmatpush.msra.mxu0 %v34
  %588 = vmatmul.f32.gmra.mxu0 %v510
  %v589 = vpop.f32.mrf.mxu0
  %v590 = vadd.f32 0.0, %v589
  %591 = vdwg.mxu0
  %v593 = vsel %vm73, %v571, 0
  %595 = vmatpush.msra.mxu0 0.0
  %596 = vmatpush.msra.mxu0 0.0
  %597 = vmatpush.msra.mxu0 0.0
  %598 = vmatpush.msra.mxu0 0.0
  %599 = vmatpush.msra.mxu0 0.0
  %600 = vmatpush.msra.mxu0 0.0
  %601 = vmatpush.msra.mxu0 0.0
  %602 = vmatpush.msra.mxu0 0.0
  %603 = vmatpush.msra.mxu0 0.0
  %604 = vmatpush.msra.mxu0 0.0
  %605 = vmatpush.msra.mxu0 0.0
  %606 = vmatpush.msra.mxu0 0.0
  %607 = vmatpush.msra.mxu0 0.0
  %608 = vmatpush.msra.mxu0 0.0
  %609 = vmatpush.msra.mxu0 %v79
  %610 = vmatpush.msra.mxu0 %v32
  %611 = vmatmul.f32.gmra.mxu0 %v593
  %v612 = vpop.f32.mrf.mxu0
  %v613 = vadd.f32 %v590, %v612
  %614 = vdwg.mxu0
  %v615 = vadd.f32 %v613, %v102
  %v616 = vxor.u32 %v615, 2147483648
  %v617 = vmul.f32 %v616, 1.442695
  %v618 = vpow.pop %v617
  %v619 = vadd.f32 %v618, 1.0
  %v620 = vrcp.pop %v619
  %v621 = vmul.f32 %v619, %v620
  %v622 = vsub.f32 1.0, %v621
  %v623 = vmul.f32 %v620, %v622
  %v624 = vadd.f32 %v620, %v623
  %vm625 = vweird.f32 %v619
  %vm626 = vweird.f32 %v620
  %vm627 = vmor %vm625, %vm626
  %v628 = vsel %vm627, %v620, %v624
  %v629 = vand.u32 2147483647, %v619
  %vm630 = vcmp.eq.f32.partialorder %v629, 8.507059e+37
  %v631 = vand.u32 %v619, 2147483648
  %v632 = vor.u32 1.1754944e-38, %v631
  %v633 = vsel %vm630, %v632, %v628
  %v634 = vmul.f32 1.0, %v633
  %v635 = vtanh.pop %v615
  %v636 = vmul.f32 %v634, %v475
  %638 = vrot.lane.b32.xlu0 %v635, 64
  %v639 = vpop.permute.xlu0 %638
  %v641 = vmul.f32 %v634, %v639
  %643 = vrot.lane.b32.xlu0 %v641, 32
  %v644 = vpop.permute.xlu0 %643
  %v646 = vadd.f32 %v636, %v644
  %v647 = vtanh.pop %v646
  %649 = vrot.lane.b32.xlu0 %v647, 64
  %v650 = vpop.permute.xlu0 %649
  %v652 = vmul.f32 %v634, %v650
  %654 = vrot.lane.b32.xlu0 %v569, 32
  %v655 = vpop.permute.xlu0 %654
  %v656 = vsel %vm49, %v655, 0
  %658 = vmatpush.msra.mxu0 0.0
  %659 = vmatpush.msra.mxu0 0.0
  %660 = vmatpush.msra.mxu0 0.0
  %661 = vmatpush.msra.mxu0 0.0
  %662 = vmatpush.msra.mxu0 0.0
  %663 = vmatpush.msra.mxu0 0.0
  %664 = vmatpush.msra.mxu0 0.0
  %665 = vmatpush.msra.mxu0 0.0
  %666 = vmatpush.msra.mxu0 0.0
  %667 = vmatpush.msra.mxu0 0.0
  %668 = vmatpush.msra.mxu0 0.0
  %669 = vmatpush.msra.mxu0 0.0
  %670 = vmatpush.msra.mxu0 %v46
  %671 = vmatpush.msra.mxu0 %v45
  %672 = vmatpush.msra.mxu0 %v44
  %673 = vmatpush.msra.mxu0 %v43
  %674 = vmatmul.f32.gmra.mxu0 %v656
  %v675 = vpop.f32.mrf.mxu0
  %v676 = vadd.f32 0.0, %v675
  %677 = vdwg.mxu0
  %679 = vrot.lane.b32.xlu0 %v652, 32
  %v680 = vpop.permute.xlu0 %679
  %v681 = vsel %vm49, %v680, 0
  %683 = vmatpush.msra.mxu0 0.0
  %684 = vmatpush.msra.mxu0 0.0
  %685 = vmatpush.msra.mxu0 0.0
  %686 = vmatpush.msra.mxu0 0.0
  %687 = vmatpush.msra.mxu0 0.0
  %688 = vmatpush.msra.mxu0 0.0
  %689 = vmatpush.msra.mxu0 0.0
  %690 = vmatpush.msra.mxu0 0.0
  %691 = vmatpush.msra.mxu0 0.0
  %692 = vmatpush.msra.mxu0 0.0
  %693 = vmatpush.msra.mxu0 0.0
  %694 = vmatpush.msra.mxu0 0.0
  %695 = vmatpush.msra.mxu0 %v42
  %696 = vmatpush.msra.mxu0 %v41
  %697 = vmatpush.msra.mxu0 %v40
  %698 = vmatpush.msra.mxu0 %v39
  %699 = vmatmul.f32.gmra.mxu0 %v681
  %v700 = vpop.f32.mrf.mxu0
  %v701 = vadd.f32 %v676, %v700
  %702 = vdwg.mxu0
  %v703 = vadd.f32 %v701, %v188
  %v704 = vxor.u32 %v703, 2147483648
  %v705 = vmul.f32 %v704, 1.442695
  %v706 = vpow.pop %v705
  %v707 = vadd.f32 %v706, 1.0
  %v708 = vrcp.pop %v707
  %v709 = vmul.f32 %v707, %v708
  %v710 = vsub.f32 1.0, %v709
  %v711 = vmul.f32 %v708, %v710
  %v712 = vadd.f32 %v708, %v711
  %vm713 = vweird.f32 %v707
  %vm714 = vweird.f32 %v708
  %vm715 = vmor %vm713, %vm714
  %v716 = vsel %vm715, %v708, %v712
  %v717 = vand.u32 2147483647, %v707
  %vm718 = vcmp.eq.f32.partialorder %v717, 8.507059e+37
  %v719 = vand.u32 %v707, 2147483648
  %v720 = vor.u32 1.1754944e-38, %v719
  %v721 = vsel %vm718, %v720, %v716
  %v722 = vmul.f32 1.0, %v721
  %v723 = vtanh.pop %v703
  %v724 = vmul.f32 %v722, %v563
  %726 = vrot.lane.b32.xlu0 %v723, 64
  %v727 = vpop.permute.xlu0 %726
  %v729 = vmul.f32 %v722, %v727
  %731 = vrot.lane.b32.xlu0 %v729, 32
  %v732 = vpop.permute.xlu0 %731
  %v734 = vadd.f32 %v724, %v732
  %v735 = vtanh.pop %v734
  %737 = vrot.lane.b32.xlu0 %v735, 64
  %v738 = vpop.permute.xlu0 %737
  %v740 = vmul.f32 %v722, %v738
  %s741 = scalar_lea.vmem %s0, 8
  %v742 = vld [vmem:[%s741] sm:$0x3]
  %743 = vmatpush.msra.mxu0 0.0
  %744 = vmatpush.msra.mxu0 0.0
  %745 = vmatpush.msra.mxu0 0.0
  %746 = vmatpush.msra.mxu0 0.0
  %747 = vmatpush.msra.mxu0 0.0
  %748 = vmatpush.msra.mxu0 0.0
  %749 = vmatpush.msra.mxu0 0.0
  %750 = vmatpush.msra.mxu0 0.0
  %751 = vmatpush.msra.mxu0 0.0
  %752 = vmatpush.msra.mxu0 0.0
  %753 = vmatpush.msra.mxu0 0.0
  %754 = vmatpush.msra.mxu0 0.0
  %755 = vmatpush.msra.mxu0 %v37
  %756 = vmatpush.msra.mxu0 %v36
  %757 = vmatpush.msra.mxu0 %v35
  %758 = vmatpush.msra.mxu0 %v34
  %759 = vmatmul.f32.gmra.mxu0 %v681
  %v760 = vpop.f32.mrf.mxu0
  %v761 = vadd.f32 0.0, %v760
  %762 = vdwg.mxu0
  %v764 = vsel %vm73, %v742, 0
  %766 = vmatpush.msra.mxu0 0.0
  %767 = vmatpush.msra.mxu0 0.0
  %768 = vmatpush.msra.mxu0 0.0
  %769 = vmatpush.msra.mxu0 0.0
  %770 = vmatpush.msra.mxu0 0.0
  %771 = vmatpush.msra.mxu0 0.0
  %772 = vmatpush.msra.mxu0 0.0
  %773 = vmatpush.msra.mxu0 0.0
  %774 = vmatpush.msra.mxu0 0.0
  %775 = vmatpush.msra.mxu0 0.0
  %776 = vmatpush.msra.mxu0 0.0
  %777 = vmatpush.msra.mxu0 0.0
  %778 = vmatpush.msra.mxu0 0.0
  %779 = vmatpush.msra.mxu0 0.0
  %780 = vmatpush.msra.mxu0 %v79
  %781 = vmatpush.msra.mxu0 %v32
  %782 = vmatmul.f32.gmra.mxu0 %v764
  %v783 = vpop.f32.mrf.mxu0
  %v784 = vadd.f32 %v761, %v783
  %785 = vdwg.mxu0
  %v786 = vadd.f32 %v784, %v102
  %v787 = vxor.u32 %v786, 2147483648
  %v788 = vmul.f32 %v787, 1.442695
  %v789 = vpow.pop %v788
  %v790 = vadd.f32 %v789, 1.0
  %v791 = vrcp.pop %v790
  %v792 = vmul.f32 %v790, %v791
  %v793 = vsub.f32 1.0, %v792
  %v794 = vmul.f32 %v791, %v793
  %v795 = vadd.f32 %v791, %v794
  %vm796 = vweird.f32 %v790
  %vm797 = vweird.f32 %v791
  %vm798 = vmor %vm796, %vm797
  %v799 = vsel %vm798, %v791, %v795
  %v800 = vand.u32 2147483647, %v790
  %vm801 = vcmp.eq.f32.partialorder %v800, 8.507059e+37
  %v802 = vand.u32 %v790, 2147483648
  %v803 = vor.u32 1.1754944e-38, %v802
  %v804 = vsel %vm801, %v803, %v799
  %v805 = vmul.f32 1.0, %v804
  %v806 = vtanh.pop %v786
  %v807 = vmul.f32 %v805, %v646
  %809 = vrot.lane.b32.xlu0 %v806, 64
  %v810 = vpop.permute.xlu0 %809
  %v812 = vmul.f32 %v805, %v810
  %814 = vrot.lane.b32.xlu0 %v812, 32
  %v815 = vpop.permute.xlu0 %814
  %v817 = vadd.f32 %v807, %v815
  %v818 = vtanh.pop %v817
  %820 = vrot.lane.b32.xlu0 %v818, 64
  %v821 = vpop.permute.xlu0 %820
  %v823 = vmul.f32 %v805, %v821
  %825 = vrot.lane.b32.xlu0 %v740, 32
  %v826 = vpop.permute.xlu0 %825
  %v827 = vsel %vm49, %v826, 0
  %829 = vmatpush.msra.mxu0 0.0
  %830 = vmatpush.msra.mxu0 0.0
  %831 = vmatpush.msra.mxu0 0.0
  %832 = vmatpush.msra.mxu0 0.0
  %833 = vmatpush.msra.mxu0 0.0
  %834 = vmatpush.msra.mxu0 0.0
  %835 = vmatpush.msra.mxu0 0.0
  %836 = vmatpush.msra.mxu0 0.0
  %837 = vmatpush.msra.mxu0 0.0
  %838 = vmatpush.msra.mxu0 0.0
  %839 = vmatpush.msra.mxu0 0.0
  %840 = vmatpush.msra.mxu0 0.0
  %841 = vmatpush.msra.mxu0 %v46
  %842 = vmatpush.msra.mxu0 %v45
  %843 = vmatpush.msra.mxu0 %v44
  %844 = vmatpush.msra.mxu0 %v43
  %845 = vmatmul.f32.gmra.mxu0 %v827
  %v846 = vpop.f32.mrf.mxu0
  %v847 = vadd.f32 0.0, %v846
  %848 = vdwg.mxu0
  %850 = vrot.lane.b32.xlu0 %v823, 32
  %v851 = vpop.permute.xlu0 %850
  %v852 = vsel %vm49, %v851, 0
  %854 = vmatpush.msra.mxu0 0.0
  %855 = vmatpush.msra.mxu0 0.0
  %856 = vmatpush.msra.mxu0 0.0
  %857 = vmatpush.msra.mxu0 0.0
  %858 = vmatpush.msra.mxu0 0.0
  %859 = vmatpush.msra.mxu0 0.0
  %860 = vmatpush.msra.mxu0 0.0
  %861 = vmatpush.msra.mxu0 0.0
  %862 = vmatpush.msra.mxu0 0.0
  %863 = vmatpush.msra.mxu0 0.0
  %864 = vmatpush.msra.mxu0 0.0
  %865 = vmatpush.msra.mxu0 0.0
  %866 = vmatpush.msra.mxu0 %v42
  %867 = vmatpush.msra.mxu0 %v41
  %868 = vmatpush.msra.mxu0 %v40
  %869 = vmatpush.msra.mxu0 %v39
  %870 = vmatmul.f32.gmra.mxu0 %v852
  %v871 = vpop.f32.mrf.mxu0
  %v872 = vadd.f32 %v847, %v871
  %873 = vdwg.mxu0
  %v874 = vadd.f32 %v872, %v188
  %v875 = vxor.u32 %v874, 2147483648
  %v876 = vmul.f32 %v875, 1.442695
  %v877 = vpow.pop %v876
  %v878 = vadd.f32 %v877, 1.0
  %v879 = vrcp.pop %v878
  %v880 = vmul.f32 %v878, %v879
  %v881 = vsub.f32 1.0, %v880
  %v882 = vmul.f32 %v879, %v881
  %v883 = vadd.f32 %v879, %v882
  %vm884 = vweird.f32 %v878
  %vm885 = vweird.f32 %v879
  %vm886 = vmor %vm884, %vm885
  %v887 = vsel %vm886, %v879, %v883
  %v888 = vand.u32 2147483647, %v878
  %vm889 = vcmp.eq.f32.partialorder %v888, 8.507059e+37
  %v890 = vand.u32 %v878, 2147483648
  %v891 = vor.u32 1.1754944e-38, %v890
  %v892 = vsel %vm889, %v891, %v887
  %v893 = vmul.f32 1.0, %v892
  %v894 = vtanh.pop %v874
  %v895 = vmul.f32 %v893, %v734
  %897 = vrot.lane.b32.xlu0 %v894, 64
  %v898 = vpop.permute.xlu0 %897
  %v900 = vmul.f32 %v893, %v898
  %902 = vrot.lane.b32.xlu0 %v900, 32
  %v903 = vpop.permute.xlu0 %902
  %v905 = vadd.f32 %v895, %v903
  %v906 = vtanh.pop %v905
  %908 = vrot.lane.b32.xlu0 %v906, 64
  %v909 = vpop.permute.xlu0 %908
  %v911 = vmul.f32 %v893, %v909
  %s912 = scalar_lea.vmem %s0, 10
  %v913 = vld [vmem:[%s912] sm:$0x3]
  %914 = vmatpush.msra.mxu0 0.0
  %915 = vmatpush.msra.mxu0 0.0
  %916 = vmatpush.msra.mxu0 0.0
  %917 = vmatpush.msra.mxu0 0.0
  %918 = vmatpush.msra.mxu0 0.0
  %919 = vmatpush.msra.mxu0 0.0
  %920 = vmatpush.msra.mxu0 0.0
  %921 = vmatpush.msra.mxu0 0.0
  %922 = vmatpush.msra.mxu0 0.0
  %923 = vmatpush.msra.mxu0 0.0
  %924 = vmatpush.msra.mxu0 0.0
  %925 = vmatpush.msra.mxu0 0.0
  %926 = vmatpush.msra.mxu0 %v37
  %927 = vmatpush.msra.mxu0 %v36
  %928 = vmatpush.msra.mxu0 %v35
  %929 = vmatpush.msra.mxu0 %v34
  %930 = vmatmul.f32.gmra.mxu0 %v852
  %v931 = vpop.f32.mrf.mxu0
  %v932 = vadd.f32 0.0, %v931
  %933 = vdwg.mxu0
  %v935 = vsel %vm73, %v913, 0
  %937 = vmatpush.msra.mxu0 0.0
  %938 = vmatpush.msra.mxu0 0.0
  %939 = vmatpush.msra.mxu0 0.0
  %940 = vmatpush.msra.mxu0 0.0
  %941 = vmatpush.msra.mxu0 0.0
  %942 = vmatpush.msra.mxu0 0.0
  %943 = vmatpush.msra.mxu0 0.0
  %944 = vmatpush.msra.mxu0 0.0
  %945 = vmatpush.msra.mxu0 0.0
  %946 = vmatpush.msra.mxu0 0.0
  %947 = vmatpush.msra.mxu0 0.0
  %948 = vmatpush.msra.mxu0 0.0
  %949 = vmatpush.msra.mxu0 0.0
  %950 = vmatpush.msra.mxu0 0.0
  %951 = vmatpush.msra.mxu0 %v79
  %952 = vmatpush.msra.mxu0 %v32
  %953 = vmatmul.f32.gmra.mxu0 %v935
  %v954 = vpop.f32.mrf.mxu0
  %v955 = vadd.f32 %v932, %v954
  %956 = vdwg.mxu0
  %v957 = vadd.f32 %v955, %v102
  %v958 = vxor.u32 %v957, 2147483648
  %v959 = vmul.f32 %v958, 1.442695
  %v960 = vpow.pop %v959
  %v961 = vadd.f32 %v960, 1.0
  %v962 = vrcp.pop %v961
  %v963 = vmul.f32 %v961, %v962
  %v964 = vsub.f32 1.0, %v963
  %v965 = vmul.f32 %v962, %v964
  %v966 = vadd.f32 %v962, %v965
  %vm967 = vweird.f32 %v961
  %vm968 = vweird.f32 %v962
  %vm969 = vmor %vm967, %vm968
  %v970 = vsel %vm969, %v962, %v966
  %v971 = vand.u32 2147483647, %v961
  %vm972 = vcmp.eq.f32.partialorder %v971, 8.507059e+37
  %v973 = vand.u32 %v961, 2147483648
  %v974 = vor.u32 1.1754944e-38, %v973
  %v975 = vsel %vm972, %v974, %v970
  %v976 = vmul.f32 1.0, %v975
  %v977 = vtanh.pop %v957
  %v978 = vmul.f32 %v976, %v817
  %980 = vrot.lane.b32.xlu0 %v977, 64
  %v981 = vpop.permute.xlu0 %980
  %v983 = vmul.f32 %v976, %v981
  %985 = vrot.lane.b32.xlu0 %v983, 32
  %v986 = vpop.permute.xlu0 %985
  %v988 = vadd.f32 %v978, %v986
  %v989 = vtanh.pop %v988
  %991 = vrot.lane.b32.xlu0 %v989, 64
  %v992 = vpop.permute.xlu0 %991
  %v994 = vmul.f32 %v976, %v992
  %996 = vrot.lane.b32.xlu0 %v911, 32
  %v997 = vpop.permute.xlu0 %996
  %v998 = vsel %vm49, %v997, 0
  %1000 = vmatpush.msra.mxu0 0.0
  %1001 = vmatpush.msra.mxu0 0.0
  %1002 = vmatpush.msra.mxu0 0.0
  %1003 = vmatpush.msra.mxu0 0.0
  %1004 = vmatpush.msra.mxu0 0.0
  %1005 = vmatpush.msra.mxu0 0.0
  %1006 = vmatpush.msra.mxu0 0.0
  %1007 = vmatpush.msra.mxu0 0.0
  %1008 = vmatpush.msra.mxu0 0.0
  %1009 = vmatpush.msra.mxu0 0.0
  %1010 = vmatpush.msra.mxu0 0.0
  %1011 = vmatpush.msra.mxu0 0.0
  %1012 = vmatpush.msra.mxu0 %v46
  %1013 = vmatpush.msra.mxu0 %v45
  %1014 = vmatpush.msra.mxu0 %v44
  %1015 = vmatpush.msra.mxu0 %v43
  %1016 = vmatmul.f32.gmra.mxu0 %v998
  %v1017 = vpop.f32.mrf.mxu0
  %v1018 = vadd.f32 0.0, %v1017
  %1019 = vdwg.mxu0
  %1021 = vrot.lane.b32.xlu0 %v994, 32
  %v1022 = vpop.permute.xlu0 %1021
  %v1023 = vsel %vm49, %v1022, 0
  %1025 = vmatpush.msra.mxu0 0.0
  %1026 = vmatpush.msra.mxu0 0.0
  %1027 = vmatpush.msra.mxu0 0.0
  %1028 = vmatpush.msra.mxu0 0.0
  %1029 = vmatpush.msra.mxu0 0.0
  %1030 = vmatpush.msra.mxu0 0.0
  %1031 = vmatpush.msra.mxu0 0.0
  %1032 = vmatpush.msra.mxu0 0.0
  %1033 = vmatpush.msra.mxu0 0.0
  %1034 = vmatpush.msra.mxu0 0.0
  %1035 = vmatpush.msra.mxu0 0.0
  %1036 = vmatpush.msra.mxu0 0.0
  %1037 = vmatpush.msra.mxu0 %v42
  %1038 = vmatpush.msra.mxu0 %v41
  %1039 = vmatpush.msra.mxu0 %v40
  %1040 = vmatpush.msra.mxu0 %v39
  %1041 = vmatmul.f32.gmra.mxu0 %v1023
  %v1042 = vpop.f32.mrf.mxu0
  %v1043 = vadd.f32 %v1018, %v1042
  %1044 = vdwg.mxu0
  %v1045 = vadd.f32 %v1043, %v188
  %v1046 = vxor.u32 %v1045, 2147483648
  %v1047 = vmul.f32 %v1046, 1.442695
  %v1048 = vpow.pop %v1047
  %v1049 = vadd.f32 %v1048, 1.0
  %v1050 = vrcp.pop %v1049
  %v1051 = vmul.f32 %v1049, %v1050
  %v1052 = vsub.f32 1.0, %v1051
  %v1053 = vmul.f32 %v1050, %v1052
  %v1054 = vadd.f32 %v1050, %v1053
  %vm1055 = vweird.f32 %v1049
  %vm1056 = vweird.f32 %v1050
  %vm1057 = vmor %vm1055, %vm1056
  %v1058 = vsel %vm1057, %v1050, %v1054
  %v1059 = vand.u32 2147483647, %v1049
  %vm1060 = vcmp.eq.f32.partialorder %v1059, 8.507059e+37
  %v1061 = vand.u32 %v1049, 2147483648
  %v1062 = vor.u32 1.1754944e-38, %v1061
  %v1063 = vsel %vm1060, %v1062, %v1058
  %v1064 = vmul.f32 1.0, %v1063
  %v1065 = vtanh.pop %v1045
  %v1066 = vmul.f32 %v1064, %v905
  %1068 = vrot.lane.b32.xlu0 %v1065, 64
  %v1069 = vpop.permute.xlu0 %1068
  %v1071 = vmul.f32 %v1064, %v1069
  %1073 = vrot.lane.b32.xlu0 %v1071, 32
  %v1074 = vpop.permute.xlu0 %1073
  %v1076 = vadd.f32 %v1066, %v1074
  %v1077 = vtanh.pop %v1076
  %1079 = vrot.lane.b32.xlu0 %v1077, 64
  %v1080 = vpop.permute.xlu0 %1079
  %v1082 = vmul.f32 %v1064, %v1080
  %s1083 = scalar_lea.vmem %s0, 12
  %v1084 = vld [vmem:[%s1083] sm:$0x3]
  %1085 = vmatpush.msra.mxu0 0.0
  %1086 = vmatpush.msra.mxu0 0.0
  %1087 = vmatpush.msra.mxu0 0.0
  %1088 = vmatpush.msra.mxu0 0.0
  %1089 = vmatpush.msra.mxu0 0.0
  %1090 = vmatpush.msra.mxu0 0.0
  %1091 = vmatpush.msra.mxu0 0.0
  %1092 = vmatpush.msra.mxu0 0.0
  %1093 = vmatpush.msra.mxu0 0.0
  %1094 = vmatpush.msra.mxu0 0.0
  %1095 = vmatpush.msra.mxu0 0.0
  %1096 = vmatpush.msra.mxu0 0.0
  %1097 = vmatpush.msra.mxu0 %v37
  %1098 = vmatpush.msra.mxu0 %v36
  %1099 = vmatpush.msra.mxu0 %v35
  %1100 = vmatpush.msra.mxu0 %v34
  %1101 = vmatmul.f32.gmra.mxu0 %v1023
  %v1102 = vpop.f32.mrf.mxu0
  %v1103 = vadd.f32 0.0, %v1102
  %1104 = vdwg.mxu0
  %v1106 = vsel %vm73, %v1084, 0
  %1108 = vmatpush.msra.mxu0 0.0
  %1109 = vmatpush.msra.mxu0 0.0
  %1110 = vmatpush.msra.mxu0 0.0
  %1111 = vmatpush.msra.mxu0 0.0
  %1112 = vmatpush.msra.mxu0 0.0
  %1113 = vmatpush.msra.mxu0 0.0
  %1114 = vmatpush.msra.mxu0 0.0
  %1115 = vmatpush.msra.mxu0 0.0
  %1116 = vmatpush.msra.mxu0 0.0
  %1117 = vmatpush.msra.mxu0 0.0
  %1118 = vmatpush.msra.mxu0 0.0
  %1119 = vmatpush.msra.mxu0 0.0
  %1120 = vmatpush.msra.mxu0 0.0
  %1121 = vmatpush.msra.mxu0 0.0
  %1122 = vmatpush.msra.mxu0 %v79
  %1123 = vmatpush.msra.mxu0 %v32
  %1124 = vmatmul.f32.gmra.mxu0 %v1106
  %v1125 = vpop.f32.mrf.mxu0
  %v1126 = vadd.f32 %v1103, %v1125
  %1127 = vdwg.mxu0
  %v1128 = vadd.f32 %v1126, %v102
  %v1129 = vxor.u32 %v1128, 2147483648
  %v1130 = vmul.f32 %v1129, 1.442695
  %v1131 = vpow.pop %v1130
  %v1132 = vadd.f32 %v1131, 1.0
  %v1133 = vrcp.pop %v1132
  %v1134 = vmul.f32 %v1132, %v1133
  %v1135 = vsub.f32 1.0, %v1134
  %v1136 = vmul.f32 %v1133, %v1135
  %v1137 = vadd.f32 %v1133, %v1136
  %vm1138 = vweird.f32 %v1132
  %vm1139 = vweird.f32 %v1133
  %vm1140 = vmor %vm1138, %vm1139
  %v1141 = vsel %vm1140, %v1133, %v1137
  %v1142 = vand.u32 2147483647, %v1132
  %vm1143 = vcmp.eq.f32.partialorder %v1142, 8.507059e+37
  %v1144 = vand.u32 %v1132, 2147483648
  %v1145 = vor.u32 1.1754944e-38, %v1144
  %v1146 = vsel %vm1143, %v1145, %v1141
  %v1147 = vmul.f32 1.0, %v1146
  %v1148 = vtanh.pop %v1128
  %v1149 = vmul.f32 %v1147, %v988
  %1151 = vrot.lane.b32.xlu0 %v1148, 64
  %v1152 = vpop.permute.xlu0 %1151
  %v1154 = vmul.f32 %v1147, %v1152
  %1156 = vrot.lane.b32.xlu0 %v1154, 32
  %v1157 = vpop.permute.xlu0 %1156
  %v1159 = vadd.f32 %v1149, %v1157
  %v1160 = vtanh.pop %v1159
  %1162 = vrot.lane.b32.xlu0 %v1160, 64
  %v1163 = vpop.permute.xlu0 %1162
  %v1165 = vmul.f32 %v1147, %v1163
  %1167 = vrot.lane.b32.xlu0 %v1082, 32
  %v1168 = vpop.permute.xlu0 %1167
  %v1169 = vsel %vm49, %v1168, 0
  %1171 = vmatpush.msra.mxu0 0.0
  %1172 = vmatpush.msra.mxu0 0.0
  %1173 = vmatpush.msra.mxu0 0.0
  %1174 = vmatpush.msra.mxu0 0.0
  %1175 = vmatpush.msra.mxu0 0.0
  %1176 = vmatpush.msra.mxu0 0.0
  %1177 = vmatpush.msra.mxu0 0.0
  %1178 = vmatpush.msra.mxu0 0.0
  %1179 = vmatpush.msra.mxu0 0.0
  %1180 = vmatpush.msra.mxu0 0.0
  %1181 = vmatpush.msra.mxu0 0.0
  %1182 = vmatpush.msra.mxu0 0.0
  %1183 = vmatpush.msra.mxu0 %v46
  %1184 = vmatpush.msra.mxu0 %v45
  %1185 = vmatpush.msra.mxu0 %v44
  %1186 = vmatpush.msra.mxu0 %v43
  %1187 = vmatmul.f32.gmra.mxu0 %v1169
  %v1188 = vpop.f32.mrf.mxu0
  %v1189 = vadd.f32 0.0, %v1188
  %1190 = vdwg.mxu0
  %1192 = vrot.lane.b32.xlu0 %v1165, 32
  %v1193 = vpop.permute.xlu0 %1192
  %v1194 = vsel %vm49, %v1193, 0
  %1196 = vmatpush.msra.mxu0 0.0
  %1197 = vmatpush.msra.mxu0 0.0
  %1198 = vmatpush.msra.mxu0 0.0
  %1199 = vmatpush.msra.mxu0 0.0
  %1200 = vmatpush.msra.mxu0 0.0
  %1201 = vmatpush.msra.mxu0 0.0
  %1202 = vmatpush.msra.mxu0 0.0
  %1203 = vmatpush.msra.mxu0 0.0
  %1204 = vmatpush.msra.mxu0 0.0
  %1205 = vmatpush.msra.mxu0 0.0
  %1206 = vmatpush.msra.mxu0 0.0
  %1207 = vmatpush.msra.mxu0 0.0
  %1208 = vmatpush.msra.mxu0 %v42
  %1209 = vmatpush.msra.mxu0 %v41
  %1210 = vmatpush.msra.mxu0 %v40
  %1211 = vmatpush.msra.mxu0 %v39
  %1212 = vmatmul.f32.gmra.mxu0 %v1194
  %v1213 = vpop.f32.mrf.mxu0
  %v1214 = vadd.f32 %v1189, %v1213
  %1215 = vdwg.mxu0
  %v1216 = vadd.f32 %v1214, %v188
  %v1217 = vxor.u32 %v1216, 2147483648
  %v1218 = vmul.f32 %v1217, 1.442695
  %v1219 = vpow.pop %v1218
  %v1220 = vadd.f32 %v1219, 1.0
  %v1221 = vrcp.pop %v1220
  %v1222 = vmul.f32 %v1220, %v1221
  %v1223 = vsub.f32 1.0, %v1222
  %v1224 = vmul.f32 %v1221, %v1223
  %v1225 = vadd.f32 %v1221, %v1224
  %vm1226 = vweird.f32 %v1220
  %vm1227 = vweird.f32 %v1221
  %vm1228 = vmor %vm1226, %vm1227
  %v1229 = vsel %vm1228, %v1221, %v1225
  %v1230 = vand.u32 2147483647, %v1220
  %vm1231 = vcmp.eq.f32.partialorder %v1230, 8.507059e+37
  %v1232 = vand.u32 %v1220, 2147483648
  %v1233 = vor.u32 1.1754944e-38, %v1232
  %v1234 = vsel %vm1231, %v1233, %v1229
  %v1235 = vmul.f32 1.0, %v1234
  %v1236 = vtanh.pop %v1216
  %v1237 = vmul.f32 %v1235, %v1076
  %1239 = vrot.lane.b32.xlu0 %v1236, 64
  %v1240 = vpop.permute.xlu0 %1239
  %v1242 = vmul.f32 %v1235, %v1240
  %1244 = vrot.lane.b32.xlu0 %v1242, 32
  %v1245 = vpop.permute.xlu0 %1244
  %v1247 = vadd.f32 %v1237, %v1245
  %v1248 = vtanh.pop %v1247
  %1250 = vrot.lane.b32.xlu0 %v1248, 64
  %v1251 = vpop.permute.xlu0 %1250
  %v1253 = vmul.f32 %v1235, %v1251
  %s1254 = scalar_lea.vmem %s0, 14
  %v1255 = vld [vmem:[%s1254] sm:$0x3]
  %1256 = vmatpush.msra.mxu0 0.0
  %1257 = vmatpush.msra.mxu0 0.0
  %1258 = vmatpush.msra.mxu0 0.0
  %1259 = vmatpush.msra.mxu0 0.0
  %1260 = vmatpush.msra.mxu0 0.0
  %1261 = vmatpush.msra.mxu0 0.0
  %1262 = vmatpush.msra.mxu0 0.0
  %1263 = vmatpush.msra.mxu0 0.0
  %1264 = vmatpush.msra.mxu0 0.0
  %1265 = vmatpush.msra.mxu0 0.0
  %1266 = vmatpush.msra.mxu0 0.0
  %1267 = vmatpush.msra.mxu0 0.0
  %1268 = vmatpush.msra.mxu0 %v37
  %1269 = vmatpush.msra.mxu0 %v36
  %1270 = vmatpush.msra.mxu0 %v35
  %1271 = vmatpush.msra.mxu0 %v34
  %1272 = vmatmul.f32.gmra.mxu0 %v1194
  %v1273 = vpop.f32.mrf.mxu0
  %v1274 = vadd.f32 0.0, %v1273
  %1275 = vdwg.mxu0
  %v1277 = vsel %vm73, %v1255, 0
  %1279 = vmatpush.msra.mxu0 0.0
  %1280 = vmatpush.msra.mxu0 0.0
  %1281 = vmatpush.msra.mxu0 0.0
  %1282 = vmatpush.msra.mxu0 0.0
  %1283 = vmatpush.msra.mxu0 0.0
  %1284 = vmatpush.msra.mxu0 0.0
  %1285 = vmatpush.msra.mxu0 0.0
  %1286 = vmatpush.msra.mxu0 0.0
  %1287 = vmatpush.msra.mxu0 0.0
  %1288 = vmatpush.msra.mxu0 0.0
  %1289 = vmatpush.msra.mxu0 0.0
  %1290 = vmatpush.msra.mxu0 0.0
  %1291 = vmatpush.msra.mxu0 0.0
  %1292 = vmatpush.msra.mxu0 0.0
  %1293 = vmatpush.msra.mxu0 %v79
  %1294 = vmatpush.msra.mxu0 %v32
  %1295 = vmatmul.f32.gmra.mxu0 %v1277
  %v1296 = vpop.f32.mrf.mxu0
  %v1297 = vadd.f32 %v1274, %v1296
  %1298 = vdwg.mxu0
  %v1299 = vadd.f32 %v1297, %v102
  %v1300 = vxor.u32 %v1299, 2147483648
  %v1301 = vmul.f32 %v1300, 1.442695
  %v1302 = vpow.pop %v1301
  %v1303 = vadd.f32 %v1302, 1.0
  %v1304 = vrcp.pop %v1303
  %v1305 = vmul.f32 %v1303, %v1304
  %v1306 = vsub.f32 1.0, %v1305
  %v1307 = vmul.f32 %v1304, %v1306
  %v1308 = vadd.f32 %v1304, %v1307
  %vm1309 = vweird.f32 %v1303
  %vm1310 = vweird.f32 %v1304
  %vm1311 = vmor %vm1309, %vm1310
  %v1312 = vsel %vm1311, %v1304, %v1308
  %v1313 = vand.u32 2147483647, %v1303
  %vm1314 = vcmp.eq.f32.partialorder %v1313, 8.507059e+37
  %v1315 = vand.u32 %v1303, 2147483648
  %v1316 = vor.u32 1.1754944e-38, %v1315
  %v1317 = vsel %vm1314, %v1316, %v1312
  %v1318 = vmul.f32 1.0, %v1317
  %v1319 = vtanh.pop %v1299
  %v1320 = vmul.f32 %v1318, %v1159
  %1322 = vrot.lane.b32.xlu0 %v1319, 64
  %v1323 = vpop.permute.xlu0 %1322
  %v1325 = vmul.f32 %v1318, %v1323
  %1327 = vrot.lane.b32.xlu0 %v1325, 32
  %v1328 = vpop.permute.xlu0 %1327
  %v1330 = vadd.f32 %v1320, %v1328
  %v1331 = vtanh.pop %v1330
  %1333 = vrot.lane.b32.xlu0 %v1331, 64
  %v1334 = vpop.permute.xlu0 %1333
  %v1336 = vmul.f32 %v1318, %v1334
  %1338 = vrot.lane.b32.xlu0 %v1253, 32
  %v1339 = vpop.permute.xlu0 %1338
  %v1340 = vsel %vm49, %v1339, 0
  %1342 = vmatpush.msra.mxu0 0.0
  %1343 = vmatpush.msra.mxu0 0.0
  %1344 = vmatpush.msra.mxu0 0.0
  %1345 = vmatpush.msra.mxu0 0.0
  %1346 = vmatpush.msra.mxu0 0.0
  %1347 = vmatpush.msra.mxu0 0.0
  %1348 = vmatpush.msra.mxu0 0.0
  %1349 = vmatpush.msra.mxu0 0.0
  %1350 = vmatpush.msra.mxu0 0.0
  %1351 = vmatpush.msra.mxu0 0.0
  %1352 = vmatpush.msra.mxu0 0.0
  %1353 = vmatpush.msra.mxu0 0.0
  %1354 = vmatpush.msra.mxu0 %v46
  %1355 = vmatpush.msra.mxu0 %v45
  %1356 = vmatpush.msra.mxu0 %v44
  %1357 = vmatpush.msra.mxu0 %v43
  %1358 = vmatmul.f32.gmra.mxu0 %v1340
  %v1359 = vpop.f32.mrf.mxu0
  %v1360 = vadd.f32 0.0, %v1359
  %1361 = vdwg.mxu0
  %1363 = vrot.lane.b32.xlu0 %v1336, 32
  %v1364 = vpop.permute.xlu0 %1363
  %v1365 = vsel %vm49, %v1364, 0
  %1367 = vmatpush.msra.mxu0 0.0
  %1368 = vmatpush.msra.mxu0 0.0
  %1369 = vmatpush.msra.mxu0 0.0
  %1370 = vmatpush.msra.mxu0 0.0
  %1371 = vmatpush.msra.mxu0 0.0
  %1372 = vmatpush.msra.mxu0 0.0
  %1373 = vmatpush.msra.mxu0 0.0
  %1374 = vmatpush.msra.mxu0 0.0
  %1375 = vmatpush.msra.mxu0 0.0
  %1376 = vmatpush.msra.mxu0 0.0
  %1377 = vmatpush.msra.mxu0 0.0
  %1378 = vmatpush.msra.mxu0 0.0
  %1379 = vmatpush.msra.mxu0 %v42
  %1380 = vmatpush.msra.mxu0 %v41
  %1381 = vmatpush.msra.mxu0 %v40
  %1382 = vmatpush.msra.mxu0 %v39
  %1383 = vmatmul.f32.gmra.mxu0 %v1365
  %v1384 = vpop.f32.mrf.mxu0
  %v1385 = vadd.f32 %v1360, %v1384
  %1386 = vdwg.mxu0
  %v1387 = vadd.f32 %v1385, %v188
  %v1388 = vxor.u32 %v1387, 2147483648
  %v1389 = vmul.f32 %v1388, 1.442695
  %v1390 = vpow.pop %v1389
  %v1391 = vadd.f32 %v1390, 1.0
  %v1392 = vrcp.pop %v1391
  %v1393 = vmul.f32 %v1391, %v1392
  %v1394 = vsub.f32 1.0, %v1393
  %v1395 = vmul.f32 %v1392, %v1394
  %v1396 = vadd.f32 %v1392, %v1395
  %vm1397 = vweird.f32 %v1391
  %vm1398 = vweird.f32 %v1392
  %vm1399 = vmor %vm1397, %vm1398
  %v1400 = vsel %vm1399, %v1392, %v1396
  %v1401 = vand.u32 2147483647, %v1391
  %vm1402 = vcmp.eq.f32.partialorder %v1401, 8.507059e+37
  %v1403 = vand.u32 %v1391, 2147483648
  %v1404 = vor.u32 1.1754944e-38, %v1403
  %v1405 = vsel %vm1402, %v1404, %v1400
  %v1406 = vmul.f32 1.0, %v1405
  %v1407 = vtanh.pop %v1387
  %v1408 = vmul.f32 %v1406, %v1247
  %1410 = vrot.lane.b32.xlu0 %v1407, 64
  %v1411 = vpop.permute.xlu0 %1410
  %v1413 = vmul.f32 %v1406, %v1411
  %1415 = vrot.lane.b32.xlu0 %v1413, 32
  %v1416 = vpop.permute.xlu0 %1415
  %v1418 = vadd.f32 %v1408, %v1416
  %v1419 = vtanh.pop %v1418
  %1421 = vrot.lane.b32.xlu0 %v1419, 64
  %v1422 = vpop.permute.xlu0 %1421
  %v1424 = vmul.f32 %v1406, %v1422
  %v1425 = vld [vmem:[%s7] sm:$0xff]
  %v1426 = vld [vmem:[%s7 + $0x8] sm:$0xff]
  %v1427 = vld [vmem:[%s7 + $0x10] sm:$0xff]
  %v1428 = vld [vmem:[%s7 + $0x18] sm:$0xff]
  %v1429 = vld [vmem:[%s8] sm:$0x1]
  %v1431 = vperm.slane %v1429, 0
  %1434 = vrot.lane.b32.xlu0 %v1424, 32
  %v1435 = vpop.permute.xlu0 %1434
  %v1436 = vsel %vm49, %v1435, 0
  %1438 = vmatpush.msra.mxu0 0.0
  %1439 = vmatpush.msra.mxu0 0.0
  %1440 = vmatpush.msra.mxu0 0.0
  %1441 = vmatpush.msra.mxu0 0.0
  %1442 = vmatpush.msra.mxu0 0.0
  %1443 = vmatpush.msra.mxu0 0.0
  %1444 = vmatpush.msra.mxu0 0.0
  %1445 = vmatpush.msra.mxu0 0.0
  %1446 = vmatpush.msra.mxu0 0.0
  %1447 = vmatpush.msra.mxu0 0.0
  %1448 = vmatpush.msra.mxu0 0.0
  %1449 = vmatpush.msra.mxu0 0.0
  %1450 = vmatpush.msra.mxu0 %v1428
  %1451 = vmatpush.msra.mxu0 %v1427
  %1452 = vmatpush.msra.mxu0 %v1426
  %1453 = vmatpush.msra.mxu0 %v1425
  %1454 = vmatmul.f32.gmra.mxu0 %v1436
  %v1455 = vpop.f32.mrf.mxu0
  %v1456 = vadd.f32 %v1431, %v1455
  %1457 = vdwg.mxu0
  %vm1458 = vcmask 58368
  %1459 = vst.msk [vmem:[%s9] sm:$0x3] %vm1458, %v1456
  // Predicated region
  $region38: #{forward.5} parent=0 // pred_check
    _
  $region39: #{forward.5} parent=0 // pred_check_branch
    %1461 = sbr.rel (0) target = $region41
  $region40: #{forward.5} parent=0 // pred_region
    _
  $region41: #{forward.5} parent=0 // pred_fallthru
    _
  // Predicated region
  $region42: #{forward.5} parent=0 // pred_check
    _
  $region43: #{forward.5} parent=0 // pred_check_branch
    %1463 = sbr.rel (0) target = $region45
  $region44: #{forward.5} parent=0 // pred_region
    _
  $region45: #{forward.5} parent=0 // pred_fallthru
    _

// kernel: forward.7
$region0: #{forward.7}
  #allocation0 [shape = 'u32[]', space=smem, size = 0x4, offset = 0x4, fixed_abs, tag = 'smem constant byte address 0x4 - core index']
  #allocation1 [shape = 'u32[72,128]{1,0:T(1,128)}', space=vmem, size = 0x9000, scoped, tag = 'internal scratch']
  %s0 = inlined_call_operand.vmem [shape: f32[2,8], index: 0, kind: input, shape index: {}]
  %s1 = inlined_call_operand.vmem [shape: f32[2,8], index: 1, kind: input, shape index: {}]
  %s2 = inlined_call_operand.vmem [shape: f32[16,8], index: 2, kind: input, shape index: {}]
  %s3 = inlined_call_operand.vmem [shape: f32[1,8], index: 3, kind: input, shape index: {}]
  %s4 = inlined_call_operand.hbm [shape: f32[2,8], index: 4, kind: output, shape index: {}]
  %s5 = sld [smem:[#allocation0]]
  $region26: #{forward.7} parent=0
    _
  %s7 = ssub.s32 1, %s5
  %s8 = scalar_select 0, %s7, %s5
  $region1: #{forward.7} parent=0
    #allocation2 [shape = 'u8[1024]{0}', space=vmem, size = 0x400, scoped, tag = 'output window, operand 0, single buffered']
    #allocation3 [shape = 's32[1]{0}', space=sflag, size = 0x4, scoped, tag = 'scoped memory for forward.7']
    %9 = vsyncpa [#allocation3], 0
    // Predicated region
    $region2: #{forward.7} parent=1 // pred_check
      _
    $region3: #{forward.7} parent=1 // pred_check_branch
      %11 = sbr.rel (0) target = $region5
    $region4: #{forward.7} parent=1 // pred_region
      _
    $region5: #{forward.7} parent=1 // pred_fallthru
      _
    // Predicated region
    $region6: #{forward.7} parent=1 // pred_check
      _
    $region7: #{forward.7} parent=1 // pred_check_branch
      %13 = sbr.rel (0) target = $region9
    $region8: #{forward.7} parent=1 // pred_region
      _
    $region9: #{forward.7} parent=1 // pred_fallthru
      _
    // Predicated region
    $region10: #{forward.7} parent=1 // pred_check
      _
    $region11: #{forward.7} parent=1 // pred_check_branch
      %15 = sbr.rel (0) target = $region13
    $region12: #{forward.7} parent=1 // pred_region
      _
    $region13: #{forward.7} parent=1 // pred_fallthru
      _
    // Predicated region
    $region14: #{forward.7} parent=1 // pred_check
      _
    $region15: #{forward.7} parent=1 // pred_check_branch
      %17 = sbr.rel (0) target = $region17
    $region16: #{forward.7} parent=1 // pred_region
      _
    $region17: #{forward.7} parent=1 // pred_fallthru
      _
    %v18 = vld [vmem:[%s2] sm:$0xff]
    %v19 = vld [vmem:[%s2 + $0x8] sm:$0xff]
    %v20 = vld [vmem:[%s0] sm:$0x3]
    %v21 = vld [vmem:[%s1] sm:$0x3]
    %vm22 = vcmask 64512
    %v24 = vsel %vm22, %v21, 0
    %26 = vmatpush.msra.mxu0 0.0
    %27 = vmatpush.msra.mxu0 0.0
    %28 = vmatpush.msra.mxu0 0.0
    %29 = vmatpush.msra.mxu0 0.0
    %30 = vmatpush.msra.mxu0 0.0
    %31 = vmatpush.msra.mxu0 0.0
    %32 = vmatpush.msra.mxu0 0.0
    %33 = vmatpush.msra.mxu0 0.0
    %34 = vmatpush.msra.mxu0 0.0
    %35 = vmatpush.msra.mxu0 0.0
    %36 = vmatpush.msra.mxu0 0.0
    %37 = vmatpush.msra.mxu0 0.0
    %38 = vmatpush.msra.mxu0 0.0
    %39 = vmatpush.msra.mxu0 0.0
    %40 = vmatpush.msra.mxu0 0.0
    %41 = vmatpush.msra.mxu0 %v19
    %42 = vmatmul.f32.gmra.mxu0 %v24
    %v43 = vpop.f32.mrf.mxu0
    %v44 = vadd.f32 0.0, %v43
    %45 = vdwg.mxu0
    %v47 = vsel %vm22, %v20, 0
    %49 = vmatpush.msra.mxu0 0.0
    %50 = vmatpush.msra.mxu0 0.0
    %51 = vmatpush.msra.mxu0 0.0
    %52 = vmatpush.msra.mxu0 0.0
    %53 = vmatpush.msra.mxu0 0.0
    %54 = vmatpush.msra.mxu0 0.0
    %55 = vmatpush.msra.mxu0 0.0
    %56 = vmatpush.msra.mxu0 0.0
    %57 = vmatpush.msra.mxu0 0.0
    %58 = vmatpush.msra.mxu0 0.0
    %59 = vmatpush.msra.mxu0 0.0
    %60 = vmatpush.msra.mxu0 0.0
    %61 = vmatpush.msra.mxu0 0.0
    %62 = vmatpush.msra.mxu0 0.0
    %63 = vmatpush.msra.mxu0 0.0
    %64 = vmatpush.msra.mxu0 %v18
    %65 = vmatmul.f32.gmra.mxu0 %v47
    %v66 = vpop.f32.mrf.mxu0
    %v67 = vadd.f32 %v44, %v66
    %68 = vdwg.mxu0
    %v69 = vld [vmem:[%s3] sm:$0x1]
    %v71 = vperm.slane %v69, 0
    %v73 = vadd.f32 %v67, %v71
    %vm74 = vcmask 58368
    %75 = vst.msk [vmem:[#allocation2] sm:$0x3] %vm74, %v73
    // Predicated region
    $region18: #{forward.7} parent=1 // pred_check
      _
    $region19: #{forward.7} parent=1 // pred_check_branch
      %77 = sbr.rel (0) target = $region21
    $region20: #{forward.7} parent=1 // pred_region
      %79 = vsyncadd [#allocation3], 0
      %s81 = sshll.u32 [#allocation2], 4
      %s82 = int_to_ptr.vmem [resolvable:$true] %s81
      %s83 = sshll.u32 %s4, 4
      %s84 = int_to_ptr.hbm [resolvable:$true] %s83
      %86 = dma.vmem_to_hbm [thread:$0]  %s82, 32, %s84, [#allocation3]
    $region21: #{forward.7} parent=1 // pred_fallthru
      _
    // Predicated region
    $region22: #{forward.7} parent=1 // pred_check
      _
    $region23: #{forward.7} parent=1 // pred_check_branch
      %88 = sbr.rel (0) target = $region25
    $region24: #{forward.7} parent=1 // pred_region
      %90 = dma.done [#allocation3], 32
    $region25: #{forward.7} parent=1 // pred_fallthru
      _
    %91 = vsyncpa [#allocation3], 1

// kernel: forward.6
$region0: #{forward.6}
  #allocation0 [shape = 'u32[]', space=smem, size = 0x4, offset = 0x4, fixed_abs, tag = 'smem constant byte address 0x4 - core index']
  #allocation1 [shape = 'u32[72,128]{1,0:T(1,128)}', space=vmem, size = 0x9000, scoped, tag = 'internal scratch']
  %s0 = inlined_call_operand.vmem [shape: f32[64,128], index: 0, kind: input, shape index: {}]
  %s1 = inlined_call_operand.vmem [shape: f32[128,16], index: 1, kind: input, shape index: {}]
  %s2 = inlined_call_operand.vmem [shape: f32[1,16], index: 2, kind: input, shape index: {}]
  %s3 = inlined_call_operand.vmem [shape: f32[16,48], index: 3, kind: input, shape index: {}]
  %s4 = inlined_call_operand.vmem [shape: f32[1,48], index: 4, kind: input, shape index: {}]
  %s5 = inlined_call_operand.vmem [shape: f32[16,32], index: 5, kind: input, shape index: {}]
  %s6 = inlined_call_operand.vmem [shape: f32[1,32], index: 6, kind: input, shape index: {}]
  %s7 = inlined_call_operand.vmem [shape: f32[32,16], index: 7, kind: input, shape index: {}]
  %s8 = inlined_call_operand.vmem [shape: f32[1,16], index: 8, kind: input, shape index: {}]
  %s9 = inlined_call_operand.vmem [shape: f32[16,8], index: 9, kind: input, shape index: {}]
  %s10 = inlined_call_operand.vmem [shape: f32[1,8], index: 10, kind: input, shape index: {}]
  %s11 = inlined_call_operand.vmem [shape: f32[2,8], index: 11, kind: output, shape index: {}]
  %s12 = sld [smem:[#allocation0]]
  $region54: #{forward.6} parent=0
    _
  %s14 = ssub.s32 1, %s12
  %s15 = scalar_select 0, %s14, %s12
  // Predicated region
  $region2: #{forward.6} parent=0 // pred_check
    _
  $region3: #{forward.6} parent=0 // pred_check_branch
    %17 = sbr.rel (0) target = $region5
  $region4: #{forward.6} parent=0 // pred_region
    _
  $region5: #{forward.6} parent=0 // pred_fallthru
    _
  // Predicated region
  $region6: #{forward.6} parent=0 // pred_check
    _
  $region7: #{forward.6} parent=0 // pred_check_branch
    %19 = sbr.rel (0) target = $region9
  $region8: #{forward.6} parent=0 // pred_region
    _
  $region9: #{forward.6} parent=0 // pred_fallthru
    _
  // Predicated region
  $region10: #{forward.6} parent=0 // pred_check
    _
  $region11: #{forward.6} parent=0 // pred_check_branch
    %21 = sbr.rel (0) target = $region13
  $region12: #{forward.6} parent=0 // pred_region
    _
  $region13: #{forward.6} parent=0 // pred_fallthru
    _
  // Predicated region
  $region14: #{forward.6} parent=0 // pred_check
    _
  $region15: #{forward.6} parent=0 // pred_check_branch
    %23 = sbr.rel (0) target = $region17
  $region16: #{forward.6} parent=0 // pred_region
    _
  $region17: #{forward.6} parent=0 // pred_fallthru
    _
  // Predicated region
  $region18: #{forward.6} parent=0 // pred_check
    _
  $region19: #{forward.6} parent=0 // pred_check_branch
    %25 = sbr.rel (0) target = $region21
  $region20: #{forward.6} parent=0 // pred_region
    _
  $region21: #{forward.6} parent=0 // pred_fallthru
    _
  // Predicated region
  $region22: #{forward.6} parent=0 // pred_check
    _
  $region23: #{forward.6} parent=0 // pred_check_branch
    %27 = sbr.rel (0) target = $region25
  $region24: #{forward.6} parent=0 // pred_region
    _
  $region25: #{forward.6} parent=0 // pred_fallthru
    _
  // Predicated region
  $region26: #{forward.6} parent=0 // pred_check
    _
  $region27: #{forward.6} parent=0 // pred_check_branch
    %29 = sbr.rel (0) target = $region29
  $region28: #{forward.6} parent=0 // pred_region
    _
  $region29: #{forward.6} parent=0 // pred_fallthru
    _
  // Predicated region
  $region30: #{forward.6} parent=0 // pred_check
    _
  $region31: #{forward.6} parent=0 // pred_check_branch
    %31 = sbr.rel (0) target = $region33
  $region32: #{forward.6} parent=0 // pred_region
    _
  $region33: #{forward.6} parent=0 // pred_fallthru
    _
  // Predicated region
  $region34: #{forward.6} parent=0 // pred_check
    _
  $region35: #{forward.6} parent=0 // pred_check_branch
    %33 = sbr.rel (0) target = $region37
  $region36: #{forward.6} parent=0 // pred_region
    _
  $region37: #{forward.6} parent=0 // pred_fallthru
    _
  // Predicated region
  $region38: #{forward.6} parent=0 // pred_check
    _
  $region39: #{forward.6} parent=0 // pred_check_branch
    %35 = sbr.rel (0) target = $region41
  $region40: #{forward.6} parent=0 // pred_region
    _
  $region41: #{forward.6} parent=0 // pred_fallthru
    _
  // Predicated region
  $region42: #{forward.6} parent=0 // pred_check
    _
  $region43: #{forward.6} parent=0 // pred_check_branch
    %37 = sbr.rel (0) target = $region45
  $region44: #{forward.6} parent=0 // pred_region
    _
  $region45: #{forward.6} parent=0 // pred_fallthru
    _
  %v38 = vld [vmem:[%s0] sm:$0xff]
  %v39 = vld [vmem:[%s0 + $0x8] sm:$0xff]
  %v40 = vld [vmem:[%s0 + $0x10] sm:$0xff]
  %v41 = vld [vmem:[%s0 + $0x18] sm:$0xff]
  %v42 = vld [vmem:[%s0 + $0x20] sm:$0xff]
  %v43 = vld [vmem:[%s0 + $0x28] sm:$0xff]
  %v44 = vld [vmem:[%s0 + $0x30] sm:$0xff]
  %v45 = vld [vmem:[%s0 + $0x38] sm:$0xff]
  %v46 = vld [vmem:[%s1] sm:$0xff]
  %v47 = vld [vmem:[%s1 + $0x8] sm:$0xff]
  %v48 = vld [vmem:[%s1 + $0x10] sm:$0xff]
  %v49 = vld [vmem:[%s1 + $0x18] sm:$0xff]
  %v50 = vld [vmem:[%s1 + $0x20] sm:$0xff]
  %v51 = vld [vmem:[%s1 + $0x28] sm:$0xff]
  %v52 = vld [vmem:[%s1 + $0x30] sm:$0xff]
  %v53 = vld [vmem:[%s1 + $0x38] sm:$0xff]
  %v54 = vld [vmem:[%s1 + $0x40] sm:$0xff]
  %v55 = vld [vmem:[%s1 + $0x48] sm:$0xff]
  %v56 = vld [vmem:[%s1 + $0x50] sm:$0xff]
  %v57 = vld [vmem:[%s1 + $0x58] sm:$0xff]
  %v58 = vld [vmem:[%s1 + $0x60] sm:$0xff]
  %v59 = vld [vmem:[%s1 + $0x68] sm:$0xff]
  %v60 = vld [vmem:[%s1 + $0x70] sm:$0xff]
  %v61 = vld [vmem:[%s1 + $0x78] sm:$0xff]
  %v62 = vld [vmem:[%s2] sm:$0x1]
  %v64 = vperm.slane %v62, 0
  %66 = vmatpush.msra.mxu0 %v61
  %67 = vmatpush.msra.mxu0 %v60
  %68 = vmatpush.msra.mxu0 %v59
  %69 = vmatpush.msra.mxu0 %v58
  %70 = vmatpush.msra.mxu0 %v57
  %71 = vmatpush.msra.mxu0 %v56
  %72 = vmatpush.msra.mxu0 %v55
  %73 = vmatpush.msra.mxu0 %v54
  %74 = vmatpush.msra.mxu0 %v53
  %75 = vmatpush.msra.mxu0 %v52
  %76 = vmatpush.msra.mxu0 %v51
  %77 = vmatpush.msra.mxu0 %v50
  %78 = vmatpush.msra.mxu0 %v49
  %79 = vmatpush.msra.mxu0 %v48
  %80 = vmatpush.msra.mxu0 %v47
  %81 = vmatpush.msra.mxu0 %v46
  %82 = vmatmul.f32.gmra.mxu0 %v38
  %v83 = vpop.f32.mrf.mxu0
  %v84 = vadd.f32 %v64, %v83
  %85 = vmatmul.f32.gmra.mxu0 %v39
  %v86 = vpop.f32.mrf.mxu0
  %v87 = vadd.f32 %v64, %v86
  %88 = vmatmul.f32.gmra.mxu0 %v40
  %v89 = vpop.f32.mrf.mxu0
  %v90 = vadd.f32 %v64, %v89
  %91 = vmatmul.f32.gmra.mxu0 %v41
  %v92 = vpop.f32.mrf.mxu0
  %v93 = vadd.f32 %v64, %v92
  %94 = vmatmul.f32.gmra.mxu0 %v42
  %v95 = vpop.f32.mrf.mxu0
  %v96 = vadd.f32 %v64, %v95
  %97 = vmatmul.f32.gmra.mxu0 %v43
  %v98 = vpop.f32.mrf.mxu0
  %v99 = vadd.f32 %v64, %v98
  %100 = vmatmul.f32.gmra.mxu0 %v44
  %v101 = vpop.f32.mrf.mxu0
  %v102 = vadd.f32 %v64, %v101
  %103 = vmatmul.f32.gmra.mxu0 %v45
  %v104 = vpop.f32.mrf.mxu0
  %v105 = vadd.f32 %v64, %v104
  %106 = vdwg.mxu0
  %v107 = vmax.f32 %v84, 0.0
  %v108 = vmax.f32 %v87, 0.0
  %v109 = vmax.f32 %v90, 0.0
  %v110 = vmax.f32 %v93, 0.0
  %v111 = vmax.f32 %v96, 0.0
  %v112 = vmax.f32 %v99, 0.0
  %v113 = vmax.f32 %v102, 0.0
  %v114 = vmax.f32 %v105, 0.0
  %v115 = vld [vmem:[%s3] sm:$0xff]
  %v116 = vld [vmem:[%s3 + $0x8] sm:$0xff]
  %v117 = vld [vmem:[%s4] sm:$0x1]
  %v119 = vperm.slane %v117, 0
  %vm121 = vcmask 130048
  %v123 = vsel %vm121, %v107, 0
  %v126 = vsel %vm121, %v108, 0
  %v129 = vsel %vm121, %v109, 0
  %v132 = vsel %vm121, %v110, 0
  %v135 = vsel %vm121, %v111, 0
  %v138 = vsel %vm121, %v112, 0
  %v141 = vsel %vm121, %v113, 0
  %v144 = vsel %vm121, %v114, 0
  %146 = vmatpush.msra.mxu0 0.0
  %147 = vmatpush.msra.mxu0 0.0
  %148 = vmatpush.msra.mxu0 0.0
  %149 = vmatpush.msra.mxu0 0.0
  %150 = vmatpush.msra.mxu0 0.0
  %151 = vmatpush.msra.mxu0 0.0
  %152 = vmatpush.msra.mxu0 0.0
  %153 = vmatpush.msra.mxu0 0.0
  %154 = vmatpush.msra.mxu0 0.0
  %155 = vmatpush.msra.mxu0 0.0
  %156 = vmatpush.msra.mxu0 0.0
  %157 = vmatpush.msra.mxu0 0.0
  %158 = vmatpush.msra.mxu0 0.0
  %159 = vmatpush.msra.mxu0 0.0
  %160 = vmatpush.msra.mxu0 %v116
  %161 = vmatpush.msra.mxu0 %v115
  %162 = vmatmul.f32.gmra.mxu0 %v123
  %v163 = vpop.f32.mrf.mxu0
  %v164 = vadd.f32 %v119, %v163
  %165 = vmatmul.f32.gmra.mxu0 %v126
  %v166 = vpop.f32.mrf.mxu0
  %v167 = vadd.f32 %v119, %v166
  %168 = vmatmul.f32.gmra.mxu0 %v129
  %v169 = vpop.f32.mrf.mxu0
  %v170 = vadd.f32 %v119, %v169
  %171 = vmatmul.f32.gmra.mxu0 %v132
  %v172 = vpop.f32.mrf.mxu0
  %v173 = vadd.f32 %v119, %v172
  %174 = vmatmul.f32.gmra.mxu0 %v135
  %v175 = vpop.f32.mrf.mxu0
  %v176 = vadd.f32 %v119, %v175
  %177 = vmatmul.f32.gmra.mxu0 %v138
  %v178 = vpop.f32.mrf.mxu0
  %v179 = vadd.f32 %v119, %v178
  %180 = vmatmul.f32.gmra.mxu0 %v141
  %v181 = vpop.f32.mrf.mxu0
  %v182 = vadd.f32 %v119, %v181
  %183 = vmatmul.f32.gmra.mxu0 %v144
  %v184 = vpop.f32.mrf.mxu0
  %v185 = vadd.f32 %v119, %v184
  %186 = vdwg.mxu0
  %191 = vrot.lane.b32.xlu0 %v164, 112
  %v192 = vpop.permute.xlu0 %191
  %193 = vrot.lane.b32.xlu0 %v167, 112
  %v194 = vpop.permute.xlu0 %193
  %195 = vrot.lane.b32.xlu0 %v170, 112
  %v196 = vpop.permute.xlu0 %195
  %197 = vrot.lane.b32.xlu0 %v173, 112
  %v198 = vpop.permute.xlu0 %197
  %v199 = vsel %vm121, %v164, 0
  %v201 = vsel %vm121, %v167, 0
  %v203 = vsel %vm121, %v170, 0
  %v205 = vsel %vm121, %v173, 0
  %v207 = vsel %vm121, %v192, 0
  %v209 = vsel %vm121, %v194, 0
  %v211 = vsel %vm121, %v196, 0
  %v213 = vsel %vm121, %v198, 0
  %215 = vmatpush.xpose.msra.mxu0 0.0
  %216 = vmatpush.xpose.msra.mxu0 0.0
  %217 = vmatpush.xpose.msra.mxu0 0.0
  %218 = vmatpush.xpose.msra.mxu0 0.0
  %219 = vmatpush.xpose.msra.mxu0 0.0
  %220 = vmatpush.xpose.msra.mxu0 0.0
  %221 = vmatpush.xpose.msra.mxu0 0.0
  %222 = vmatpush.xpose.msra.mxu0 0.0
  %223 = vmatpush.xpose.msra.mxu0 0.0
  %224 = vmatpush.xpose.msra.mxu0 0.0
  %225 = vmatpush.xpose.msra.mxu0 0.0
  %226 = vmatpush.xpose.msra.mxu0 0.0
  %227 = vmatpush.xpose.msra.mxu0 %v213
  %228 = vmatpush.xpose.msra.mxu0 %v211
  %229 = vmatpush.xpose.msra.mxu0 %v209
  %230 = vmatpush.xpose.msra.mxu0 %v207
  %231 = vmatmul.f32.gmra.mxu0 %v199
  %v232 = vpop.f32.mrf.mxu0
  %v233 = vadd.f32 0.0, %v232
  %234 = vmatmul.f32.gmra.mxu0 %v201
  %v235 = vpop.f32.mrf.mxu0
  %v236 = vadd.f32 0.0, %v235
  %237 = vmatmul.f32.gmra.mxu0 %v203
  %v238 = vpop.f32.mrf.mxu0
  %v239 = vadd.f32 0.0, %v238
  %240 = vmatmul.f32.gmra.mxu0 %v205
  %v241 = vpop.f32.mrf.mxu0
  %v242 = vadd.f32 0.0, %v241
  %243 = vdwg.mxu0
  %248 = vrot.lane.b32.xlu0 %v176, 112
  %v249 = vpop.permute.xlu0 %248
  %250 = vrot.lane.b32.xlu0 %v179, 112
  %v251 = vpop.permute.xlu0 %250
  %252 = vrot.lane.b32.xlu0 %v182, 112
  %v253 = vpop.permute.xlu0 %252
  %254 = vrot.lane.b32.xlu0 %v185, 112
  %v255 = vpop.permute.xlu0 %254
  %v256 = vsel %vm121, %v176, 0
  %v258 = vsel %vm121, %v179, 0
  %v260 = vsel %vm121, %v182, 0
  %v262 = vsel %vm121, %v185, 0
  %v264 = vsel %vm121, %v249, 0
  %v266 = vsel %vm121, %v251, 0
  %v268 = vsel %vm121, %v253, 0
  %v270 = vsel %vm121, %v255, 0
  %272 = vmatpush.xpose.msra.mxu0 0.0
  %273 = vmatpush.xpose.msra.mxu0 0.0
  %274 = vmatpush.xpose.msra.mxu0 0.0
  %275 = vmatpush.xpose.msra.mxu0 0.0
  %276 = vmatpush.xpose.msra.mxu0 0.0
  %277 = vmatpush.xpose.msra.mxu0 0.0
  %278 = vmatpush.xpose.msra.mxu0 0.0
  %279 = vmatpush.xpose.msra.mxu0 0.0
  %280 = vmatpush.xpose.msra.mxu0 0.0
  %281 = vmatpush.xpose.msra.mxu0 0.0
  %282 = vmatpush.xpose.msra.mxu0 0.0
  %283 = vmatpush.xpose.msra.mxu0 0.0
  %284 = vmatpush.xpose.msra.mxu0 %v270
  %285 = vmatpush.xpose.msra.mxu0 %v268
  %286 = vmatpush.xpose.msra.mxu0 %v266
  %287 = vmatpush.xpose.msra.mxu0 %v264
  %288 = vmatmul.f32.gmra.mxu0 %v256
  %v289 = vpop.f32.mrf.mxu0
  %v290 = vadd.f32 0.0, %v289
  %291 = vmatmul.f32.gmra.mxu0 %v258
  %v292 = vpop.f32.mrf.mxu0
  %v293 = vadd.f32 0.0, %v292
  %294 = vmatmul.f32.gmra.mxu0 %v260
  %v295 = vpop.f32.mrf.mxu0
  %v296 = vadd.f32 0.0, %v295
  %297 = vmatmul.f32.gmra.mxu0 %v262
  %v298 = vpop.f32.mrf.mxu0
  %v299 = vadd.f32 0.0, %v298
  %300 = vdwg.mxu0
  %v301 = vmul.f32 %v233, 0.25
  %v302 = vmul.f32 %v236, 0.25
  %v303 = vmul.f32 %v239, 0.25
  %v304 = vmul.f32 %v242, 0.25
  %v305 = vmul.f32 %v290, 0.25
  %v306 = vmul.f32 %v293, 0.25
  %v307 = vmul.f32 %v296, 0.25
  %v308 = vmul.f32 %v299, 0.25
  %vm309 = vcmask 261120
  %v310 = vsel %vm309, %v301, -inf
  %311 = vmax.xlane.f32.xlu0 %v310
  %v312 = vpop.xlane.xlu0 %311
  %v313 = vsel %vm309, %v302, -inf
  %314 = vmax.xlane.f32.xlu0 %v313
  %v315 = vpop.xlane.xlu0 %314
  %v316 = vsel %vm309, %v303, -inf
  %317 = vmax.xlane.f32.xlu0 %v316
  %v318 = vpop.xlane.xlu0 %317
  %v319 = vsel %vm309, %v304, -inf
  %320 = vmax.xlane.f32.xlu0 %v319
  %v321 = vpop.xlane.xlu0 %320
  %v322 = vsel %vm309, %v305, -inf
  %323 = vmax.xlane.f32.xlu0 %v322
  %v324 = vpop.xlane.xlu0 %323
  %v325 = vsel %vm309, %v306, -inf
  %326 = vmax.xlane.f32.xlu0 %v325
  %v327 = vpop.xlane.xlu0 %326
  %v328 = vsel %vm309, %v307, -inf
  %329 = vmax.xlane.f32.xlu0 %v328
  %v330 = vpop.xlane.xlu0 %329
  %v331 = vsel %vm309, %v308, -inf
  %332 = vmax.xlane.f32.xlu0 %v331
  %v333 = vpop.xlane.xlu0 %332
  %v334 = vsub.f32 %v301, %v312
  %v335 = vsub.f32 %v302, %v315
  %v336 = vsub.f32 %v303, %v318
  %v337 = vsub.f32 %v304, %v321
  %v338 = vsub.f32 %v305, %v324
  %v339 = vsub.f32 %v306, %v327
  %v340 = vsub.f32 %v307, %v330
  %v341 = vsub.f32 %v308, %v333
  %v342 = vmul.f32 %v334, 1.442695
  %v343 = vpow.pop %v342
  %v344 = vmul.f32 %v335, 1.442695
  %v345 = vpow.pop %v344
  %v346 = vmul.f32 %v336, 1.442695
  %v347 = vpow.pop %v346
  %v348 = vmul.f32 %v337, 1.442695
  %v349 = vpow.pop %v348
  %v350 = vmul.f32 %v338, 1.442695
  %v351 = vpow.pop %v350
  %v352 = vmul.f32 %v339, 1.442695
  %v353 = vpow.pop %v352
  %v354 = vmul.f32 %v340, 1.442695
  %v355 = vpow.pop %v354
  %v356 = vmul.f32 %v341, 1.442695
  %v357 = vpow.pop %v356
  %v358 = vsel %vm309, %v343, 0.0
  %359 = vadd.xlane.f32.xlu0 %v358
  %v360 = vpop.xlane.xlu0 %359
  %v361 = vsel %vm309, %v345, 0.0
  %362 = vadd.xlane.f32.xlu0 %v361
  %v363 = vpop.xlane.xlu0 %362
  %v364 = vsel %vm309, %v347, 0.0
  %365 = vadd.xlane.f32.xlu0 %v364
  %v366 = vpop.xlane.xlu0 %365
  %v367 = vsel %vm309, %v349, 0.0
  %368 = vadd.xlane.f32.xlu0 %v367
  %v369 = vpop.xlane.xlu0 %368
  %v370 = vsel %vm309, %v351, 0.0
  %371 = vadd.xlane.f32.xlu0 %v370
  %v372 = vpop.xlane.xlu0 %371
  %v373 = vsel %vm309, %v353, 0.0
  %374 = vadd.xlane.f32.xlu0 %v373
  %v375 = vpop.xlane.xlu0 %374
  %v376 = vsel %vm309, %v355, 0.0
  %377 = vadd.xlane.f32.xlu0 %v376
  %v378 = vpop.xlane.xlu0 %377
  %v379 = vsel %vm309, %v357, 0.0
  %380 = vadd.xlane.f32.xlu0 %v379
  %v381 = vpop.xlane.xlu0 %380
  %v382 = vrcp.pop %v360
  %v383 = vmul.f32 %v360, %v382
  %v384 = vsub.f32 1.0, %v383
  %v385 = vmul.f32 %v382, %v384
  %v386 = vadd.f32 %v382, %v385
  %vm387 = vweird.f32 %v360
  %vm388 = vweird.f32 %v382
  %vm389 = vmor %vm387, %vm388
  %v390 = vsel %vm389, %v382, %v386
  %v391 = vand.u32 2147483647, %v360
  %vm392 = vcmp.eq.f32.partialorder %v391, 8.507059e+37
  %v393 = vand.u32 %v360, 2147483648
  %v394 = vor.u32 1.1754944e-38, %v393
  %v395 = vsel %vm392, %v394, %v390
  %v396 = vmul.f32 %v343, %v395
  %v397 = vrcp.pop %v363
  %v398 = vmul.f32 %v363, %v397
  %v399 = vsub.f32 1.0, %v398
  %v400 = vmul.f32 %v397, %v399
  %v401 = vadd.f32 %v397, %v400
  %vm402 = vweird.f32 %v363
  %vm403 = vweird.f32 %v397
  %vm404 = vmor %vm402, %vm403
  %v405 = vsel %vm404, %v397, %v401
  %v406 = vand.u32 2147483647, %v363
  %vm407 = vcmp.eq.f32.partialorder %v406, 8.507059e+37
  %v408 = vand.u32 %v363, 2147483648
  %v409 = vor.u32 1.1754944e-38, %v408
  %v410 = vsel %vm407, %v409, %v405
  %v411 = vmul.f32 %v345, %v410
  %v412 = vrcp.pop %v366
  %v413 = vmul.f32 %v366, %v412
  %v414 = vsub.f32 1.0, %v413
  %v415 = vmul.f32 %v412, %v414
  %v416 = vadd.f32 %v412, %v415
  %vm417 = vweird.f32 %v366
  %vm418 = vweird.f32 %v412
  %vm419 = vmor %vm417, %vm418
  %v420 = vsel %vm419, %v412, %v416
  %v421 = vand.u32 2147483647, %v366
  %vm422 = vcmp.eq.f32.partialorder %v421, 8.507059e+37
  %v423 = vand.u32 %v366, 2147483648
  %v424 = vor.u32 1.1754944e-38, %v423
  %v425 = vsel %vm422, %v424, %v420
  %v426 = vmul.f32 %v347, %v425
  %v427 = vrcp.pop %v369
  %v428 = vmul.f32 %v369, %v427
  %v429 = vsub.f32 1.0, %v428
  %v430 = vmul.f32 %v427, %v429
  %v431 = vadd.f32 %v427, %v430
  %vm432 = vweird.f32 %v369
  %vm433 = vweird.f32 %v427
  %vm434 = vmor %vm432, %vm433
  %v435 = vsel %vm434, %v427, %v431
  %v436 = vand.u32 2147483647, %v369
  %vm437 = vcmp.eq.f32.partialorder %v436, 8.507059e+37
  %v438 = vand.u32 %v369, 2147483648
  %v439 = vor.u32 1.1754944e-38, %v438
  %v440 = vsel %vm437, %v439, %v435
  %v441 = vmul.f32 %v349, %v440
  %v442 = vrcp.pop %v372
  %v443 = vmul.f32 %v372, %v442
  %v444 = vsub.f32 1.0, %v443
  %v445 = vmul.f32 %v442, %v444
  %v446 = vadd.f32 %v442, %v445
  %vm447 = vweird.f32 %v372
  %vm448 = vweird.f32 %v442
  %vm449 = vmor %vm447, %vm448
  %v450 = vsel %vm449, %v442, %v446
  %v451 = vand.u32 2147483647, %v372
  %vm452 = vcmp.eq.f32.partialorder %v451, 8.507059e+37
  %v453 = vand.u32 %v372, 2147483648
  %v454 = vor.u32 1.1754944e-38, %v453
  %v455 = vsel %vm452, %v454, %v450
  %v456 = vmul.f32 %v351, %v455
  %v457 = vrcp.pop %v375
  %v458 = vmul.f32 %v375, %v457
  %v459 = vsub.f32 1.0, %v458
  %v460 = vmul.f32 %v457, %v459
  %v461 = vadd.f32 %v457, %v460
  %vm462 = vweird.f32 %v375
  %vm463 = vweird.f32 %v457
  %vm464 = vmor %vm462, %vm463
  %v465 = vsel %vm464, %v457, %v461
  %v466 = vand.u32 2147483647, %v375
  %vm467 = vcmp.eq.f32.partialorder %v466, 8.507059e+37
  %v468 = vand.u32 %v375, 2147483648
  %v469 = vor.u32 1.1754944e-38, %v468
  %v470 = vsel %vm467, %v469, %v465
  %v471 = vmul.f32 %v353, %v470
  %v472 = vrcp.pop %v378
  %v473 = vmul.f32 %v378, %v472
  %v474 = vsub.f32 1.0, %v473
  %v475 = vmul.f32 %v472, %v474
  %v476 = vadd.f32 %v472, %v475
  %vm477 = vweird.f32 %v378
  %vm478 = vweird.f32 %v472
  %vm479 = vmor %vm477, %vm478
  %v480 = vsel %vm479, %v472, %v476
  %v481 = vand.u32 2147483647, %v378
  %vm482 = vcmp.eq.f32.partialorder %v481, 8.507059e+37
  %v483 = vand.u32 %v378, 2147483648
  %v484 = vor.u32 1.1754944e-38, %v483
  %v485 = vsel %vm482, %v484, %v480
  %v486 = vmul.f32 %v355, %v485
  %v487 = vrcp.pop %v381
  %v488 = vmul.f32 %v381, %v487
  %v489 = vsub.f32 1.0, %v488
  %v490 = vmul.f32 %v487, %v489
  %v491 = vadd.f32 %v487, %v490
  %vm492 = vweird.f32 %v381
  %vm493 = vweird.f32 %v487
  %vm494 = vmor %vm492, %vm493
  %v495 = vsel %vm494, %v487, %v491
  %v496 = vand.u32 2147483647, %v381
  %vm497 = vcmp.eq.f32.partialorder %v496, 8.507059e+37
  %v498 = vand.u32 %v381, 2147483648
  %v499 = vor.u32 1.1754944e-38, %v498
  %v500 = vsel %vm497, %v499, %v495
  %v501 = vmul.f32 %v357, %v500
  %502 = vrot.lane.b32.xlu0 %v164, 96
  %v503 = vpop.permute.xlu0 %502
  %504 = vrot.lane.b32.xlu0 %v167, 96
  %v505 = vpop.permute.xlu0 %504
  %506 = vrot.lane.b32.xlu0 %v170, 96
  %v507 = vpop.permute.xlu0 %506
  %508 = vrot.lane.b32.xlu0 %v173, 96
  %v509 = vpop.permute.xlu0 %508
  %v515 = vsel %vm309, %v396, 0
  %v518 = vsel %vm309, %v411, 0
  %v521 = vsel %vm309, %v426, 0
  %v524 = vsel %vm309, %v441, 0
  %526 = vmatpush.msra.mxu0 0.0
  %527 = vmatpush.msra.mxu0 0.0
  %528 = vmatpush.msra.mxu0 0.0
  %529 = vmatpush.msra.mxu0 0.0
  %530 = vmatpush.msra.mxu0 0.0
  %531 = vmatpush.msra.mxu0 0.0
  %532 = vmatpush.msra.mxu0 0.0
  %533 = vmatpush.msra.mxu0 0.0
  %534 = vmatpush.msra.mxu0 0.0
  %535 = vmatpush.msra.mxu0 0.0
  %536 = vmatpush.msra.mxu0 0.0
  %537 = vmatpush.msra.mxu0 0.0
  %538 = vmatpush.msra.mxu0 %v509
  %539 = vmatpush.msra.mxu0 %v507
  %540 = vmatpush.msra.mxu0 %v505
  %541 = vmatpush.msra.mxu0 %v503
  %542 = vmatmul.f32.gmra.mxu0 %v515
  %v543 = vpop.f32.mrf.mxu0
  %v544 = vadd.f32 0.0, %v543
  %545 = vmatmul.f32.gmra.mxu0 %v518
  %v546 = vpop.f32.mrf.mxu0
  %v547 = vadd.f32 0.0, %v546
  %548 = vmatmul.f32.gmra.mxu0 %v521
  %v549 = vpop.f32.mrf.mxu0
  %v550 = vadd.f32 0.0, %v549
  %551 = vmatmul.f32.gmra.mxu0 %v524
  %v552 = vpop.f32.mrf.mxu0
  %v553 = vadd.f32 0.0, %v552
  %554 = vdwg.mxu0
  %555 = vrot.lane.b32.xlu0 %v176, 96
  %v556 = vpop.permute.xlu0 %555
  %557 = vrot.lane.b32.xlu0 %v179, 96
  %v558 = vpop.permute.xlu0 %557
  %559 = vrot.lane.b32.xlu0 %v182, 96
  %v560 = vpop.permute.xlu0 %559
  %561 = vrot.lane.b32.xlu0 %v185, 96
  %v562 = vpop.permute.xlu0 %561
  %v568 = vsel %vm309, %v456, 0
  %v571 = vsel %vm309, %v471, 0
  %v574 = vsel %vm309, %v486, 0
  %v577 = vsel %vm309, %v501, 0
  %579 = vmatpush.msra.mxu0 0.0
  %580 = vmatpush.msra.mxu0 0.0
  %581 = vmatpush.msra.mxu0 0.0
  %582 = vmatpush.msra.mxu0 0.0
  %583 = vmatpush.msra.mxu0 0.0
  %584 = vmatpush.msra.mxu0 0.0
  %585 = vmatpush.msra.mxu0 0.0
  %586 = vmatpush.msra.mxu0 0.0
  %587 = vmatpush.msra.mxu0 0.0
  %588 = vmatpush.msra.mxu0 0.0
  %589 = vmatpush.msra.mxu0 0.0
  %590 = vmatpush.msra.mxu0 0.0
  %591 = vmatpush.msra.mxu0 %v562
  %592 = vmatpush.msra.mxu0 %v560
  %593 = vmatpush.msra.mxu0 %v558
  %594 = vmatpush.msra.mxu0 %v556
  %595 = vmatmul.f32.gmra.mxu0 %v568
  %v596 = vpop.f32.mrf.mxu0
  %v597 = vadd.f32 0.0, %v596
  %598 = vmatmul.f32.gmra.mxu0 %v571
  %v599 = vpop.f32.mrf.mxu0
  %v600 = vadd.f32 0.0, %v599
  %601 = vmatmul.f32.gmra.mxu0 %v574
  %v602 = vpop.f32.mrf.mxu0
  %v603 = vadd.f32 0.0, %v602
  %604 = vmatmul.f32.gmra.mxu0 %v577
  %v605 = vpop.f32.mrf.mxu0
  %v606 = vadd.f32 0.0, %v605
  %607 = vdwg.mxu0
  %v608 = vadd.f32 %v107, %v544
  %v609 = vadd.f32 %v108, %v547
  %v610 = vadd.f32 %v109, %v550
  %v611 = vadd.f32 %v110, %v553
  %v612 = vadd.f32 %v111, %v597
  %v613 = vadd.f32 %v112, %v600
  %v614 = vadd.f32 %v113, %v603
  %v615 = vadd.f32 %v114, %v606
  %v616 = vld [vmem:[%s5] sm:$0xff]
  %v617 = vld [vmem:[%s5 + $0x8] sm:$0xff]
  %v618 = vld [vmem:[%s6] sm:$0x1]
  %v620 = vperm.slane %v618, 0
  %v623 = vsel %vm121, %v608, 0
  %v626 = vsel %vm121, %v609, 0
  %v629 = vsel %vm121, %v610, 0
  %v632 = vsel %vm121, %v611, 0
  %v635 = vsel %vm121, %v612, 0
  %v638 = vsel %vm121, %v613, 0
  %v641 = vsel %vm121, %v614, 0
  %v644 = vsel %vm121, %v615, 0
  %646 = vmatpush.msra.mxu0 0.0
  %647 = vmatpush.msra.mxu0 0.0
  %648 = vmatpush.msra.mxu0 0.0
  %649 = vmatpush.msra.mxu0 0.0
  %650 = vmatpush.msra.mxu0 0.0
  %651 = vmatpush.msra.mxu0 0.0
  %652 = vmatpush.msra.mxu0 0.0
  %653 = vmatpush.msra.mxu0 0.0
  %654 = vmatpush.msra.mxu0 0.0
  %655 = vmatpush.msra.mxu0 0.0
  %656 = vmatpush.msra.mxu0 0.0
  %657 = vmatpush.msra.mxu0 0.0
  %658 = vmatpush.msra.mxu0 0.0
  %659 = vmatpush.msra.mxu0 0.0
  %660 = vmatpush.msra.mxu0 %v617
  %661 = vmatpush.msra.mxu0 %v616
  %662 = vmatmul.f32.gmra.mxu0 %v623
  %v663 = vpop.f32.mrf.mxu0
  %v664 = vadd.f32 %v620, %v663
  %665 = vmatmul.f32.gmra.mxu0 %v626
  %v666 = vpop.f32.mrf.mxu0
  %v667 = vadd.f32 %v620, %v666
  %668 = vmatmul.f32.gmra.mxu0 %v629
  %v669 = vpop.f32.mrf.mxu0
  %v670 = vadd.f32 %v620, %v669
  %671 = vmatmul.f32.gmra.mxu0 %v632
  %v672 = vpop.f32.mrf.mxu0
  %v673 = vadd.f32 %v620, %v672
  %674 = vmatmul.f32.gmra.mxu0 %v635
  %v675 = vpop.f32.mrf.mxu0
  %v676 = vadd.f32 %v620, %v675
  %677 = vmatmul.f32.gmra.mxu0 %v638
  %v678 = vpop.f32.mrf.mxu0
  %v679 = vadd.f32 %v620, %v678
  %680 = vmatmul.f32.gmra.mxu0 %v641
  %v681 = vpop.f32.mrf.mxu0
  %v682 = vadd.f32 %v620, %v681
  %683 = vmatmul.f32.gmra.mxu0 %v644
  %v684 = vpop.f32.mrf.mxu0
  %v685 = vadd.f32 %v620, %v684
  %686 = vdwg.mxu0
  %v687 = vmax.f32 %v664, 0.0
  %v688 = vmax.f32 %v667, 0.0
  %v689 = vmax.f32 %v670, 0.0
  %v690 = vmax.f32 %v673, 0.0
  %v691 = vmax.f32 %v676, 0.0
  %v692 = vmax.f32 %v679, 0.0
  %v693 = vmax.f32 %v682, 0.0
  %v694 = vmax.f32 %v685, 0.0
  %v695 = vld [vmem:[%s7] sm:$0xff]
  %v696 = vld [vmem:[%s7 + $0x8] sm:$0xff]
  %v697 = vld [vmem:[%s7 + $0x10] sm:$0xff]
  %v698 = vld [vmem:[%s7 + $0x18] sm:$0xff]
  %v699 = vld [vmem:[%s8] sm:$0x1]
  %v701 = vperm.slane %v699, 0
  %v704 = vsel %vm309, %v687, 0
  %v707 = vsel %vm309, %v688, 0
  %v710 = vsel %vm309, %v689, 0
  %v713 = vsel %vm309, %v690, 0
  %v716 = vsel %vm309, %v691, 0
  %v719 = vsel %vm309, %v692, 0
  %v722 = vsel %vm309, %v693, 0
  %v725 = vsel %vm309, %v694, 0
  %727 = vmatpush.msra.mxu0 0.0
  %728 = vmatpush.msra.mxu0 0.0
  %729 = vmatpush.msra.mxu0 0.0
  %730 = vmatpush.msra.mxu0 0.0
  %731 = vmatpush.msra.mxu0 0.0
  %732 = vmatpush.msra.mxu0 0.0
  %733 = vmatpush.msra.mxu0 0.0
  %734 = vmatpush.msra.mxu0 0.0
  %735 = vmatpush.msra.mxu0 0.0
  %736 = vmatpush.msra.mxu0 0.0
  %737 = vmatpush.msra.mxu0 0.0
  %738 = vmatpush.msra.mxu0 0.0
  %739 = vmatpush.msra.mxu0 %v698
  %740 = vmatpush.msra.mxu0 %v697
  %741 = vmatpush.msra.mxu0 %v696
  %742 = vmatpush.msra.mxu0 %v695
  %743 = vmatmul.f32.gmra.mxu0 %v704
  %v744 = vpop.f32.mrf.mxu0
  %v745 = vadd.f32 %v701, %v744
  %746 = vmatmul.f32.gmra.mxu0 %v707
  %v747 = vpop.f32.mrf.mxu0
  %v748 = vadd.f32 %v701, %v747
  %749 = vmatmul.f32.gmra.mxu0 %v710
  %v750 = vpop.f32.mrf.mxu0
  %v751 = vadd.f32 %v701, %v750
  %752 = vmatmul.f32.gmra.mxu0 %v713
  %v753 = vpop.f32.mrf.mxu0
  %v754 = vadd.f32 %v701, %v753
  %755 = vmatmul.f32.gmra.mxu0 %v716
  %v756 = vpop.f32.mrf.mxu0
  %v757 = vadd.f32 %v701, %v756
  %758 = vmatmul.f32.gmra.mxu0 %v719
  %v759 = vpop.f32.mrf.mxu0
  %v760 = vadd.f32 %v701, %v759
  %761 = vmatmul.f32.gmra.mxu0 %v722
  %v762 = vpop.f32.mrf.mxu0
  %v763 = vadd.f32 %v701, %v762
  %764 = vmatmul.f32.gmra.mxu0 %v725
  %v765 = vpop.f32.mrf.mxu0
  %v766 = vadd.f32 %v701, %v765
  %767 = vdwg.mxu0
  %v768 = vadd.f32 %v608, %v745
  %v769 = vadd.f32 %v609, %v748
  %v770 = vadd.f32 %v610, %v751
  %v771 = vadd.f32 %v611, %v754
  %v772 = vadd.f32 %v612, %v757
  %v773 = vadd.f32 %v613, %v760
  %v774 = vadd.f32 %v614, %v763
  %v775 = vadd.f32 %v615, %v766
  %v776 = vsel %vm121, %v768, 0.0
  %v777 = vsel %vm121, %v769, 0.0
  %v778 = vadd.f32 %v776, %v777
  %v779 = vsel %vm121, %v770, 0.0
  %v780 = vadd.f32 %v778, %v779
  %v781 = vsel %vm121, %v771, 0.0
  %v782 = vadd.f32 %v780, %v781
  %v783 = vrot.slane %v782, 4
  %v784 = vadd.f32 %v782, %v783
  %v785 = vrot.slane %v784, 2
  %v786 = vadd.f32 %v784, %v785
  %v787 = vrot.slane %v786, 1
  %v788 = vadd.f32 %v786, %v787
  %v789 = vsel %vm121, %v772, 0.0
  %v790 = vsel %vm121, %v773, 0.0
  %v791 = vadd.f32 %v789, %v790
  %v792 = vsel %vm121, %v774, 0.0
  %v793 = vadd.f32 %v791, %v792
  %v794 = vsel %vm121, %v775, 0.0
  %v795 = vadd.f32 %v793, %v794
  %v796 = vrot.slane %v795, 4
  %v797 = vadd.f32 %v795, %v796
  %v798 = vrot.slane %v797, 2
  %v799 = vadd.f32 %v797, %v798
  %v800 = vrot.slane %v799, 1
  %v801 = vadd.f32 %v799, %v800
  %v802 = vrcp.pop 32.0
  %v803 = vmul.f32 32.0, %v802
  %v804 = vsub.f32 1.0, %v803
  %v805 = vmul.f32 %v802, %v804
  %v806 = vadd.f32 %v802, %v805
  %vm807 = vweird.f32 %v802
  %v808 = vsel %vm807, %v802, %v806
  %v809 = vmul.f32 %v788, %v808
  %v810 = vmul.f32 %v801, %v808
  %v811 = vld [vmem:[%s9] sm:$0xff]
  %v812 = vld [vmem:[%s9 + $0x8] sm:$0xff]
  %v813 = vld [vmem:[%s10] sm:$0x1]
  %v815 = vperm.slane %v813, 0
  %vm819 = vcmask 1041409
  %v820 = vsel %vm819, %v810, %v809
  %v821 = vsel %vm121, %v820, 0
  %823 = vmatpush.msra.mxu0 0.0
  %824 = vmatpush.msra.mxu0 0.0
  %825 = vmatpush.msra.mxu0 0.0
  %826 = vmatpush.msra.mxu0 0.0
  %827 = vmatpush.msra.mxu0 0.0
  %828 = vmatpush.msra.mxu0 0.0
  %829 = vmatpush.msra.mxu0 0.0
  %830 = vmatpush.msra.mxu0 0.0
  %831 = vmatpush.msra.mxu0 0.0
  %832 = vmatpush.msra.mxu0 0.0
  %833 = vmatpush.msra.mxu0 0.0
  %834 = vmatpush.msra.mxu0 0.0
  %835 = vmatpush.msra.mxu0 0.0
  %836 = vmatpush.msra.mxu0 0.0
  %837 = vmatpush.msra.mxu0 %v812
  %838 = vmatpush.msra.mxu0 %v811
  %839 = vmatmul.f32.gmra.mxu0 %v821
  %v840 = vpop.f32.mrf.mxu0
  %v841 = vadd.f32 %v815, %v840
  %842 = vdwg.mxu0
  %vm843 = vcmask 58368
  %844 = vst.msk [vmem:[%s11] sm:$0x3] %vm843, %v841
  // Predicated region
  $region46: #{forward.6} parent=0 // pred_check
    _
  $region47: #{forward.6} parent=0 // pred_check_branch
    %846 = sbr.rel (0) target = $region49
  $region48: #{forward.6} parent=0 // pred_region
    _
  $region49: #{forward.6} parent=0 // pred_fallthru
    _
  // Predicated region
  $region50: #{forward.6} parent=0 // pred_check
    _
  $region51: #{forward.6} parent=0 // pred_check_branch
    %848 = sbr.rel (0) target = $region53
  $region52: #{forward.6} parent=0 // pred_region
    _
  $region53: #{forward.6} parent=0 // pred_fallthru
    _

</llo_original>
